<compile_context>
chip_gen: v7x
topology: tpu7x:2x2x1
jax: 0.10.0
libtpu: 0.0.40
codegen_flags: <defaults>
</compile_context>

<pallas_src>
import jax
import jax.numpy as jnp
from jax.experimental import pallas as pl
from jax.experimental.pallas import tpu as pltpu

C_IN = 9       # model input channels
C_PAD = 16     # channels zero-padded so the in-kernel im2col stack is sublane-aligned
K1 = 7         # first conv kernel size (handled as one im2col matmul)


# ----------------------------- in-kernel helpers -----------------------------

def _pool3(y):
    """MaxPool1d(kernel=3, stride=3) on (C, L): 3-way shifted max + 0/1 selection matmul."""
    _, Lc = y.shape
    Lp = Lc // 3
    Lm = Lc - 2
    m = jnp.maximum(jnp.maximum(y[:, 0:Lm], y[:, 1:1 + Lm]), y[:, 2:2 + Lm])
    rows = jax.lax.broadcasted_iota(jnp.int32, (Lm, Lp), 0)
    cols = jax.lax.broadcasted_iota(jnp.int32, (Lm, Lp), 1)
    sel = (rows == 3 * cols).astype(jnp.float32)          # sel[3j, j] = 1 (exact)
    return jnp.dot(m, sel, preferred_element_type=jnp.float32)


def _conv_relu(y, w_ref, b_ref):
    """Conv1d (valid, stride 1) as K shifted MXU matmuls, + bias + ReLU."""
    K = w_ref.shape[0]
    L_out = y.shape[1] - K + 1
    acc = jnp.dot(w_ref[0], y[:, 0:L_out], preferred_element_type=jnp.float32)
    for k in range(1, K):
        acc = acc + jnp.dot(w_ref[k], y[:, k:k + L_out],
                            preferred_element_type=jnp.float32)
    return jnp.maximum(acc + b_ref[...], 0.0)


# ------------------------------- fused kernel --------------------------------

def _fused_kernel(x_ref, w1_ref, b1_ref, w2_ref, b2_ref, w3_ref, b3_ref,
                  w4_ref, b4_ref, wl_ref, bl_ref, o_ref, im_ref):
    # ---- block 1: Conv1d(9->128, k=7) as ONE im2col matmul ----
    L1 = x_ref.shape[2] - K1 + 1                     # 122
    for k in range(K1):                              # aligned sublane stores into scratch
        im_ref[k * C_PAD:(k + 1) * C_PAD, :] = x_ref[0, :, k:k + L1]
    y = jnp.dot(w1_ref[...], im_ref[...], preferred_element_type=jnp.float32)
    y = jnp.maximum(y + b1_ref[...], 0.0)            # bias + ReLU (Dropout = identity)
    y = _pool3(y)                                    # (128, 40)

    # ---- blocks 2..4 ----
    y = _pool3(_conv_relu(y, w2_ref, b2_ref))        # (256, 12)
    y = _pool3(_conv_relu(y, w3_ref, b3_ref))        # (256, 3)
    y = _conv_relu(y, w4_ref, b4_ref)                # (128, 2)   final block: no pool

    # ---- head: AdaptiveMaxPool1d(1) + Linear(128 -> 2) ----
    h = jnp.max(y, axis=-1, keepdims=True)           # (128, 1)
    o_ref[0] = jnp.dot(wl_ref[...], h, preferred_element_type=jnp.float32) + bl_ref[...]


# -------------------------------- model wrapper -------------------------------

def bayes_cnn_forward(x, params):
    """x: (B, L, C_in) float32 -> logits (B, 2)."""
    B, L, c_in = x.shape
    # torch.permute(x, (0, 2, 1)) then zero-pad channels 9 -> 16 (exact: the matching
    # weight rows are zero).
    xp = jnp.transpose(x, (0, 2, 1))
    xp = jnp.pad(xp, ((0, 0), (0, C_PAD - c_in), (0, 0)))

    w1, b1 = params["w1"], params["b1"]
    w2, b2 = params["w2"], params["b2"]
    w3, b3 = params["w3"], params["b3"]
    w4, b4 = params["w4"], params["b4"]
    wl, bl = params["wl"], params["bl"]

    L1 = L - K1 + 1

    def full2(s):
        return pl.BlockSpec(s, lambda i: (0, 0))

    def full3(s):
        return pl.BlockSpec(s, lambda i: (0, 0, 0))

    out = pl.pallas_call(
        _fused_kernel,
        out_shape=jax.ShapeDtypeStruct((B, 2, 1), jnp.float32),
        grid=(B,),
        in_specs=[
            pl.BlockSpec((1, C_PAD, L), lambda i: (i, 0, 0)),
            full2(w1.shape), full2(b1.shape),
            full3(w2.shape), full2(b2.shape),
            full3(w3.shape), full2(b3.shape),
            full3(w4.shape), full2(b4.shape),
            full2(wl.shape), full2(bl.shape),
        ],
        out_specs=pl.BlockSpec((1, 2, 1), lambda i: (i, 0, 0)),
        scratch_shapes=[pltpu.VMEM((K1 * C_PAD, L1), jnp.float32)],  # im2col operand
        compiler_params=pltpu.CompilerParams(dimension_semantics=("parallel",)),
    )(xp, w1, b1, w2, b2, w3, b3, w4, b4, wl, bl)
    return out[:, :, 0]                              # (B, 2)


def init_params(key):
    out_channel_list = [128, 256, 256, 128]
    kernel_sizes = [7, 5, 3, 2]
    in_channel_list = [C_IN] + out_channel_list[:-1]

    params = {}
    for i in range(len(out_channel_list)):
        key, kw, kb = jax.random.split(key, 3)
        c_in, c_out, ks = in_channel_list[i], out_channel_list[i], kernel_sizes[i]
        bound = 1.0 / float(c_in * ks) ** 0.5
        w = jax.random.uniform(kw, (c_out, c_in, ks), jnp.float32, -bound, bound)
        b = jax.random.uniform(kb, (c_out,), jnp.float32, -bound, bound)
        if i == 0:
            # im2col weight: rows ordered tap-major / channel-minor, channels padded.
            wp = jnp.pad(w, ((0, 0), (0, C_PAD - c_in), (0, 0)))        # (c_out, 16, 7)
            params["w1"] = jnp.transpose(wp, (0, 2, 1)).reshape(c_out, K1 * C_PAD)
            params["b1"] = b.reshape(c_out, 1)
        else:
            params[f"w{i + 1}"] = jnp.transpose(w, (2, 0, 1))           # (K, c_out, c_in)
            params[f"b{i + 1}"] = b.reshape(c_out, 1)

    key, kw, kb = jax.random.split(key, 3)
    bound = 1.0 / float(128) ** 0.5
    params["wl"] = jax.random.uniform(kw, (2, 128), jnp.float32, -bound, bound)  # torch Linear layout
    params["bl"] = jax.random.uniform(kb, (2,), jnp.float32, -bound, bound).reshape(2, 1)
    return params


if __name__ == "__main__":
    key = jax.random.PRNGKey(0)
    kp, kx = jax.random.split(key)

    params = init_params(kp)

    # Input: (B, L, C_in) = (2, 128, 9) — L=128 keeps all conv/pool stages valid:
    # 128 ->(k7) 122 ->(pool3) 40 ->(k5) 36 ->(pool3) 12 ->(k3) 10 ->(pool3) 3 ->(k2) 2
    x = jax.random.normal(kx, (2, 128, 9), dtype=jnp.float32)

    logits = jax.jit(bayes_cnn_forward)(x, params)
    logits = jax.block_until_ready(logits)

    assert logits.shape == (2, 2), logits.shape
    assert bool(jnp.all(jnp.isfinite(logits)))
    print("KERNEL_OK")
</pallas_src>

<mosaic_0001>
module attributes {stable_mosaic.version = 11 : i64} {
  func.func @_fused_kernel(%arg0: i32, %arg1: memref<1x16x128xf32, #tpu.memory_space<vmem>>, %arg2: memref<128x112xf32, #tpu.memory_space<vmem>>, %arg3: memref<128x1xf32, #tpu.memory_space<vmem>>, %arg4: memref<5x256x128xf32, #tpu.memory_space<vmem>>, %arg5: memref<256x1xf32, #tpu.memory_space<vmem>>, %arg6: memref<3x256x256xf32, #tpu.memory_space<vmem>>, %arg7: memref<256x1xf32, #tpu.memory_space<vmem>>, %arg8: memref<2x128x256xf32, #tpu.memory_space<vmem>>, %arg9: memref<128x1xf32, #tpu.memory_space<vmem>>, %arg10: memref<2x128xf32, #tpu.memory_space<vmem>>, %arg11: memref<2x1xf32, #tpu.memory_space<vmem>>, %arg12: memref<1x2x1xf32, #tpu.memory_space<vmem>>, %arg13: memref<112x122xf32, #tpu.memory_space<vmem>>) attributes {dimension_semantics = [#tpu.dimension_semantics<parallel>], iteration_bounds = array<i64: 2>, scalar_prefetch = 0 : i64, scratch_operands = 1 : i64, tpu.core_type = #tpu.core_type<tc>, window_params = [{transform_indices = @transform_0, window_bounds = array<i64: 1, 16, 128>}, {pipeline_mode = #tpu.pipeline_mode<synchronous>, transform_indices = @transform_1, window_bounds = array<i64: 128, 112>}, {pipeline_mode = #tpu.pipeline_mode<synchronous>, transform_indices = @transform_2, window_bounds = array<i64: 128, 1>}, {pipeline_mode = #tpu.pipeline_mode<synchronous>, transform_indices = @transform_3, window_bounds = array<i64: 5, 256, 128>}, {pipeline_mode = #tpu.pipeline_mode<synchronous>, transform_indices = @transform_4, window_bounds = array<i64: 256, 1>}, {pipeline_mode = #tpu.pipeline_mode<synchronous>, transform_indices = @transform_5, window_bounds = array<i64: 3, 256, 256>}, {pipeline_mode = #tpu.pipeline_mode<synchronous>, transform_indices = @transform_6, window_bounds = array<i64: 256, 1>}, {pipeline_mode = #tpu.pipeline_mode<synchronous>, transform_indices = @transform_7, window_bounds = array<i64: 2, 128, 256>}, {pipeline_mode = #tpu.pipeline_mode<synchronous>, transform_indices = @transform_8, window_bounds = array<i64: 128, 1>}, {pipeline_mode = #tpu.pipeline_mode<synchronous>, transform_indices = @transform_9, window_bounds = array<i64: 2, 128>}, {pipeline_mode = #tpu.pipeline_mode<synchronous>, transform_indices = @transform_10, window_bounds = array<i64: 2, 1>}, {transform_indices = @transform_11, window_bounds = array<i64: 1, 2, 1>}]} {
    %c0 = arith.constant 0 : index
    %c0_0 = arith.constant 0 : index
    %c0_1 = arith.constant 0 : index
    %0 = vector.load %arg1[%c0, %c0_0, %c0_1] : memref<1x16x128xf32, #tpu.memory_space<vmem>>, vector<1x16x122xf32>
    %1 = vector.shape_cast %0 : vector<1x16x122xf32> to vector<16x122xf32>
    %c0_2 = arith.constant 0 : index
    %c0_3 = arith.constant 0 : index
    %2 = vector.load %arg13[%c0_2, %c0_3] : memref<112x122xf32, #tpu.memory_space<vmem>>, vector<16x122xf32>
    tpu.vector_store %arg13[%c0_2, %c0_3], %1 {strides = array<i32>} : memref<112x122xf32, #tpu.memory_space<vmem>>, vector<16x122xf32>,
    %c0_4 = arith.constant 0 : index
    %c0_5 = arith.constant 0 : index
    %c1 = arith.constant 1 : index
    %3 = vector.load %arg1[%c0_4, %c0_5, %c1] : memref<1x16x128xf32, #tpu.memory_space<vmem>>, vector<1x16x122xf32>
    %4 = vector.shape_cast %3 : vector<1x16x122xf32> to vector<16x122xf32>
    %c16 = arith.constant 16 : index
    %c0_6 = arith.constant 0 : index
    %5 = vector.load %arg13[%c16, %c0_6] : memref<112x122xf32, #tpu.memory_space<vmem>>, vector<16x122xf32>
    tpu.vector_store %arg13[%c16, %c0_6], %4 {strides = array<i32>} : memref<112x122xf32, #tpu.memory_space<vmem>>, vector<16x122xf32>,
    %c0_7 = arith.constant 0 : index
    %c0_8 = arith.constant 0 : index
    %c2 = arith.constant 2 : index
    %6 = vector.load %arg1[%c0_7, %c0_8, %c2] : memref<1x16x128xf32, #tpu.memory_space<vmem>>, vector<1x16x122xf32>
    %7 = vector.shape_cast %6 : vector<1x16x122xf32> to vector<16x122xf32>
    %c32 = arith.constant 32 : index
    %c0_9 = arith.constant 0 : index
    %8 = vector.load %arg13[%c32, %c0_9] : memref<112x122xf32, #tpu.memory_space<vmem>>, vector<16x122xf32>
    tpu.vector_store %arg13[%c32, %c0_9], %7 {strides = array<i32>} : memref<112x122xf32, #tpu.memory_space<vmem>>, vector<16x122xf32>,
    %c0_10 = arith.constant 0 : index
    %c0_11 = arith.constant 0 : index
    %c3 = arith.constant 3 : index
    %9 = vector.load %arg1[%c0_10, %c0_11, %c3] : memref<1x16x128xf32, #tpu.memory_space<vmem>>, vector<1x16x122xf32>
    %10 = vector.shape_cast %9 : vector<1x16x122xf32> to vector<16x122xf32>
    %c48 = arith.constant 48 : index
    %c0_12 = arith.constant 0 : index
    %11 = vector.load %arg13[%c48, %c0_12] : memref<112x122xf32, #tpu.memory_space<vmem>>, vector<16x122xf32>
    tpu.vector_store %arg13[%c48, %c0_12], %10 {strides = array<i32>} : memref<112x122xf32, #tpu.memory_space<vmem>>, vector<16x122xf32>,
    %c0_13 = arith.constant 0 : index
    %c0_14 = arith.constant 0 : index
    %c4 = arith.constant 4 : index
    %12 = vector.load %arg1[%c0_13, %c0_14, %c4] : memref<1x16x128xf32, #tpu.memory_space<vmem>>, vector<1x16x122xf32>
    %13 = vector.shape_cast %12 : vector<1x16x122xf32> to vector<16x122xf32>
    %c64 = arith.constant 64 : index
    %c0_15 = arith.constant 0 : index
    %14 = vector.load %arg13[%c64, %c0_15] : memref<112x122xf32, #tpu.memory_space<vmem>>, vector<16x122xf32>
    tpu.vector_store %arg13[%c64, %c0_15], %13 {strides = array<i32>} : memref<112x122xf32, #tpu.memory_space<vmem>>, vector<16x122xf32>,
    %c0_16 = arith.constant 0 : index
    %c0_17 = arith.constant 0 : index
    %c5 = arith.constant 5 : index
    %15 = vector.load %arg1[%c0_16, %c0_17, %c5] : memref<1x16x128xf32, #tpu.memory_space<vmem>>, vector<1x16x122xf32>
    %16 = vector.shape_cast %15 : vector<1x16x122xf32> to vector<16x122xf32>
    %c80 = arith.constant 80 : index
    %c0_18 = arith.constant 0 : index
    %17 = vector.load %arg13[%c80, %c0_18] : memref<112x122xf32, #tpu.memory_space<vmem>>, vector<16x122xf32>
    tpu.vector_store %arg13[%c80, %c0_18], %16 {strides = array<i32>} : memref<112x122xf32, #tpu.memory_space<vmem>>, vector<16x122xf32>,
    %c0_19 = arith.constant 0 : index
    %c0_20 = arith.constant 0 : index
    %c6 = arith.constant 6 : index
    %18 = vector.load %arg1[%c0_19, %c0_20, %c6] : memref<1x16x128xf32, #tpu.memory_space<vmem>>, vector<1x16x122xf32>
    %19 = vector.shape_cast %18 : vector<1x16x122xf32> to vector<16x122xf32>
    %c96 = arith.constant 96 : index
    %c0_21 = arith.constant 0 : index
    %20 = vector.load %arg13[%c96, %c0_21] : memref<112x122xf32, #tpu.memory_space<vmem>>, vector<16x122xf32>
    tpu.vector_store %arg13[%c96, %c0_21], %19 {strides = array<i32>} : memref<112x122xf32, #tpu.memory_space<vmem>>, vector<16x122xf32>,
    %c0_22 = arith.constant 0 : index
    %c0_23 = arith.constant 0 : index
    %21 = vector.load %arg2[%c0_22, %c0_23] : memref<128x112xf32, #tpu.memory_space<vmem>>, vector<128x112xf32>
    %c0_24 = arith.constant 0 : index
    %c0_25 = arith.constant 0 : index
    %22 = vector.load %arg13[%c0_24, %c0_25] : memref<112x122xf32, #tpu.memory_space<vmem>>, vector<112x122xf32>
    %cst = arith.constant dense<0.000000e+00> : vector<128x122xf32>
    %23 = tpu.matmul %21, %22, %cst {dimension_numbers = #tpu.dot_dimension_numbers<[1], [0], [0], [1], [0, 0, 1, 1], [], []>} : vector<128x112xf32>, vector<112x122xf32>, vector<128x122xf32> -> vector<128x122xf32>
    %c0_26 = arith.constant 0 : index
    %c0_27 = arith.constant 0 : index
    %24 = vector.load %arg3[%c0_26, %c0_27] : memref<128x1xf32, #tpu.memory_space<vmem>>, vector<128x1xf32>
    %25 = vector.broadcast %24 : vector<128x1xf32> to vector<128x122xf32>
    %26 = arith.addf %23, %25 : vector<128x122xf32>
    %cst_28 = arith.constant 0.000000e+00 : f32
    %27 = vector.broadcast %cst_28 : f32 to vector<128x122xf32>
    %28 = arith.maximumf %26, %27 : vector<128x122xf32>
    %29 = vector.extract_strided_slice %28 {offsets = [0, 0], sizes = [128, 120], strides = [1, 1]} : vector<128x122xf32> to vector<128x120xf32>
    %30 = vector.extract_strided_slice %28 {offsets = [0, 1], sizes = [128, 120], strides = [1, 1]} : vector<128x122xf32> to vector<128x120xf32>
    %31 = arith.maximumf %29, %30 : vector<128x120xf32>
    %32 = vector.extract_strided_slice %28 {offsets = [0, 2], sizes = [128, 120], strides = [1, 1]} : vector<128x122xf32> to vector<128x120xf32>
    %33 = arith.maximumf %31, %32 : vector<128x120xf32>
    %34 = tpu.iota {dimensions = array<i32: 0>} : vector<120x40xi32>
    %35 = tpu.iota {dimensions = array<i32: 1>} : vector<120x40xi32>
    %c3_i32 = arith.constant 3 : i32
    %36 = vector.broadcast %c3_i32 : i32 to vector<120x40xi32>
    %37 = arith.muli %36, %35 : vector<120x40xi32>
    %38 = arith.cmpi eq, %34, %37 : vector<120x40xi32>
    %39 = arith.extui %38 : vector<120x40xi1> to vector<120x40xi32>
    %40 = arith.sitofp %39 : vector<120x40xi32> to vector<120x40xf32>
    %cst_29 = arith.constant dense<0.000000e+00> : vector<128x40xf32>
    %41 = tpu.matmul %33, %40, %cst_29 {dimension_numbers = #tpu.dot_dimension_numbers<[1], [0], [0], [1], [0, 0, 1, 1], [], []>} : vector<128x120xf32>, vector<120x40xf32>, vector<128x40xf32> -> vector<128x40xf32>
    %c0_30 = arith.constant 0 : index
    %c0_31 = arith.constant 0 : index
    %c0_32 = arith.constant 0 : index
    %42 = vector.load %arg4[%c0_30, %c0_31, %c0_32] : memref<5x256x128xf32, #tpu.memory_space<vmem>>, vector<1x256x128xf32>
    %43 = vector.shape_cast %42 : vector<1x256x128xf32> to vector<256x128xf32>
    %44 = vector.extract_strided_slice %41 {offsets = [0, 0], sizes = [128, 36], strides = [1, 1]} : vector<128x40xf32> to vector<128x36xf32>
    %cst_33 = arith.constant dense<0.000000e+00> : vector<256x36xf32>
    %45 = tpu.matmul %43, %44, %cst_33 {dimension_numbers = #tpu.dot_dimension_numbers<[1], [0], [0], [1], [0, 0, 1, 1], [], []>} : vector<256x128xf32>, vector<128x36xf32>, vector<256x36xf32> -> vector<256x36xf32>
    %c1_34 = arith.constant 1 : index
    %c0_35 = arith.constant 0 : index
    %c0_36 = arith.constant 0 : index
    %46 = vector.load %arg4[%c1_34, %c0_35, %c0_36] : memref<5x256x128xf32, #tpu.memory_space<vmem>>, vector<1x256x128xf32>
    %47 = vector.shape_cast %46 : vector<1x256x128xf32> to vector<256x128xf32>
    %48 = vector.extract_strided_slice %41 {offsets = [0, 1], sizes = [128, 36], strides = [1, 1]} : vector<128x40xf32> to vector<128x36xf32>
    %cst_37 = arith.constant dense<0.000000e+00> : vector<256x36xf32>
    %49 = tpu.matmul %47, %48, %cst_37 {dimension_numbers = #tpu.dot_dimension_numbers<[1], [0], [0], [1], [0, 0, 1, 1], [], []>} : vector<256x128xf32>, vector<128x36xf32>, vector<256x36xf32> -> vector<256x36xf32>
    %50 = arith.addf %45, %49 : vector<256x36xf32>
    %c2_38 = arith.constant 2 : index
    %c0_39 = arith.constant 0 : index
    %c0_40 = arith.constant 0 : index
    %51 = vector.load %arg4[%c2_38, %c0_39, %c0_40] : memref<5x256x128xf32, #tpu.memory_space<vmem>>, vector<1x256x128xf32>
    %52 = vector.shape_cast %51 : vector<1x256x128xf32> to vector<256x128xf32>
    %53 = vector.extract_strided_slice %41 {offsets = [0, 2], sizes = [128, 36], strides = [1, 1]} : vector<128x40xf32> to vector<128x36xf32>
    %cst_41 = arith.constant dense<0.000000e+00> : vector<256x36xf32>
    %54 = tpu.matmul %52, %53, %cst_41 {dimension_numbers = #tpu.dot_dimension_numbers<[1], [0], [0], [1], [0, 0, 1, 1], [], []>} : vector<256x128xf32>, vector<128x36xf32>, vector<256x36xf32> -> vector<256x36xf32>
    %55 = arith.addf %50, %54 : vector<256x36xf32>
    %c3_42 = arith.constant 3 : index
    %c0_43 = arith.constant 0 : index
    %c0_44 = arith.constant 0 : index
    %56 = vector.load %arg4[%c3_42, %c0_43, %c0_44] : memref<5x256x128xf32, #tpu.memory_space<vmem>>, vector<1x256x128xf32>
    %57 = vector.shape_cast %56 : vector<1x256x128xf32> to vector<256x128xf32>
    %58 = vector.extract_strided_slice %41 {offsets = [0, 3], sizes = [128, 36], strides = [1, 1]} : vector<128x40xf32> to vector<128x36xf32>
    %cst_45 = arith.constant dense<0.000000e+00> : vector<256x36xf32>
    %59 = tpu.matmul %57, %58, %cst_45 {dimension_numbers = #tpu.dot_dimension_numbers<[1], [0], [0], [1], [0, 0, 1, 1], [], []>} : vector<256x128xf32>, vector<128x36xf32>, vector<256x36xf32> -> vector<256x36xf32>
    %60 = arith.addf %55, %59 : vector<256x36xf32>
    %c4_46 = arith.constant 4 : index
    %c0_47 = arith.constant 0 : index
    %c0_48 = arith.constant 0 : index
    %61 = vector.load %arg4[%c4_46, %c0_47, %c0_48] : memref<5x256x128xf32, #tpu.memory_space<vmem>>, vector<1x256x128xf32>
    %62 = vector.shape_cast %61 : vector<1x256x128xf32> to vector<256x128xf32>
    %63 = vector.extract_strided_slice %41 {offsets = [0, 4], sizes = [128, 36], strides = [1, 1]} : vector<128x40xf32> to vector<128x36xf32>
    %cst_49 = arith.constant dense<0.000000e+00> : vector<256x36xf32>
    %64 = tpu.matmul %62, %63, %cst_49 {dimension_numbers = #tpu.dot_dimension_numbers<[1], [0], [0], [1], [0, 0, 1, 1], [], []>} : vector<256x128xf32>, vector<128x36xf32>, vector<256x36xf32> -> vector<256x36xf32>
    %65 = arith.addf %60, %64 : vector<256x36xf32>
    %c0_50 = arith.constant 0 : index
    %c0_51 = arith.constant 0 : index
    %66 = vector.load %arg5[%c0_50, %c0_51] : memref<256x1xf32, #tpu.memory_space<vmem>>, vector<256x1xf32>
    %67 = vector.broadcast %66 : vector<256x1xf32> to vector<256x36xf32>
    %68 = arith.addf %65, %67 : vector<256x36xf32>
    %cst_52 = arith.constant 0.000000e+00 : f32
    %69 = vector.broadcast %cst_52 : f32 to vector<256x36xf32>
    %70 = arith.maximumf %68, %69 : vector<256x36xf32>
    %71 = vector.extract_strided_slice %70 {offsets = [0, 0], sizes = [256, 34], strides = [1, 1]} : vector<256x36xf32> to vector<256x34xf32>
    %72 = vector.extract_strided_slice %70 {offsets = [0, 1], sizes = [256, 34], strides = [1, 1]} : vector<256x36xf32> to vector<256x34xf32>
    %73 = arith.maximumf %71, %72 : vector<256x34xf32>
    %74 = vector.extract_strided_slice %70 {offsets = [0, 2], sizes = [256, 34], strides = [1, 1]} : vector<256x36xf32> to vector<256x34xf32>
    %75 = arith.maximumf %73, %74 : vector<256x34xf32>
    %76 = tpu.iota {dimensions = array<i32: 0>} : vector<34x12xi32>
    %77 = tpu.iota {dimensions = array<i32: 1>} : vector<34x12xi32>
    %c3_i32_53 = arith.constant 3 : i32
    %78 = vector.broadcast %c3_i32_53 : i32 to vector<34x12xi32>
    %79 = arith.muli %78, %77 : vector<34x12xi32>
    %80 = arith.cmpi eq, %76, %79 : vector<34x12xi32>
    %81 = arith.extui %80 : vector<34x12xi1> to vector<34x12xi32>
    %82 = arith.sitofp %81 : vector<34x12xi32> to vector<34x12xf32>
    %cst_54 = arith.constant dense<0.000000e+00> : vector<256x12xf32>
    %83 = tpu.matmul %75, %82, %cst_54 {dimension_numbers = #tpu.dot_dimension_numbers<[1], [0], [0], [1], [0, 0, 1, 1], [], []>} : vector<256x34xf32>, vector<34x12xf32>, vector<256x12xf32> -> vector<256x12xf32>
    %c0_55 = arith.constant 0 : index
    %c0_56 = arith.constant 0 : index
    %c0_57 = arith.constant 0 : index
    %84 = vector.load %arg6[%c0_55, %c0_56, %c0_57] : memref<3x256x256xf32, #tpu.memory_space<vmem>>, vector<1x256x256xf32>
    %85 = vector.shape_cast %84 : vector<1x256x256xf32> to vector<256x256xf32>
    %86 = vector.extract_strided_slice %83 {offsets = [0, 0], sizes = [256, 10], strides = [1, 1]} : vector<256x12xf32> to vector<256x10xf32>
    %cst_58 = arith.constant dense<0.000000e+00> : vector<256x10xf32>
    %87 = tpu.matmul %85, %86, %cst_58 {dimension_numbers = #tpu.dot_dimension_numbers<[1], [0], [0], [1], [0, 0, 1, 1], [], []>} : vector<256x256xf32>, vector<256x10xf32>, vector<256x10xf32> -> vector<256x10xf32>
    %c1_59 = arith.constant 1 : index
    %c0_60 = arith.constant 0 : index
    %c0_61 = arith.constant 0 : index
    %88 = vector.load %arg6[%c1_59, %c0_60, %c0_61] : memref<3x256x256xf32, #tpu.memory_space<vmem>>, vector<1x256x256xf32>
    %89 = vector.shape_cast %88 : vector<1x256x256xf32> to vector<256x256xf32>
    %90 = vector.extract_strided_slice %83 {offsets = [0, 1], sizes = [256, 10], strides = [1, 1]} : vector<256x12xf32> to vector<256x10xf32>
    %cst_62 = arith.constant dense<0.000000e+00> : vector<256x10xf32>
    %91 = tpu.matmul %89, %90, %cst_62 {dimension_numbers = #tpu.dot_dimension_numbers<[1], [0], [0], [1], [0, 0, 1, 1], [], []>} : vector<256x256xf32>, vector<256x10xf32>, vector<256x10xf32> -> vector<256x10xf32>
    %92 = arith.addf %87, %91 : vector<256x10xf32>
    %c2_63 = arith.constant 2 : index
    %c0_64 = arith.constant 0 : index
    %c0_65 = arith.constant 0 : index
    %93 = vector.load %arg6[%c2_63, %c0_64, %c0_65] : memref<3x256x256xf32, #tpu.memory_space<vmem>>, vector<1x256x256xf32>
    %94 = vector.shape_cast %93 : vector<1x256x256xf32> to vector<256x256xf32>
    %95 = vector.extract_strided_slice %83 {offsets = [0, 2], sizes = [256, 10], strides = [1, 1]} : vector<256x12xf32> to vector<256x10xf32>
    %cst_66 = arith.constant dense<0.000000e+00> : vector<256x10xf32>
    %96 = tpu.matmul %94, %95, %cst_66 {dimension_numbers = #tpu.dot_dimension_numbers<[1], [0], [0], [1], [0, 0, 1, 1], [], []>} : vector<256x256xf32>, vector<256x10xf32>, vector<256x10xf32> -> vector<256x10xf32>
    %97 = arith.addf %92, %96 : vector<256x10xf32>
    %c0_67 = arith.constant 0 : index
    %c0_68 = arith.constant 0 : index
    %98 = vector.load %arg7[%c0_67, %c0_68] : memref<256x1xf32, #tpu.memory_space<vmem>>, vector<256x1xf32>
    %99 = vector.broadcast %98 : vector<256x1xf32> to vector<256x10xf32>
    %100 = arith.addf %97, %99 : vector<256x10xf32>
    %cst_69 = arith.constant 0.000000e+00 : f32
    %101 = vector.broadcast %cst_69 : f32 to vector<256x10xf32>
    %102 = arith.maximumf %100, %101 : vector<256x10xf32>
    %103 = vector.extract_strided_slice %102 {offsets = [0, 0], sizes = [256, 8], strides = [1, 1]} : vector<256x10xf32> to vector<256x8xf32>
    %104 = vector.extract_strided_slice %102 {offsets = [0, 1], sizes = [256, 8], strides = [1, 1]} : vector<256x10xf32> to vector<256x8xf32>
    %105 = arith.maximumf %103, %104 : vector<256x8xf32>
    %106 = vector.extract_strided_slice %102 {offsets = [0, 2], sizes = [256, 8], strides = [1, 1]} : vector<256x10xf32> to vector<256x8xf32>
    %107 = arith.maximumf %105, %106 : vector<256x8xf32>
    %108 = tpu.iota {dimensions = array<i32: 0>} : vector<8x3xi32>
    %109 = tpu.iota {dimensions = array<i32: 1>} : vector<8x3xi32>
    %c3_i32_70 = arith.constant 3 : i32
    %110 = vector.broadcast %c3_i32_70 : i32 to vector<8x3xi32>
    %111 = arith.muli %110, %109 : vector<8x3xi32>
    %112 = arith.cmpi eq, %108, %111 : vector<8x3xi32>
    %113 = arith.extui %112 : vector<8x3xi1> to vector<8x3xi32>
    %114 = arith.sitofp %113 : vector<8x3xi32> to vector<8x3xf32>
    %cst_71 = arith.constant dense<0.000000e+00> : vector<256x3xf32>
    %115 = tpu.matmul %107, %114, %cst_71 {dimension_numbers = #tpu.dot_dimension_numbers<[1], [0], [0], [1], [0, 0, 1, 1], [], []>} : vector<256x8xf32>, vector<8x3xf32>, vector<256x3xf32> -> vector<256x3xf32>
    %c0_72 = arith.constant 0 : index
    %c0_73 = arith.constant 0 : index
    %c0_74 = arith.constant 0 : index
    %116 = vector.load %arg8[%c0_72, %c0_73, %c0_74] : memref<2x128x256xf32, #tpu.memory_space<vmem>>, vector<1x128x256xf32>
    %117 = vector.shape_cast %116 : vector<1x128x256xf32> to vector<128x256xf32>
    %118 = vector.extract_strided_slice %115 {offsets = [0, 0], sizes = [256, 2], strides = [1, 1]} : vector<256x3xf32> to vector<256x2xf32>
    %cst_75 = arith.constant dense<0.000000e+00> : vector<128x2xf32>
    %119 = tpu.matmul %117, %118, %cst_75 {dimension_numbers = #tpu.dot_dimension_numbers<[1], [0], [0], [1], [0, 0, 1, 1], [], []>} : vector<128x256xf32>, vector<256x2xf32>, vector<128x2xf32> -> vector<128x2xf32>
    %c1_76 = arith.constant 1 : index
    %c0_77 = arith.constant 0 : index
    %c0_78 = arith.constant 0 : index
    %120 = vector.load %arg8[%c1_76, %c0_77, %c0_78] : memref<2x128x256xf32, #tpu.memory_space<vmem>>, vector<1x128x256xf32>
    %121 = vector.shape_cast %120 : vector<1x128x256xf32> to vector<128x256xf32>
    %122 = vector.extract_strided_slice %115 {offsets = [0, 1], sizes = [256, 2], strides = [1, 1]} : vector<256x3xf32> to vector<256x2xf32>
    %cst_79 = arith.constant dense<0.000000e+00> : vector<128x2xf32>
    %123 = tpu.matmul %121, %122, %cst_79 {dimension_numbers = #tpu.dot_dimension_numbers<[1], [0], [0], [1], [0, 0, 1, 1], [], []>} : vector<128x256xf32>, vector<256x2xf32>, vector<128x2xf32> -> vector<128x2xf32>
    %124 = arith.addf %119, %123 : vector<128x2xf32>
    %c0_80 = arith.constant 0 : index
    %c0_81 = arith.constant 0 : index
    %125 = vector.load %arg9[%c0_80, %c0_81] : memref<128x1xf32, #tpu.memory_space<vmem>>, vector<128x1xf32>
    %126 = vector.broadcast %125 : vector<128x1xf32> to vector<128x2xf32>
    %127 = arith.addf %124, %126 : vector<128x2xf32>
    %cst_82 = arith.constant 0.000000e+00 : f32
    %128 = vector.broadcast %cst_82 : f32 to vector<128x2xf32>
    %129 = arith.maximumf %127, %128 : vector<128x2xf32>
    %cst_83 = arith.constant dense<0xFF800000> : vector<128xf32>
    %130 = vector.multi_reduction <maximumf>, %129, %cst_83 [1] : vector<128x2xf32> to vector<128xf32>
    %131 = vector.shape_cast %130 : vector<128xf32> to vector<128x1xf32>
    %c0_84 = arith.constant 0 : index
    %c0_85 = arith.constant 0 : index
    %132 = vector.load %arg10[%c0_84, %c0_85] : memref<2x128xf32, #tpu.memory_space<vmem>>, vector<2x128xf32>
    %cst_86 = arith.constant dense<0.000000e+00> : vector<2x1xf32>
    %133 = tpu.matmul %132, %131, %cst_86 {dimension_numbers = #tpu.dot_dimension_numbers<[1], [0], [0], [1], [0, 0, 1, 1], [], []>} : vector<2x128xf32>, vector<128x1xf32>, vector<2x1xf32> -> vector<2x1xf32>
    %c0_87 = arith.constant 0 : index
    %c0_88 = arith.constant 0 : index
    %134 = vector.load %arg11[%c0_87, %c0_88] : memref<2x1xf32, #tpu.memory_space<vmem>>, vector<2x1xf32>
    %135 = arith.addf %133, %134 : vector<2x1xf32>
    %c0_89 = arith.constant 0 : index
    %c0_90 = arith.constant 0 : index
    %c0_91 = arith.constant 0 : index
    %136 = vector.load %arg12[%c0_89, %c0_90, %c0_91] : memref<1x2x1xf32, #tpu.memory_space<vmem>>, vector<1x2x1xf32>
    %137 = vector.shape_cast %136 : vector<1x2x1xf32> to vector<2x1xf32>
    %138 = vector.shape_cast %135 : vector<2x1xf32> to vector<1x2x1xf32>
    tpu.vector_store %arg12[%c0_89, %c0_90, %c0_91], %138 {strides = array<i32>} : memref<1x2x1xf32, #tpu.memory_space<vmem>>, vector<1x2x1xf32>,
    return
  }
  func.func @transform_0(%arg0: i32) -> (i32, i32, i32) {
    %c0_i32 = arith.constant 0 : i32
    %c0_i32_0 = arith.constant 0 : i32
    %c0_i32_1 = arith.constant 0 : i32
    return %arg0, %c0_i32, %c0_i32_0 : i32, i32, i32
  }
  func.func @transform_1(%arg0: i32) -> (i32, i32) {
    %c0_i32 = arith.constant 0 : i32
    %c0_i32_0 = arith.constant 0 : i32
    %c0_i32_1 = arith.constant 0 : i32
    return %c0_i32, %c0_i32_0 : i32, i32
  }
  func.func @transform_2(%arg0: i32) -> (i32, i32) {
    %c0_i32 = arith.constant 0 : i32
    %c0_i32_0 = arith.constant 0 : i32
    %c0_i32_1 = arith.constant 0 : i32
    return %c0_i32, %c0_i32_0 : i32, i32
  }
  func.func @transform_3(%arg0: i32) -> (i32, i32, i32) {
    %c0_i32 = arith.constant 0 : i32
    %c0_i32_0 = arith.constant 0 : i32
    %c0_i32_1 = arith.constant 0 : i32
    %c0_i32_2 = arith.constant 0 : i32
    return %c0_i32, %c0_i32_0, %c0_i32_1 : i32, i32, i32
  }
  func.func @transform_4(%arg0: i32) -> (i32, i32) {
    %c0_i32 = arith.constant 0 : i32
    %c0_i32_0 = arith.constant 0 : i32
    %c0_i32_1 = arith.constant 0 : i32
    return %c0_i32, %c0_i32_0 : i32, i32
  }
  func.func @transform_5(%arg0: i32) -> (i32, i32, i32) {
    %c0_i32 = arith.constant 0 : i32
    %c0_i32_0 = arith.constant 0 : i32
    %c0_i32_1 = arith.constant 0 : i32
    %c0_i32_2 = arith.constant 0 : i32
    return %c0_i32, %c0_i32_0, %c0_i32_1 : i32, i32, i32
  }
  func.func @transform_6(%arg0: i32) -> (i32, i32) {
    %c0_i32 = arith.constant 0 : i32
    %c0_i32_0 = arith.constant 0 : i32
    %c0_i32_1 = arith.constant 0 : i32
    return %c0_i32, %c0_i32_0 : i32, i32
  }
  func.func @transform_7(%arg0: i32) -> (i32, i32, i32) {
    %c0_i32 = arith.constant 0 : i32
    %c0_i32_0 = arith.constant 0 : i32
    %c0_i32_1 = arith.constant 0 : i32
    %c0_i32_2 = arith.constant 0 : i32
    return %c0_i32, %c0_i32_0, %c0_i32_1 : i32, i32, i32
  }
  func.func @transform_8(%arg0: i32) -> (i32, i32) {
    %c0_i32 = arith.constant 0 : i32
    %c0_i32_0 = arith.constant 0 : i32
    %c0_i32_1 = arith.constant 0 : i32
    return %c0_i32, %c0_i32_0 : i32, i32
  }
  func.func @transform_9(%arg0: i32) -> (i32, i32) {
    %c0_i32 = arith.constant 0 : i32
    %c0_i32_0 = arith.constant 0 : i32
    %c0_i32_1 = arith.constant 0 : i32
    return %c0_i32, %c0_i32_0 : i32, i32
  }
  func.func @transform_10(%arg0: i32) -> (i32, i32) {
    %c0_i32 = arith.constant 0 : i32
    %c0_i32_0 = arith.constant 0 : i32
    %c0_i32_1 = arith.constant 0 : i32
    return %c0_i32, %c0_i32_0 : i32, i32
  }
  func.func @transform_11(%arg0: i32) -> (i32, i32, i32) {
    %c0_i32 = arith.constant 0 : i32
    %c0_i32_0 = arith.constant 0 : i32
    %c0_i32_1 = arith.constant 0 : i32
    return %arg0, %c0_i32, %c0_i32_0 : i32, i32, i32
  }
}

</mosaic_0001>

<llo_original>
// kernel: bayes_cnn_forward.1
$region0: #{bayes_cnn_forward.1}
  #allocation0 [shape = 'u32[]', space=smem, size = 0x4, offset = 0x4, fixed_abs, tag = 'smem constant byte address 0x4 - core index']
  #allocation1 [shape = 'u32[144,128]{1,0:T(1,128)}', space=vmem, size = 0x12000, scoped, tag = 'internal scratch']
  #allocation2 [shape = 'f32[112,122]{1,0:T(8,128)}', space=vmem, size = 0xe000, scoped, tag = 'scratch operand']
  %s0 = inlined_call_operand.vmem [shape: f32[2,16,128], index: 0, kind: input, shape index: {}]
  %s1 = inlined_call_operand.vmem [shape: f32[128,112], index: 1, kind: input, shape index: {}]
  %s2 = inlined_call_operand.vmem [shape: f32[128,1], index: 2, kind: input, shape index: {}]
  %s3 = inlined_call_operand.hbm [shape: f32[5,256,128], index: 3, kind: input, shape index: {}]
  %s4 = inlined_call_operand.vmem [shape: f32[256,1], index: 4, kind: input, shape index: {}]
  %s5 = inlined_call_operand.hbm [shape: f32[3,256,256], index: 5, kind: input, shape index: {}]
  %s6 = inlined_call_operand.vmem [shape: f32[256,1], index: 6, kind: input, shape index: {}]
  %s7 = inlined_call_operand.vmem [shape: f32[2,128,256], index: 7, kind: input, shape index: {}]
  %s8 = inlined_call_operand.vmem [shape: f32[128,1], index: 8, kind: input, shape index: {}]
  %s9 = inlined_call_operand.vmem [shape: f32[2,128], index: 9, kind: input, shape index: {}]
  %s10 = inlined_call_operand.vmem [shape: f32[2,1], index: 10, kind: input, shape index: {}]
  %s11 = inlined_call_operand.vmem [shape: f32[2,2,1], index: 11, kind: output, shape index: {}]
  %s12 = sld [smem:[#allocation0]]
  $region85: #{bayes_cnn_forward.1} parent=0
    _
  %s14 = ssub.s32 1, %s12
  %s15 = scalar_select 0, %s14, %s12
  $region1: #{bayes_cnn_forward.1} parent=0
    #allocation3 [shape = 'u8[655360]{0}', space=vmem, size = 0xa0000, scoped, tag = 'input window, operand 3, single buffered']
    #allocation4 [shape = 's32[2]{0}', space=sflag, size = 0x8, scoped, tag = 'scoped memory for bayes_cnn_forward.1']
    #allocation5 [shape = 'u8[786432]{0}', space=vmem, size = 0xc0000, scoped, tag = 'input window, operand 5, single buffered']
    #allocation6 [shape = 's32[1]{0}', space=sflag, size = 0x4, scoped, tag = 'scoped memory for bayes_cnn_forward.1']
    %16 = vsyncpa [#allocation4], 0
    %17 = vsyncpa [#allocation6], 0
    loop: start=0, step=1, limit=4
    $region2: #{bayes_cnn_forward.1} parent=1 // loop_pre_header
      _
    $region3: #{bayes_cnn_forward.1} parent=1 // loop_header
      %s19 = sphi 0, %s23
      %p20 = scmp.ge.s32.totalorder %s19, 4
      %s29 = sphi 0, %s31
      %s32 = sphi 0, %s29
      %s33 = sphi 0, %s32
      %s49 = sphi 0, %s33
      %s53 = sphi 0, %s53
      %s55 = sphi 0, %s53
      %s56 = sphi 0, %s55
      %s70 = sphi 0, %s56
      %s74 = sphi 0, %s74
      %s76 = sphi 0, %s74
      %s77 = sphi 0, %s76
      %s91 = sphi 0, %s77
      %s95 = sphi 0, %s95
      %s97 = sphi 0, %s95
      %s98 = sphi 0, %s97
      %s112 = sphi 0, %s98
      %s116 = sphi 0, %s116
      %s118 = sphi 0, %s116
      %s119 = sphi 0, %s118
      %s133 = sphi 0, %s119
      %s137 = sphi 0, %s137
      %s139 = sphi 0, %s137
      %s140 = sphi 0, %s139
      %s154 = sphi 0, %s140
      %s158 = sphi 0, %s158
      %s160 = sphi 0, %s158
      %s161 = sphi 0, %s160
      %s175 = sphi 0, %s161
      %s179 = sphi 0, %s179
      %s181 = sphi 0, %s179
      %s182 = sphi 0, %s181
      %s196 = sphi 0, %s182
      %s200 = sphi 0, %s200
      %s202 = sphi 0, %s200
      %s203 = sphi 0, %s202
      %s217 = sphi 0, %s203
      %s221 = sphi 0, %s221
      %s223 = sphi 0, %s221
      %s224 = sphi 0, %s223
      %s238 = sphi 0, %s224
      %s242 = sphi 0, %s242
      %s244 = sphi 0, %s242
      %s245 = sphi 0, %s244
      %s259 = sphi 0, %s245
      %s265 = sphi 0, %s267
      %s268 = sphi 0, %s265
      %s269 = sphi 0, %s268
      %s285 = sphi 0, %s269
    $region4: #{bayes_cnn_forward.1} parent=1 // loop_header_branch
      %22 = sbr.rel (%p20) target = $region8
    $region5: #{bayes_cnn_forward.1} parent=1 // loop_body
      %s24 = ssub.s32 %s19, 1
      %s25 = ssub.s32 %s19, 2
      %s26 = sadd.s32 %s19, 1
      %s27 = ssub.s32 %s19, %s26
      %p28 = scmp.eq.s32.totalorder %s27, 0
      %s30 = sadd.s32 %s29, 1
      %s31 = scalar_select %p28, %s29, %s30
      %p34 = pneg %p28
      %p35 = scmp.eq.s32.totalorder %s19, 1
      %p36 = por %p34, %p35
      %p37 = scmp.ne.s32.totalorder %s29, %s32
      %p38 = scmp.eq.s32.totalorder %s19, 0
      %p39 = por %p37, %p38
      %p40 = scmp.ne.s32.totalorder %s29, %s32
      %p41 = scmp.eq.s32.totalorder %s24, 1
      %p42 = por %p40, %p41
      %p43 = scmp.ne.s32.totalorder %s32, %s33
      %p44 = scmp.eq.s32.totalorder %s24, 0
      %p45 = por %p43, %p44
      %p46 = scmp.ne.s32.totalorder %s32, %s33
      %p47 = scmp.eq.s32.totalorder %s25, 1
      %p48 = por %p46, %p47
      %p50 = scmp.ne.s32.totalorder %s33, %s49
      %p51 = scmp.eq.s32.totalorder %s25, 0
      %p52 = por %p50, %p51
      %s54 = sadd.s32 %s53, 1
      %p57 = scmp.eq.s32.totalorder %s19, 1
      %p58 = scmp.ne.s32.totalorder %s53, %s55
      %p59 = scmp.eq.s32.totalorder %s19, 0
      %p60 = por %p58, %p59
      %p61 = scmp.ne.s32.totalorder %s53, %s55
      %p62 = scmp.eq.s32.totalorder %s24, 1
      %p63 = por %p61, %p62
      %p64 = scmp.ne.s32.totalorder %s55, %s56
      %p65 = scmp.eq.s32.totalorder %s24, 0
      %p66 = por %p64, %p65
      %p67 = scmp.ne.s32.totalorder %s55, %s56
      %p68 = scmp.eq.s32.totalorder %s25, 1
      %p69 = por %p67, %p68
      %p71 = scmp.ne.s32.totalorder %s56, %s70
      %p72 = scmp.eq.s32.totalorder %s25, 0
      %p73 = por %p71, %p72
      %s75 = sadd.s32 %s74, 1
      %p78 = scmp.eq.s32.totalorder %s19, 1
      %p79 = scmp.ne.s32.totalorder %s74, %s76
      %p80 = scmp.eq.s32.totalorder %s19, 0
      %p81 = por %p79, %p80
      %p82 = scmp.ne.s32.totalorder %s74, %s76
      %p83 = scmp.eq.s32.totalorder %s24, 1
      %p84 = por %p82, %p83
      %p85 = scmp.ne.s32.totalorder %s76, %s77
      %p86 = scmp.eq.s32.totalorder %s24, 0
      %p87 = por %p85, %p86
      %p88 = scmp.ne.s32.totalorder %s76, %s77
      %p89 = scmp.eq.s32.totalorder %s25, 1
      %p90 = por %p88, %p89
      %p92 = scmp.ne.s32.totalorder %s77, %s91
      %p93 = scmp.eq.s32.totalorder %s25, 0
      %p94 = por %p92, %p93
      %s96 = sadd.s32 %s95, 1
      %p99 = scmp.eq.s32.totalorder %s19, 1
      %p100 = scmp.ne.s32.totalorder %s95, %s97
      %p101 = scmp.eq.s32.totalorder %s19, 0
      %p102 = por %p100, %p101
      %p103 = scmp.ne.s32.totalorder %s95, %s97
      %p104 = scmp.eq.s32.totalorder %s24, 1
      %p105 = por %p103, %p104
      %p106 = scmp.ne.s32.totalorder %s97, %s98
      %p107 = scmp.eq.s32.totalorder %s24, 0
      %p108 = por %p106, %p107
      %p109 = scmp.ne.s32.totalorder %s97, %s98
      %p110 = scmp.eq.s32.totalorder %s25, 1
      %p111 = por %p109, %p110
      %p113 = scmp.ne.s32.totalorder %s98, %s112
      %p114 = scmp.eq.s32.totalorder %s25, 0
      %p115 = por %p113, %p114
      %s117 = sadd.s32 %s116, 1
      %p120 = scmp.eq.s32.totalorder %s19, 1
      %p121 = scmp.ne.s32.totalorder %s116, %s118
      %p122 = scmp.eq.s32.totalorder %s19, 0
      %p123 = por %p121, %p122
      %p124 = scmp.ne.s32.totalorder %s116, %s118
      %p125 = scmp.eq.s32.totalorder %s24, 1
      %p126 = por %p124, %p125
      %p127 = scmp.ne.s32.totalorder %s118, %s119
      %p128 = scmp.eq.s32.totalorder %s24, 0
      %p129 = por %p127, %p128
      %p130 = scmp.ne.s32.totalorder %s118, %s119
      %p131 = scmp.eq.s32.totalorder %s25, 1
      %p132 = por %p130, %p131
      %p134 = scmp.ne.s32.totalorder %s119, %s133
      %p135 = scmp.eq.s32.totalorder %s25, 0
      %p136 = por %p134, %p135
      %s138 = sadd.s32 %s137, 1
      %p141 = scmp.eq.s32.totalorder %s19, 1
      %p142 = scmp.ne.s32.totalorder %s137, %s139
      %p143 = scmp.eq.s32.totalorder %s19, 0
      %p144 = por %p142, %p143
      %p145 = scmp.ne.s32.totalorder %s137, %s139
      %p146 = scmp.eq.s32.totalorder %s24, 1
      %p147 = por %p145, %p146
      %p148 = scmp.ne.s32.totalorder %s139, %s140
      %p149 = scmp.eq.s32.totalorder %s24, 0
      %p150 = por %p148, %p149
      %p151 = scmp.ne.s32.totalorder %s139, %s140
      %p152 = scmp.eq.s32.totalorder %s25, 1
      %p153 = por %p151, %p152
      %p155 = scmp.ne.s32.totalorder %s140, %s154
      %p156 = scmp.eq.s32.totalorder %s25, 0
      %p157 = por %p155, %p156
      %s159 = sadd.s32 %s158, 1
      %p162 = scmp.eq.s32.totalorder %s19, 1
      %p163 = scmp.ne.s32.totalorder %s158, %s160
      %p164 = scmp.eq.s32.totalorder %s19, 0
      %p165 = por %p163, %p164
      %p166 = scmp.ne.s32.totalorder %s158, %s160
      %p167 = scmp.eq.s32.totalorder %s24, 1
      %p168 = por %p166, %p167
      %p169 = scmp.ne.s32.totalorder %s160, %s161
      %p170 = scmp.eq.s32.totalorder %s24, 0
      %p171 = por %p169, %p170
      %p172 = scmp.ne.s32.totalorder %s160, %s161
      %p173 = scmp.eq.s32.totalorder %s25, 1
      %p174 = por %p172, %p173
      %p176 = scmp.ne.s32.totalorder %s161, %s175
      %p177 = scmp.eq.s32.totalorder %s25, 0
      %p178 = por %p176, %p177
      %s180 = sadd.s32 %s179, 1
      %p183 = scmp.eq.s32.totalorder %s19, 1
      %p184 = scmp.ne.s32.totalorder %s179, %s181
      %p185 = scmp.eq.s32.totalorder %s19, 0
      %p186 = por %p184, %p185
      %p187 = scmp.ne.s32.totalorder %s179, %s181
      %p188 = scmp.eq.s32.totalorder %s24, 1
      %p189 = por %p187, %p188
      %p190 = scmp.ne.s32.totalorder %s181, %s182
      %p191 = scmp.eq.s32.totalorder %s24, 0
      %p192 = por %p190, %p191
      %p193 = scmp.ne.s32.totalorder %s181, %s182
      %p194 = scmp.eq.s32.totalorder %s25, 1
      %p195 = por %p193, %p194
      %p197 = scmp.ne.s32.totalorder %s182, %s196
      %p198 = scmp.eq.s32.totalorder %s25, 0
      %p199 = por %p197, %p198
      %s201 = sadd.s32 %s200, 1
      %p204 = scmp.eq.s32.totalorder %s19, 1
      %p205 = scmp.ne.s32.totalorder %s200, %s202
      %p206 = scmp.eq.s32.totalorder %s19, 0
      %p207 = por %p205, %p206
      %p208 = scmp.ne.s32.totalorder %s200, %s202
      %p209 = scmp.eq.s32.totalorder %s24, 1
      %p210 = por %p208, %p209
      %p211 = scmp.ne.s32.totalorder %s202, %s203
      %p212 = scmp.eq.s32.totalorder %s24, 0
      %p213 = por %p211, %p212
      %p214 = scmp.ne.s32.totalorder %s202, %s203
      %p215 = scmp.eq.s32.totalorder %s25, 1
      %p216 = por %p214, %p215
      %p218 = scmp.ne.s32.totalorder %s203, %s217
      %p219 = scmp.eq.s32.totalorder %s25, 0
      %p220 = por %p218, %p219
      %s222 = sadd.s32 %s221, 1
      %p225 = scmp.eq.s32.totalorder %s19, 1
      %p226 = scmp.ne.s32.totalorder %s221, %s223
      %p227 = scmp.eq.s32.totalorder %s19, 0
      %p228 = por %p226, %p227
      %p229 = scmp.ne.s32.totalorder %s221, %s223
      %p230 = scmp.eq.s32.totalorder %s24, 1
      %p231 = por %p229, %p230
      %p232 = scmp.ne.s32.totalorder %s223, %s224
      %p233 = scmp.eq.s32.totalorder %s24, 0
      %p234 = por %p232, %p233
      %p235 = scmp.ne.s32.totalorder %s223, %s224
      %p236 = scmp.eq.s32.totalorder %s25, 1
      %p237 = por %p235, %p236
      %p239 = scmp.ne.s32.totalorder %s224, %s238
      %p240 = scmp.eq.s32.totalorder %s25, 0
      %p241 = por %p239, %p240
      %s243 = sadd.s32 %s242, 1
      %p246 = scmp.eq.s32.totalorder %s19, 1
      %p247 = scmp.ne.s32.totalorder %s242, %s244
      %p248 = scmp.eq.s32.totalorder %s19, 0
      %p249 = por %p247, %p248
      %p250 = scmp.ne.s32.totalorder %s242, %s244
      %p251 = scmp.eq.s32.totalorder %s24, 1
      %p252 = por %p250, %p251
      %p253 = scmp.ne.s32.totalorder %s244, %s245
      %p254 = scmp.eq.s32.totalorder %s24, 0
      %p255 = por %p253, %p254
      %p256 = scmp.ne.s32.totalorder %s244, %s245
      %p257 = scmp.eq.s32.totalorder %s25, 1
      %p258 = por %p256, %p257
      %p260 = scmp.ne.s32.totalorder %s245, %s259
      %p261 = scmp.eq.s32.totalorder %s25, 0
      %p262 = por %p260, %p261
      %s263 = ssub.s32 %s19, %s26
      %p264 = scmp.eq.s32.totalorder %s263, 0
      %s266 = sadd.s32 %s265, 1
      %s267 = scalar_select %p264, %s265, %s266
      %p270 = pneg %p264
      %p271 = scmp.eq.s32.totalorder %s19, 1
      %p272 = por %p270, %p271
      %p273 = scmp.ne.s32.totalorder %s265, %s268
      %p274 = scmp.eq.s32.totalorder %s19, 0
      %p275 = por %p273, %p274
      %p276 = scmp.ne.s32.totalorder %s265, %s268
      %p277 = scmp.eq.s32.totalorder %s24, 1
      %p278 = por %p276, %p277
      %p279 = scmp.ne.s32.totalorder %s268, %s269
      %p280 = scmp.eq.s32.totalorder %s24, 0
      %p281 = por %p279, %p280
      %p282 = scmp.ne.s32.totalorder %s268, %s269
      %p283 = scmp.eq.s32.totalorder %s25, 1
      %p284 = por %p282, %p283
      %p286 = scmp.ne.s32.totalorder %s269, %s285
      %p287 = scmp.eq.s32.totalorder %s25, 0
      %p288 = por %p286, %p287
      %p289 = scmp.le.s32.totalorder 1, %s19
      %p290 = scmp.lt.s32.totalorder %s19, 3
      %p291 = pnand %p289, %p290
      %p292 = pneg %p291
      // Predicated region
      $region9: #{bayes_cnn_forward.1} parent=5 // pred_check
        _
      $region10: #{bayes_cnn_forward.1} parent=5 // pred_check_branch
        %294 = sbr.rel (%p291) target = $region12
      $region11: #{bayes_cnn_forward.1} parent=5 // pred_region
        %s295 = ssub.s32 %s19, 1
        // Predicated region
        $region13: #{bayes_cnn_forward.1} parent=11 // pred_check
          %p296 = pneg %p66
        $region14: #{bayes_cnn_forward.1} parent=11 // pred_check_branch
          %298 = sbr.rel (%p296) target = $region16
        $region15: #{bayes_cnn_forward.1} parent=11 // pred_region
          _
        $region16: #{bayes_cnn_forward.1} parent=11 // pred_fallthru
          _
        // Predicated region
        $region17: #{bayes_cnn_forward.1} parent=11 // pred_check
          %p299 = pneg %p87
        $region18: #{bayes_cnn_forward.1} parent=11 // pred_check_branch
          %301 = sbr.rel (%p299) target = $region20
        $region19: #{bayes_cnn_forward.1} parent=11 // pred_region
          _
        $region20: #{bayes_cnn_forward.1} parent=11 // pred_fallthru
          _
        // Predicated region
        $region21: #{bayes_cnn_forward.1} parent=11 // pred_check
          %p302 = pneg %p108
        $region22: #{bayes_cnn_forward.1} parent=11 // pred_check_branch
          %304 = sbr.rel (%p302) target = $region24
        $region23: #{bayes_cnn_forward.1} parent=11 // pred_region
          %s306 = ssub.s32 20480, 20480
          %307 = vsyncadd [#allocation4], %s306
          %s308 = sshll.u32 [#allocation3], 4
          %s309 = int_to_ptr.vmem [resolvable:$true] %s308
          %314 = dma.hbm_to_vmem [thread:$0]  %s3, 20480, %s309, [#allocation4], 128, 128, 8
        $region24: #{bayes_cnn_forward.1} parent=11 // pred_fallthru
          _
        // Predicated region
        $region25: #{bayes_cnn_forward.1} parent=11 // pred_check
          %p315 = pneg %p129
        $region26: #{bayes_cnn_forward.1} parent=11 // pred_check_branch
          %317 = sbr.rel (%p315) target = $region28
        $region27: #{bayes_cnn_forward.1} parent=11 // pred_region
          _
        $region28: #{bayes_cnn_forward.1} parent=11 // pred_fallthru
          _
        // Predicated region
        $region29: #{bayes_cnn_forward.1} parent=11 // pred_check
          %p318 = pneg %p150
        $region30: #{bayes_cnn_forward.1} parent=11 // pred_check_branch
          %320 = sbr.rel (%p318) target = $region32
        $region31: #{bayes_cnn_forward.1} parent=11 // pred_region
          %s322 = ssub.s32 24576, 24576
          %323 = vsyncadd [#allocation6], %s322
          %s324 = sshll.u32 [#allocation5], 4
          %s325 = int_to_ptr.vmem [resolvable:$true] %s324
          %330 = dma.hbm_to_vmem [thread:$0]  %s5, 24576, %s325, [#allocation6], 256, 256, 16
        $region32: #{bayes_cnn_forward.1} parent=11 // pred_fallthru
          _
        // Predicated region
        $region33: #{bayes_cnn_forward.1} parent=11 // pred_check
          %p331 = pneg %p171
        $region34: #{bayes_cnn_forward.1} parent=11 // pred_check_branch
          %333 = sbr.rel (%p331) target = $region36
        $region35: #{bayes_cnn_forward.1} parent=11 // pred_region
          _
        $region36: #{bayes_cnn_forward.1} parent=11 // pred_fallthru
          _
        // Predicated region
        $region37: #{bayes_cnn_forward.1} parent=11 // pred_check
          %p334 = pneg %p192
        $region38: #{bayes_cnn_forward.1} parent=11 // pred_check_branch
          %336 = sbr.rel (%p334) target = $region40
        $region39: #{bayes_cnn_forward.1} parent=11 // pred_region
          _
        $region40: #{bayes_cnn_forward.1} parent=11 // pred_fallthru
          _
        // Predicated region
        $region41: #{bayes_cnn_forward.1} parent=11 // pred_check
          %p337 = pneg %p213
        $region42: #{bayes_cnn_forward.1} parent=11 // pred_check_branch
          %339 = sbr.rel (%p337) target = $region44
        $region43: #{bayes_cnn_forward.1} parent=11 // pred_region
          _
        $region44: #{bayes_cnn_forward.1} parent=11 // pred_fallthru
          _
        // Predicated region
        $region45: #{bayes_cnn_forward.1} parent=11 // pred_check
          %p340 = pneg %p234
        $region46: #{bayes_cnn_forward.1} parent=11 // pred_check_branch
          %342 = sbr.rel (%p340) target = $region48
        $region47: #{bayes_cnn_forward.1} parent=11 // pred_region
          _
        $region48: #{bayes_cnn_forward.1} parent=11 // pred_fallthru
          _
        // Predicated region
        $region49: #{bayes_cnn_forward.1} parent=11 // pred_check
          %p343 = pneg %p255
        $region50: #{bayes_cnn_forward.1} parent=11 // pred_check_branch
          %345 = sbr.rel (%p343) target = $region52
        $region51: #{bayes_cnn_forward.1} parent=11 // pred_region
          _
        $region52: #{bayes_cnn_forward.1} parent=11 // pred_fallthru
          _
      $region12: #{bayes_cnn_forward.1} parent=5 // pred_fallthru
        _
      %p346 = scmp.lt.s32.totalorder %s19, 2
      // Predicated region
      $region53: #{bayes_cnn_forward.1} parent=5 // pred_check
        %p347 = pneg %p346
      $region54: #{bayes_cnn_forward.1} parent=5 // pred_check_branch
        %349 = sbr.rel (%p347) target = $region56
      $region55: #{bayes_cnn_forward.1} parent=5 // pred_region
        // Predicated region
        $region57: #{bayes_cnn_forward.1} parent=55 // pred_check
          %p350 = pneg %p39
        $region58: #{bayes_cnn_forward.1} parent=55 // pred_check_branch
          %352 = sbr.rel (%p350) target = $region60
        $region59: #{bayes_cnn_forward.1} parent=55 // pred_region
          %p353 = scmp.lt.s32.totalorder %s19, 1
          %s354 = scalar_select %p353, %s19, 1
          %s355 = smul.addr %s354, 2
          %s356 = smul.addr %s355, 8
          %s357 = scalar_lea.vmem %s0, %s356
        $region60: #{bayes_cnn_forward.1} parent=55 // pred_fallthru
          _
      $region56: #{bayes_cnn_forward.1} parent=5 // pred_fallthru
        _
      %p358 = scmp.le.s32.totalorder 1, %s19
      %p359 = scmp.lt.s32.totalorder %s19, 3
      %p360 = pnand %p358, %p359
      %p361 = pneg %p360
      // Predicated region
      $region61: #{bayes_cnn_forward.1} parent=5 // pred_check
        _
      $region62: #{bayes_cnn_forward.1} parent=5 // pred_check_branch
        %363 = sbr.rel (%p360) target = $region64
      $region63: #{bayes_cnn_forward.1} parent=5 // pred_region
        %s364 = ssub.s32 %s19, 1
        // Predicated region
        $region65: #{bayes_cnn_forward.1} parent=63 // pred_check
          %p365 = pneg %p108
        $region66: #{bayes_cnn_forward.1} parent=63 // pred_check_branch
          %367 = sbr.rel (%p365) target = $region68
        $region67: #{bayes_cnn_forward.1} parent=63 // pred_region
          %368 = dma.done [#allocation4], 20480
        $region68: #{bayes_cnn_forward.1} parent=63 // pred_fallthru
          _
        // Predicated region
        $region69: #{bayes_cnn_forward.1} parent=63 // pred_check
          %p369 = pneg %p150
        $region70: #{bayes_cnn_forward.1} parent=63 // pred_check_branch
          %371 = sbr.rel (%p369) target = $region72
        $region71: #{bayes_cnn_forward.1} parent=63 // pred_region
          %372 = dma.done [#allocation6], 24576
        $region72: #{bayes_cnn_forward.1} parent=63 // pred_fallthru
          _
        %p373 = scmp.lt.s32.totalorder %s24, 1
        %s374 = scalar_select %p373, %s24, 1
        %s375 = smul.addr %s374, 2
        %s376 = smul.addr %s375, 8
        %s377 = scalar_lea.vmem %s0, %s376
        %p378 = pneg %p45
        %p379 = pneg %p42
        %p380 = pneg %p66
        %p381 = pneg %p63
        %p382 = pneg %p87
        %p383 = pneg %p84
        %p384 = pneg %p108
        %p385 = pneg %p105
        %p386 = pneg %p129
        %p387 = pneg %p126
        %p388 = pneg %p150
        %p389 = pneg %p147
        %p390 = pneg %p171
        %p391 = pneg %p168
        %p392 = pneg %p192
        %p393 = pneg %p189
        %p394 = pneg %p213
        %p395 = pneg %p210
        %p396 = pneg %p234
        %p397 = pneg %p231
        %p398 = pneg %p255
        %p399 = pneg %p252
        %p400 = pneg %p281
        %p401 = pneg %p278
        %p402 = scmp.lt.s32.totalorder %s24, 1
        %s403 = scalar_select %p402, %s24, 1
        %s404 = smul.addr %s403, 2
        %s405 = scalar_lea.vmem %s11, %s404
        %p406 = scmp.lt.s32.totalorder %s24, 1
        %s407 = scalar_select %p406, %s24, 1
        %s408 = smul.addr %s407, 2
        %s409 = smul.addr %s408, 8
        %s410 = scalar_lea.vmem %s0, %s409
        %p411 = scmp.lt.s32.totalorder %s24, 1
        %s412 = scalar_select %p411, %s24, 1
        %s413 = smul.addr %s412, 2
        %s414 = scalar_lea.vmem %s11, %s413
        %v415 = vld [vmem:[%s410] sm:$0xff]
        %v416 = vld [vmem:[%s410 + $0x8] sm:$0xff]
        %vm417 = vcmask 998400
        %418 = vst.msk [vmem:[#allocation2] sm:$0xff] %vm417, %v415
        %419 = vst.msk [vmem:[#allocation2 + $0x8] sm:$0xff] %vm417, %v416
        %v420 = vld [vmem:[%s410] sm:$0xff]
        %v421 = vld [vmem:[%s410 + $0x8] sm:$0xff]
        %424 = vrot.lane.b32.xlu0 %v420, 127
        %v425 = vpop.permute.xlu0 %424
        %426 = vrot.lane.b32.xlu0 %v421, 127
        %v427 = vpop.permute.xlu0 %426
        %430 = vst.msk [vmem:[#allocation2 + $0x10] sm:$0xff] %vm417, %v425
        %431 = vst.msk [vmem:[#allocation2 + $0x18] sm:$0xff] %vm417, %v427
        %v432 = vld [vmem:[%s410] sm:$0xff]
        %v433 = vld [vmem:[%s410 + $0x8] sm:$0xff]
        %436 = vrot.lane.b32.xlu0 %v432, 126
        %v437 = vpop.permute.xlu0 %436
        %438 = vrot.lane.b32.xlu0 %v433, 126
        %v439 = vpop.permute.xlu0 %438
        %442 = vst.msk [vmem:[#allocation2 + $0x20] sm:$0xff] %vm417, %v437
        %443 = vst.msk [vmem:[#allocation2 + $0x28] sm:$0xff] %vm417, %v439
        %v444 = vld [vmem:[%s410] sm:$0xff]
        %v445 = vld [vmem:[%s410 + $0x8] sm:$0xff]
        %448 = vrot.lane.b32.xlu0 %v444, 125
        %v449 = vpop.permute.xlu0 %448
        %450 = vrot.lane.b32.xlu0 %v445, 125
        %v451 = vpop.permute.xlu0 %450
        %454 = vst.msk [vmem:[#allocation2 + $0x30] sm:$0xff] %vm417, %v449
        %455 = vst.msk [vmem:[#allocation2 + $0x38] sm:$0xff] %vm417, %v451
        %v456 = vld [vmem:[%s410] sm:$0xff]
        %v457 = vld [vmem:[%s410 + $0x8] sm:$0xff]
        %460 = vrot.lane.b32.xlu0 %v456, 124
        %v461 = vpop.permute.xlu0 %460
        %462 = vrot.lane.b32.xlu0 %v457, 124
        %v463 = vpop.permute.xlu0 %462
        %466 = vst.msk [vmem:[#allocation2 + $0x40] sm:$0xff] %vm417, %v461
        %467 = vst.msk [vmem:[#allocation2 + $0x48] sm:$0xff] %vm417, %v463
        %v468 = vld [vmem:[%s410] sm:$0xff]
        %v469 = vld [vmem:[%s410 + $0x8] sm:$0xff]
        %472 = vrot.lane.b32.xlu0 %v468, 123
        %v473 = vpop.permute.xlu0 %472
        %474 = vrot.lane.b32.xlu0 %v469, 123
        %v475 = vpop.permute.xlu0 %474
        %478 = vst.msk [vmem:[#allocation2 + $0x50] sm:$0xff] %vm417, %v473
        %479 = vst.msk [vmem:[#allocation2 + $0x58] sm:$0xff] %vm417, %v475
        %v480 = vld [vmem:[%s410] sm:$0xff]
        %v481 = vld [vmem:[%s410 + $0x8] sm:$0xff]
        %484 = vrot.lane.b32.xlu0 %v480, 122
        %v485 = vpop.permute.xlu0 %484
        %486 = vrot.lane.b32.xlu0 %v481, 122
        %v487 = vpop.permute.xlu0 %486
        %490 = vst.msk [vmem:[#allocation2 + $0x60] sm:$0xff] %vm417, %v485
        %491 = vst.msk [vmem:[#allocation2 + $0x68] sm:$0xff] %vm417, %v487
        %v492 = vld [vmem:[%s1] sm:$0xff]
        %v493 = vld [vmem:[%s1 + $0x8] sm:$0xff]
        %v494 = vld [vmem:[%s1 + $0x10] sm:$0xff]
        %v495 = vld [vmem:[%s1 + $0x18] sm:$0xff]
        %v496 = vld [vmem:[%s1 + $0x20] sm:$0xff]
        %v497 = vld [vmem:[%s1 + $0x28] sm:$0xff]
        %v498 = vld [vmem:[%s1 + $0x30] sm:$0xff]
        %v499 = vld [vmem:[%s1 + $0x38] sm:$0xff]
        %v500 = vld [vmem:[%s1 + $0x40] sm:$0xff]
        %v501 = vld [vmem:[%s1 + $0x48] sm:$0xff]
        %v502 = vld [vmem:[%s1 + $0x50] sm:$0xff]
        %v503 = vld [vmem:[%s1 + $0x58] sm:$0xff]
        %v504 = vld [vmem:[%s1 + $0x60] sm:$0xff]
        %v505 = vld [vmem:[%s1 + $0x68] sm:$0xff]
        %v506 = vld [vmem:[%s1 + $0x70] sm:$0xff]
        %v507 = vld [vmem:[%s1 + $0x78] sm:$0xff]
        %v508 = vld [vmem:[#allocation2] sm:$0xff]
        %v509 = vld [vmem:[#allocation2 + $0x8] sm:$0xff]
        %v510 = vld [vmem:[#allocation2 + $0x10] sm:$0xff]
        %v511 = vld [vmem:[#allocation2 + $0x18] sm:$0xff]
        %v512 = vld [vmem:[#allocation2 + $0x20] sm:$0xff]
        %v513 = vld [vmem:[#allocation2 + $0x28] sm:$0xff]
        %v514 = vld [vmem:[#allocation2 + $0x30] sm:$0xff]
        %v515 = vld [vmem:[#allocation2 + $0x38] sm:$0xff]
        %v516 = vld [vmem:[#allocation2 + $0x40] sm:$0xff]
        %v517 = vld [vmem:[#allocation2 + $0x48] sm:$0xff]
        %v518 = vld [vmem:[#allocation2 + $0x50] sm:$0xff]
        %v519 = vld [vmem:[#allocation2 + $0x58] sm:$0xff]
        %v520 = vld [vmem:[#allocation2 + $0x60] sm:$0xff]
        %v521 = vld [vmem:[#allocation2 + $0x68] sm:$0xff]
        %v522 = vld [vmem:[%s2] sm:$0xff]
        %v523 = vld [vmem:[%s2 + $0x8] sm:$0xff]
        %v524 = vld [vmem:[%s2 + $0x10] sm:$0xff]
        %v525 = vld [vmem:[%s2 + $0x18] sm:$0xff]
        %v526 = vld [vmem:[%s2 + $0x20] sm:$0xff]
        %v527 = vld [vmem:[%s2 + $0x28] sm:$0xff]
        %v528 = vld [vmem:[%s2 + $0x30] sm:$0xff]
        %v529 = vld [vmem:[%s2 + $0x38] sm:$0xff]
        %v530 = vld [vmem:[%s2 + $0x40] sm:$0xff]
        %v531 = vld [vmem:[%s2 + $0x48] sm:$0xff]
        %v532 = vld [vmem:[%s2 + $0x50] sm:$0xff]
        %v533 = vld [vmem:[%s2 + $0x58] sm:$0xff]
        %v534 = vld [vmem:[%s2 + $0x60] sm:$0xff]
        %v535 = vld [vmem:[%s2 + $0x68] sm:$0xff]
        %v536 = vld [vmem:[%s2 + $0x70] sm:$0xff]
        %v537 = vld [vmem:[%s2 + $0x78] sm:$0xff]
        %539 = vset.pattern.permute.xlu0 0
        %540 = vperm.xlu0 %539, %v522
        %v541 = vpop.permute.xlu0 %540
        %544 = vset.pattern.permute.xlu0 0
        %545 = vperm.xlu0 %544, %v523
        %v546 = vpop.permute.xlu0 %545
        %549 = vset.pattern.permute.xlu0 0
        %550 = vperm.xlu0 %549, %v524
        %v551 = vpop.permute.xlu0 %550
        %554 = vset.pattern.permute.xlu0 0
        %555 = vperm.xlu0 %554, %v525
        %v556 = vpop.permute.xlu0 %555
        %559 = vset.pattern.permute.xlu0 0
        %560 = vperm.xlu0 %559, %v526
        %v561 = vpop.permute.xlu0 %560
        %564 = vset.pattern.permute.xlu0 0
        %565 = vperm.xlu0 %564, %v527
        %v566 = vpop.permute.xlu0 %565
        %569 = vset.pattern.permute.xlu0 0
        %570 = vperm.xlu0 %569, %v528
        %v571 = vpop.permute.xlu0 %570
        %574 = vset.pattern.permute.xlu0 0
        %575 = vperm.xlu0 %574, %v529
        %v576 = vpop.permute.xlu0 %575
        %579 = vset.pattern.permute.xlu0 0
        %580 = vperm.xlu0 %579, %v530
        %v581 = vpop.permute.xlu0 %580
        %584 = vset.pattern.permute.xlu0 0
        %585 = vperm.xlu0 %584, %v531
        %v586 = vpop.permute.xlu0 %585
        %589 = vset.pattern.permute.xlu0 0
        %590 = vperm.xlu0 %589, %v532
        %v591 = vpop.permute.xlu0 %590
        %594 = vset.pattern.permute.xlu0 0
        %595 = vperm.xlu0 %594, %v533
        %v596 = vpop.permute.xlu0 %595
        %599 = vset.pattern.permute.xlu0 0
        %600 = vperm.xlu0 %599, %v534
        %v601 = vpop.permute.xlu0 %600
        %604 = vset.pattern.permute.xlu0 0
        %605 = vperm.xlu0 %604, %v535
        %v606 = vpop.permute.xlu0 %605
        %609 = vset.pattern.permute.xlu0 0
        %610 = vperm.xlu0 %609, %v536
        %v611 = vpop.permute.xlu0 %610
        %614 = vset.pattern.permute.xlu0 0
        %615 = vperm.xlu0 %614, %v537
        %v616 = vpop.permute.xlu0 %615
        %vm618 = vcmask 916480
        %v620 = vsel %vm618, %v492, 0
        %v623 = vsel %vm618, %v493, 0
        %v626 = vsel %vm618, %v494, 0
        %v629 = vsel %vm618, %v495, 0
        %v632 = vsel %vm618, %v496, 0
        %v635 = vsel %vm618, %v497, 0
        %v638 = vsel %vm618, %v498, 0
        %v641 = vsel %vm618, %v499, 0
        %v644 = vsel %vm618, %v500, 0
        %v647 = vsel %vm618, %v501, 0
        %v650 = vsel %vm618, %v502, 0
        %v653 = vsel %vm618, %v503, 0
        %v656 = vsel %vm618, %v504, 0
        %v659 = vsel %vm618, %v505, 0
        %v662 = vsel %vm618, %v506, 0
        %v665 = vsel %vm618, %v507, 0
        %667 = vmatprep.subr.mxu0 0.0
        %668 = vmatpush1.msra.mxu0 %v508
        %669 = vmatprep.subr.mxu0 0.0
        %670 = vmatpush1.msra.mxu0 %v509
        %671 = vmatprep.subr.mxu0 0.0
        %672 = vmatpush1.msra.mxu0 %v510
        %673 = vmatprep.subr.mxu0 0.0
        %674 = vmatpush1.msra.mxu0 %v511
        %675 = vmatprep.subr.mxu0 0.0
        %676 = vmatpush1.msra.mxu0 %v512
        %677 = vmatprep.subr.mxu0 0.0
        %678 = vmatpush1.msra.mxu0 %v513
        %679 = vmatprep.subr.mxu0 0.0
        %680 = vmatpush1.msra.mxu0 %v514
        %681 = vmatprep.subr.mxu0 0.0
        %682 = vmatpush1.msra.mxu0 %v515
        %683 = vmatprep.subr.mxu0 0.0
        %684 = vmatpush1.msra.mxu0 %v516
        %685 = vmatprep.subr.mxu0 0.0
        %686 = vmatpush1.msra.mxu0 %v517
        %687 = vmatprep.subr.mxu0 0.0
        %688 = vmatpush1.msra.mxu0 %v518
        %689 = vmatprep.subr.mxu0 0.0
        %690 = vmatpush1.msra.mxu0 %v519
        %691 = vmatprep.subr.mxu0 0.0
        %692 = vmatpush1.msra.mxu0 %v520
        %693 = vmatprep.subr.mxu0 0.0
        %694 = vmatpush1.msra.mxu0 %v521
        %695 = vmatprep.subr.mxu0 0.0
        %696 = vmatpush1.msra.mxu0 0.0
        %697 = vmatprep.subr.mxu0 0.0
        %698 = vmatpush1.msra.mxu0 0.0
        %699 = vmatprep.subr.mxu0 0.0
        %700 = vmatpush1.msra.mxu0 0.0
        %701 = vmatprep.subr.mxu0 0.0
        %702 = vmatpush1.msra.mxu0 0.0
        %703 = vmatprep.subr.mxu0 0.0
        %704 = vmatpush1.msra.mxu0 0.0
        %705 = vmatprep.subr.mxu0 0.0
        %706 = vmatpush1.msra.mxu0 0.0
        %707 = vmatprep.subr.mxu0 0.0
        %708 = vmatpush1.msra.mxu0 0.0
        %709 = vmatprep.subr.mxu0 0.0
        %710 = vmatpush1.msra.mxu0 0.0
        %711 = vmatprep.subr.mxu0 0.0
        %712 = vmatpush1.msra.mxu0 0.0
        %713 = vmatprep.subr.mxu0 0.0
        %714 = vmatpush1.msra.mxu0 0.0
        %715 = vmatprep.subr.mxu0 0.0
        %716 = vmatpush1.msra.mxu0 0.0
        %717 = vmatprep.subr.mxu0 0.0
        %718 = vmatpush1.msra.mxu0 0.0
        %719 = vmatprep.subr.mxu0 0.0
        %720 = vmatpush1.msra.mxu0 0.0
        %721 = vmatprep.subr.mxu0 0.0
        %722 = vmatpush1.msra.mxu0 0.0
        %723 = vmatprep.subr.mxu0 0.0
        %724 = vmatpush1.msra.mxu0 0.0
        %725 = vmatprep.subr.mxu0 0.0
        %726 = vmatpush1.msra.mxu0 0.0
        %727 = vmatprep.subr.mxu0 0.0
        %728 = vmatpush1.msra.mxu0 0.0
        %729 = vmatprep.subr.mxu0 0.0
        %730 = vmatpush1.msra.mxu0 0.0
        %731 = vmatprep.mubr.f32.mxu0 0.0
        %732 = vmatmul.mubr.f32.gmra.mrb[0].mxu0 %v620
        %v733 = vpop.f32.mrb[0].mxu0
        %v734 = vadd.f32 %v541, %v733
        %v735 = vpop.f32.mrb[0].mxu0
        %736 = vmatprep.mubr.f32.mxu0 0.0
        %737 = vmatmul.mubr.f32.gmra.mrb[0].mxu0 %v623
        %v738 = vpop.f32.mrb[0].mxu0
        %v739 = vadd.f32 %v546, %v738
        %v740 = vpop.f32.mrb[0].mxu0
        %741 = vmatprep.mubr.f32.mxu0 0.0
        %742 = vmatmul.mubr.f32.gmra.mrb[0].mxu0 %v626
        %v743 = vpop.f32.mrb[0].mxu0
        %v744 = vadd.f32 %v551, %v743
        %v745 = vpop.f32.mrb[0].mxu0
        %746 = vmatprep.mubr.f32.mxu0 0.0
        %747 = vmatmul.mubr.f32.gmra.mrb[0].mxu0 %v629
        %v748 = vpop.f32.mrb[0].mxu0
        %v749 = vadd.f32 %v556, %v748
        %v750 = vpop.f32.mrb[0].mxu0
        %751 = vmatprep.mubr.f32.mxu0 0.0
        %752 = vmatmul.mubr.f32.gmra.mrb[0].mxu0 %v632
        %v753 = vpop.f32.mrb[0].mxu0
        %v754 = vadd.f32 %v561, %v753
        %v755 = vpop.f32.mrb[0].mxu0
        %756 = vmatprep.mubr.f32.mxu0 0.0
        %757 = vmatmul.mubr.f32.gmra.mrb[0].mxu0 %v635
        %v758 = vpop.f32.mrb[0].mxu0
        %v759 = vadd.f32 %v566, %v758
        %v760 = vpop.f32.mrb[0].mxu0
        %761 = vmatprep.mubr.f32.mxu0 0.0
        %762 = vmatmul.mubr.f32.gmra.mrb[0].mxu0 %v638
        %v763 = vpop.f32.mrb[0].mxu0
        %v764 = vadd.f32 %v571, %v763
        %v765 = vpop.f32.mrb[0].mxu0
        %766 = vmatprep.mubr.f32.mxu0 0.0
        %767 = vmatmul.mubr.f32.gmra.mrb[0].mxu0 %v641
        %v768 = vpop.f32.mrb[0].mxu0
        %v769 = vadd.f32 %v576, %v768
        %v770 = vpop.f32.mrb[0].mxu0
        %771 = vmatprep.mubr.f32.mxu0 0.0
        %772 = vmatmul.mubr.f32.gmra.mrb[0].mxu0 %v644
        %v773 = vpop.f32.mrb[0].mxu0
        %v774 = vadd.f32 %v581, %v773
        %v775 = vpop.f32.mrb[0].mxu0
        %776 = vmatprep.mubr.f32.mxu0 0.0
        %777 = vmatmul.mubr.f32.gmra.mrb[0].mxu0 %v647
        %v778 = vpop.f32.mrb[0].mxu0
        %v779 = vadd.f32 %v586, %v778
        %v780 = vpop.f32.mrb[0].mxu0
        %781 = vmatprep.mubr.f32.mxu0 0.0
        %782 = vmatmul.mubr.f32.gmra.mrb[0].mxu0 %v650
        %v783 = vpop.f32.mrb[0].mxu0
        %v784 = vadd.f32 %v591, %v783
        %v785 = vpop.f32.mrb[0].mxu0
        %786 = vmatprep.mubr.f32.mxu0 0.0
        %787 = vmatmul.mubr.f32.gmra.mrb[0].mxu0 %v653
        %v788 = vpop.f32.mrb[0].mxu0
        %v789 = vadd.f32 %v596, %v788
        %v790 = vpop.f32.mrb[0].mxu0
        %791 = vmatprep.mubr.f32.mxu0 0.0
        %792 = vmatmul.mubr.f32.gmra.mrb[0].mxu0 %v656
        %v793 = vpop.f32.mrb[0].mxu0
        %v794 = vadd.f32 %v601, %v793
        %v795 = vpop.f32.mrb[0].mxu0
        %796 = vmatprep.mubr.f32.mxu0 0.0
        %797 = vmatmul.mubr.f32.gmra.mrb[0].mxu0 %v659
        %v798 = vpop.f32.mrb[0].mxu0
        %v799 = vadd.f32 %v606, %v798
        %v800 = vpop.f32.mrb[0].mxu0
        %801 = vmatprep.mubr.f32.mxu0 0.0
        %802 = vmatmul.mubr.f32.gmra.mrb[0].mxu0 %v662
        %v803 = vpop.f32.mrb[0].mxu0
        %v804 = vadd.f32 %v611, %v803
        %v805 = vpop.f32.mrb[0].mxu0
        %806 = vmatprep.mubr.f32.mxu0 0.0
        %807 = vmatmul.mubr.f32.gmra.mrb[0].mxu0 %v665
        %v808 = vpop.f32.mrb[0].mxu0
        %v809 = vadd.f32 %v616, %v808
        %v810 = vpop.f32.mrb[0].mxu0
        %811 = vdwg.mxu0
        %v812 = vmax.f32 %v734, 0.0
        %v813 = vmax.f32 %v739, 0.0
        %v814 = vmax.f32 %v744, 0.0
        %v815 = vmax.f32 %v749, 0.0
        %v816 = vmax.f32 %v754, 0.0
        %v817 = vmax.f32 %v759, 0.0
        %v818 = vmax.f32 %v764, 0.0
        %v819 = vmax.f32 %v769, 0.0
        %v820 = vmax.f32 %v774, 0.0
        %v821 = vmax.f32 %v779, 0.0
        %v822 = vmax.f32 %v784, 0.0
        %v823 = vmax.f32 %v789, 0.0
        %v824 = vmax.f32 %v794, 0.0
        %v825 = vmax.f32 %v799, 0.0
        %v826 = vmax.f32 %v804, 0.0
        %v827 = vmax.f32 %v809, 0.0
        %844 = vrot.lane.b32.xlu0 %v812, 127
        %v845 = vpop.permute.xlu0 %844
        %846 = vrot.lane.b32.xlu0 %v813, 127
        %v847 = vpop.permute.xlu0 %846
        %848 = vrot.lane.b32.xlu0 %v814, 127
        %v849 = vpop.permute.xlu0 %848
        %850 = vrot.lane.b32.xlu0 %v815, 127
        %v851 = vpop.permute.xlu0 %850
        %852 = vrot.lane.b32.xlu0 %v816, 127
        %v853 = vpop.permute.xlu0 %852
        %854 = vrot.lane.b32.xlu0 %v817, 127
        %v855 = vpop.permute.xlu0 %854
        %856 = vrot.lane.b32.xlu0 %v818, 127
        %v857 = vpop.permute.xlu0 %856
        %858 = vrot.lane.b32.xlu0 %v819, 127
        %v859 = vpop.permute.xlu0 %858
        %860 = vrot.lane.b32.xlu0 %v820, 127
        %v861 = vpop.permute.xlu0 %860
        %862 = vrot.lane.b32.xlu0 %v821, 127
        %v863 = vpop.permute.xlu0 %862
        %864 = vrot.lane.b32.xlu0 %v822, 127
        %v865 = vpop.permute.xlu0 %864
        %866 = vrot.lane.b32.xlu0 %v823, 127
        %v867 = vpop.permute.xlu0 %866
        %868 = vrot.lane.b32.xlu0 %v824, 127
        %v869 = vpop.permute.xlu0 %868
        %870 = vrot.lane.b32.xlu0 %v825, 127
        %v871 = vpop.permute.xlu0 %870
        %872 = vrot.lane.b32.xlu0 %v826, 127
        %v873 = vpop.permute.xlu0 %872
        %874 = vrot.lane.b32.xlu0 %v827, 127
        %v875 = vpop.permute.xlu0 %874
        %v892 = vmax.f32 %v812, %v845
        %v893 = vmax.f32 %v813, %v847
        %v894 = vmax.f32 %v814, %v849
        %v895 = vmax.f32 %v815, %v851
        %v896 = vmax.f32 %v816, %v853
        %v897 = vmax.f32 %v817, %v855
        %v898 = vmax.f32 %v818, %v857
        %v899 = vmax.f32 %v819, %v859
        %v900 = vmax.f32 %v820, %v861
        %v901 = vmax.f32 %v821, %v863
        %v902 = vmax.f32 %v822, %v865
        %v903 = vmax.f32 %v823, %v867
        %v904 = vmax.f32 %v824, %v869
        %v905 = vmax.f32 %v825, %v871
        %v906 = vmax.f32 %v826, %v873
        %v907 = vmax.f32 %v827, %v875
        %908 = vrot.lane.b32.xlu0 %v812, 126
        %v909 = vpop.permute.xlu0 %908
        %910 = vrot.lane.b32.xlu0 %v813, 126
        %v911 = vpop.permute.xlu0 %910
        %912 = vrot.lane.b32.xlu0 %v814, 126
        %v913 = vpop.permute.xlu0 %912
        %914 = vrot.lane.b32.xlu0 %v815, 126
        %v915 = vpop.permute.xlu0 %914
        %916 = vrot.lane.b32.xlu0 %v816, 126
        %v917 = vpop.permute.xlu0 %916
        %918 = vrot.lane.b32.xlu0 %v817, 126
        %v919 = vpop.permute.xlu0 %918
        %920 = vrot.lane.b32.xlu0 %v818, 126
        %v921 = vpop.permute.xlu0 %920
        %922 = vrot.lane.b32.xlu0 %v819, 126
        %v923 = vpop.permute.xlu0 %922
        %924 = vrot.lane.b32.xlu0 %v820, 126
        %v925 = vpop.permute.xlu0 %924
        %926 = vrot.lane.b32.xlu0 %v821, 126
        %v927 = vpop.permute.xlu0 %926
        %928 = vrot.lane.b32.xlu0 %v822, 126
        %v929 = vpop.permute.xlu0 %928
        %930 = vrot.lane.b32.xlu0 %v823, 126
        %v931 = vpop.permute.xlu0 %930
        %932 = vrot.lane.b32.xlu0 %v824, 126
        %v933 = vpop.permute.xlu0 %932
        %934 = vrot.lane.b32.xlu0 %v825, 126
        %v935 = vpop.permute.xlu0 %934
        %936 = vrot.lane.b32.xlu0 %v826, 126
        %v937 = vpop.permute.xlu0 %936
        %938 = vrot.lane.b32.xlu0 %v827, 126
        %v939 = vpop.permute.xlu0 %938
        %v956 = vmax.f32 %v892, %v909
        %v957 = vmax.f32 %v893, %v911
        %v958 = vmax.f32 %v894, %v913
        %v959 = vmax.f32 %v895, %v915
        %v960 = vmax.f32 %v896, %v917
        %v961 = vmax.f32 %v897, %v919
        %v962 = vmax.f32 %v898, %v921
        %v963 = vmax.f32 %v899, %v923
        %v964 = vmax.f32 %v900, %v925
        %v965 = vmax.f32 %v901, %v927
        %v966 = vmax.f32 %v902, %v929
        %v967 = vmax.f32 %v903, %v931
        %v968 = vmax.f32 %v904, %v933
        %v969 = vmax.f32 %v905, %v935
        %v970 = vmax.f32 %v906, %v937
        %v971 = vmax.f32 %v907, %v939
        %v972 = vlaneseq
        %v973 = vshrl.u32 %v972, 7
        %v974 = vadd.s32 %v973, 8
        %v975 = vadd.s32 %v973, 16
        %v976 = vadd.s32 %v973, 24
        %v977 = vadd.s32 %v973, 32
        %v978 = vadd.s32 %v973, 40
        %v979 = vadd.s32 %v973, 48
        %v980 = vadd.s32 %v973, 56
        %v981 = vadd.s32 %v973, 64
        %v982 = vadd.s32 %v973, 72
        %v983 = vadd.s32 %v973, 80
        %v984 = vadd.s32 %v973, 88
        %v985 = vadd.s32 %v973, 96
        %v986 = vadd.s32 %v973, 104
        %v987 = vadd.s32 %v973, 112
        %v988 = vlaneseq
        %v989 = vand.u32 %v988, 127
        %v990 = vmul.u32 %v989, 3
        %vm991 = vcmp.eq.s32.totalorder %v973, %v990
        %vm992 = vcmp.eq.s32.totalorder %v974, %v990
        %vm993 = vcmp.eq.s32.totalorder %v975, %v990
        %vm994 = vcmp.eq.s32.totalorder %v976, %v990
        %vm995 = vcmp.eq.s32.totalorder %v977, %v990
        %vm996 = vcmp.eq.s32.totalorder %v978, %v990
        %vm997 = vcmp.eq.s32.totalorder %v979, %v990
        %vm998 = vcmp.eq.s32.totalorder %v980, %v990
        %vm999 = vcmp.eq.s32.totalorder %v981, %v990
        %vm1000 = vcmp.eq.s32.totalorder %v982, %v990
        %vm1001 = vcmp.eq.s32.totalorder %v983, %v990
        %vm1002 = vcmp.eq.s32.totalorder %v984, %v990
        %vm1003 = vcmp.eq.s32.totalorder %v985, %v990
        %vm1004 = vcmp.eq.s32.totalorder %v986, %v990
        %vm1005 = vcmp.eq.s32.totalorder %v987, %v990
        %v1006 = vsel %vm991, 1, 0
        %v1007 = vsel %vm992, 1, 0
        %v1008 = vsel %vm993, 1, 0
        %v1009 = vsel %vm994, 1, 0
        %v1010 = vsel %vm995, 1, 0
        %v1011 = vsel %vm996, 1, 0
        %v1012 = vsel %vm997, 1, 0
        %v1013 = vsel %vm998, 1, 0
        %v1014 = vsel %vm999, 1, 0
        %v1015 = vsel %vm1000, 1, 0
        %v1016 = vsel %vm1001, 1, 0
        %v1017 = vsel %vm1002, 1, 0
        %v1018 = vsel %vm1003, 1, 0
        %v1019 = vsel %vm1004, 1, 0
        %v1020 = vsel %vm1005, 1, 0
        %v1021 = vcvt.s32.f32 %v1006
        %v1022 = vcvt.s32.f32 %v1007
        %v1023 = vcvt.s32.f32 %v1008
        %v1024 = vcvt.s32.f32 %v1009
        %v1025 = vcvt.s32.f32 %v1010
        %v1026 = vcvt.s32.f32 %v1011
        %v1027 = vcvt.s32.f32 %v1012
        %v1028 = vcvt.s32.f32 %v1013
        %v1029 = vcvt.s32.f32 %v1014
        %v1030 = vcvt.s32.f32 %v1015
        %v1031 = vcvt.s32.f32 %v1016
        %v1032 = vcvt.s32.f32 %v1017
        %v1033 = vcvt.s32.f32 %v1018
        %v1034 = vcvt.s32.f32 %v1019
        %v1035 = vcvt.s32.f32 %v1020
        %vm1036 = vcmask 982016
        %v1038 = vsel %vm1036, %v956, 0
        %v1041 = vsel %vm1036, %v957, 0
        %v1044 = vsel %vm1036, %v958, 0
        %v1047 = vsel %vm1036, %v959, 0
        %v1050 = vsel %vm1036, %v960, 0
        %v1053 = vsel %vm1036, %v961, 0
        %v1056 = vsel %vm1036, %v962, 0
        %v1059 = vsel %vm1036, %v963, 0
        %v1062 = vsel %vm1036, %v964, 0
        %v1065 = vsel %vm1036, %v965, 0
        %v1068 = vsel %vm1036, %v966, 0
        %v1071 = vsel %vm1036, %v967, 0
        %v1074 = vsel %vm1036, %v968, 0
        %v1077 = vsel %vm1036, %v969, 0
        %v1080 = vsel %vm1036, %v970, 0
        %v1083 = vsel %vm1036, %v971, 0
        %1085 = vmatprep.subr.mxu0 0.0
        %1086 = vmatpush1.msra.mxu0 %v1021
        %1087 = vmatprep.subr.mxu0 0.0
        %1088 = vmatpush1.msra.mxu0 %v1022
        %1089 = vmatprep.subr.mxu0 0.0
        %1090 = vmatpush1.msra.mxu0 %v1023
        %1091 = vmatprep.subr.mxu0 0.0
        %1092 = vmatpush1.msra.mxu0 %v1024
        %1093 = vmatprep.subr.mxu0 0.0
        %1094 = vmatpush1.msra.mxu0 %v1025
        %1095 = vmatprep.subr.mxu0 0.0
        %1096 = vmatpush1.msra.mxu0 %v1026
        %1097 = vmatprep.subr.mxu0 0.0
        %1098 = vmatpush1.msra.mxu0 %v1027
        %1099 = vmatprep.subr.mxu0 0.0
        %1100 = vmatpush1.msra.mxu0 %v1028
        %1101 = vmatprep.subr.mxu0 0.0
        %1102 = vmatpush1.msra.mxu0 %v1029
        %1103 = vmatprep.subr.mxu0 0.0
        %1104 = vmatpush1.msra.mxu0 %v1030
        %1105 = vmatprep.subr.mxu0 0.0
        %1106 = vmatpush1.msra.mxu0 %v1031
        %1107 = vmatprep.subr.mxu0 0.0
        %1108 = vmatpush1.msra.mxu0 %v1032
        %1109 = vmatprep.subr.mxu0 0.0
        %1110 = vmatpush1.msra.mxu0 %v1033
        %1111 = vmatprep.subr.mxu0 0.0
        %1112 = vmatpush1.msra.mxu0 %v1034
        %1113 = vmatprep.subr.mxu0 0.0
        %1114 = vmatpush1.msra.mxu0 %v1035
        %1115 = vmatprep.subr.mxu0 0.0
        %1116 = vmatpush1.msra.mxu0 0.0
        %1117 = vmatprep.subr.mxu0 0.0
        %1118 = vmatpush1.msra.mxu0 0.0
        %1119 = vmatprep.subr.mxu0 0.0
        %1120 = vmatpush1.msra.mxu0 0.0
        %1121 = vmatprep.subr.mxu0 0.0
        %1122 = vmatpush1.msra.mxu0 0.0
        %1123 = vmatprep.subr.mxu0 0.0
        %1124 = vmatpush1.msra.mxu0 0.0
        %1125 = vmatprep.subr.mxu0 0.0
        %1126 = vmatpush1.msra.mxu0 0.0
        %1127 = vmatprep.subr.mxu0 0.0
        %1128 = vmatpush1.msra.mxu0 0.0
        %1129 = vmatprep.subr.mxu0 0.0
        %1130 = vmatpush1.msra.mxu0 0.0
        %1131 = vmatprep.subr.mxu0 0.0
        %1132 = vmatpush1.msra.mxu0 0.0
        %1133 = vmatprep.subr.mxu0 0.0
        %1134 = vmatpush1.msra.mxu0 0.0
        %1135 = vmatprep.subr.mxu0 0.0
        %1136 = vmatpush1.msra.mxu0 0.0
        %1137 = vmatprep.subr.mxu0 0.0
        %1138 = vmatpush1.msra.mxu0 0.0
        %1139 = vmatprep.subr.mxu0 0.0
        %1140 = vmatpush1.msra.mxu0 0.0
        %1141 = vmatprep.subr.mxu0 0.0
        %1142 = vmatpush1.msra.mxu0 0.0
        %1143 = vmatprep.subr.mxu0 0.0
        %1144 = vmatpush1.msra.mxu0 0.0
        %1145 = vmatprep.subr.mxu0 0.0
        %1146 = vmatpush1.msra.mxu0 0.0
        %1147 = vmatprep.subr.mxu0 0.0
        %1148 = vmatpush1.msra.mxu0 0.0
        %1149 = vmatprep.mubr.f32.mxu0 0.0
        %1150 = vmatmul.mubr.f32.gmra.mrb[0].mxu0 %v1038
        %v1151 = vpop.f32.mrb[0].mxu0
        %v1152 = vadd.f32 0.0, %v1151
        %v1153 = vpop.f32.mrb[0].mxu0
        %1154 = vmatprep.mubr.f32.mxu0 0.0
        %1155 = vmatmul.mubr.f32.gmra.mrb[0].mxu0 %v1041
        %v1156 = vpop.f32.mrb[0].mxu0
        %v1157 = vadd.f32 0.0, %v1156
        %v1158 = vpop.f32.mrb[0].mxu0
        %1159 = vmatprep.mubr.f32.mxu0 0.0
        %1160 = vmatmul.mubr.f32.gmra.mrb[0].mxu0 %v1044
        %v1161 = vpop.f32.mrb[0].mxu0
        %v1162 = vadd.f32 0.0, %v1161
        %v1163 = vpop.f32.mrb[0].mxu0
        %1164 = vmatprep.mubr.f32.mxu0 0.0
        %1165 = vmatmul.mubr.f32.gmra.mrb[0].mxu0 %v1047
        %v1166 = vpop.f32.mrb[0].mxu0
        %v1167 = vadd.f32 0.0, %v1166
        %v1168 = vpop.f32.mrb[0].mxu0
        %1169 = vmatprep.mubr.f32.mxu0 0.0
        %1170 = vmatmul.mubr.f32.gmra.mrb[0].mxu0 %v1050
        %v1171 = vpop.f32.mrb[0].mxu0
        %v1172 = vadd.f32 0.0, %v1171
        %v1173 = vpop.f32.mrb[0].mxu0
        %1174 = vmatprep.mubr.f32.mxu0 0.0
        %1175 = vmatmul.mubr.f32.gmra.mrb[0].mxu0 %v1053
        %v1176 = vpop.f32.mrb[0].mxu0
        %v1177 = vadd.f32 0.0, %v1176
        %v1178 = vpop.f32.mrb[0].mxu0
        %1179 = vmatprep.mubr.f32.mxu0 0.0
        %1180 = vmatmul.mubr.f32.gmra.mrb[0].mxu0 %v1056
        %v1181 = vpop.f32.mrb[0].mxu0
        %v1182 = vadd.f32 0.0, %v1181
        %v1183 = vpop.f32.mrb[0].mxu0
        %1184 = vmatprep.mubr.f32.mxu0 0.0
        %1185 = vmatmul.mubr.f32.gmra.mrb[0].mxu0 %v1059
        %v1186 = vpop.f32.mrb[0].mxu0
        %v1187 = vadd.f32 0.0, %v1186
        %v1188 = vpop.f32.mrb[0].mxu0
        %1189 = vmatprep.mubr.f32.mxu0 0.0
        %1190 = vmatmul.mubr.f32.gmra.mrb[0].mxu0 %v1062
        %v1191 = vpop.f32.mrb[0].mxu0
        %v1192 = vadd.f32 0.0, %v1191
        %v1193 = vpop.f32.mrb[0].mxu0
        %1194 = vmatprep.mubr.f32.mxu0 0.0
        %1195 = vmatmul.mubr.f32.gmra.mrb[0].mxu0 %v1065
        %v1196 = vpop.f32.mrb[0].mxu0
        %v1197 = vadd.f32 0.0, %v1196
        %v1198 = vpop.f32.mrb[0].mxu0
        %1199 = vmatprep.mubr.f32.mxu0 0.0
        %1200 = vmatmul.mubr.f32.gmra.mrb[0].mxu0 %v1068
        %v1201 = vpop.f32.mrb[0].mxu0
        %v1202 = vadd.f32 0.0, %v1201
        %v1203 = vpop.f32.mrb[0].mxu0
        %1204 = vmatprep.mubr.f32.mxu0 0.0
        %1205 = vmatmul.mubr.f32.gmra.mrb[0].mxu0 %v1071
        %v1206 = vpop.f32.mrb[0].mxu0
        %v1207 = vadd.f32 0.0, %v1206
        %v1208 = vpop.f32.mrb[0].mxu0
        %1209 = vmatprep.mubr.f32.mxu0 0.0
        %1210 = vmatmul.mubr.f32.gmra.mrb[0].mxu0 %v1074
        %v1211 = vpop.f32.mrb[0].mxu0
        %v1212 = vadd.f32 0.0, %v1211
        %v1213 = vpop.f32.mrb[0].mxu0
        %1214 = vmatprep.mubr.f32.mxu0 0.0
        %1215 = vmatmul.mubr.f32.gmra.mrb[0].mxu0 %v1077
        %v1216 = vpop.f32.mrb[0].mxu0
        %v1217 = vadd.f32 0.0, %v1216
        %v1218 = vpop.f32.mrb[0].mxu0
        %1219 = vmatprep.mubr.f32.mxu0 0.0
        %1220 = vmatmul.mubr.f32.gmra.mrb[0].mxu0 %v1080
        %v1221 = vpop.f32.mrb[0].mxu0
        %v1222 = vadd.f32 0.0, %v1221
        %v1223 = vpop.f32.mrb[0].mxu0
        %1224 = vmatprep.mubr.f32.mxu0 0.0
        %1225 = vmatmul.mubr.f32.gmra.mrb[0].mxu0 %v1083
        %v1226 = vpop.f32.mrb[0].mxu0
        %v1227 = vadd.f32 0.0, %v1226
        %v1228 = vpop.f32.mrb[0].mxu0
        %1229 = vdwg.mxu0
        %v1230 = vld [vmem:[#allocation3] sm:$0xff]
        %v1231 = vld [vmem:[#allocation3 + $0x8] sm:$0xff]
        %v1232 = vld [vmem:[#allocation3 + $0x10] sm:$0xff]
        %v1233 = vld [vmem:[#allocation3 + $0x18] sm:$0xff]
        %v1234 = vld [vmem:[#allocation3 + $0x20] sm:$0xff]
        %v1235 = vld [vmem:[#allocation3 + $0x28] sm:$0xff]
        %v1236 = vld [vmem:[#allocation3 + $0x30] sm:$0xff]
        %v1237 = vld [vmem:[#allocation3 + $0x38] sm:$0xff]
        %v1238 = vld [vmem:[#allocation3 + $0x40] sm:$0xff]
        %v1239 = vld [vmem:[#allocation3 + $0x48] sm:$0xff]
        %v1240 = vld [vmem:[#allocation3 + $0x50] sm:$0xff]
        %v1241 = vld [vmem:[#allocation3 + $0x58] sm:$0xff]
        %v1242 = vld [vmem:[#allocation3 + $0x60] sm:$0xff]
        %v1243 = vld [vmem:[#allocation3 + $0x68] sm:$0xff]
        %v1244 = vld [vmem:[#allocation3 + $0x70] sm:$0xff]
        %v1245 = vld [vmem:[#allocation3 + $0x78] sm:$0xff]
        %v1246 = vld [vmem:[#allocation3 + $0x80] sm:$0xff]
        %v1247 = vld [vmem:[#allocation3 + $0x88] sm:$0xff]
        %v1248 = vld [vmem:[#allocation3 + $0x90] sm:$0xff]
        %v1249 = vld [vmem:[#allocation3 + $0x98] sm:$0xff]
        %v1250 = vld [vmem:[#allocation3 + $0xa0] sm:$0xff]
        %v1251 = vld [vmem:[#allocation3 + $0xa8] sm:$0xff]
        %v1252 = vld [vmem:[#allocation3 + $0xb0] sm:$0xff]
        %v1253 = vld [vmem:[#allocation3 + $0xb8] sm:$0xff]
        %v1254 = vld [vmem:[#allocation3 + $0xc0] sm:$0xff]
        %v1255 = vld [vmem:[#allocation3 + $0xc8] sm:$0xff]
        %v1256 = vld [vmem:[#allocation3 + $0xd0] sm:$0xff]
        %v1257 = vld [vmem:[#allocation3 + $0xd8] sm:$0xff]
        %v1258 = vld [vmem:[#allocation3 + $0xe0] sm:$0xff]
        %v1259 = vld [vmem:[#allocation3 + $0xe8] sm:$0xff]
        %v1260 = vld [vmem:[#allocation3 + $0xf0] sm:$0xff]
        %v1261 = vld [vmem:[#allocation3 + $0xf8] sm:$0xff]
        %s1262 = scalar_lea.vmem [#allocation3], 256
        %v1263 = vld [vmem:[%s1262] sm:$0xff]
        %v1264 = vld [vmem:[%s1262 + $0x8] sm:$0xff]
        %v1265 = vld [vmem:[%s1262 + $0x10] sm:$0xff]
        %v1266 = vld [vmem:[%s1262 + $0x18] sm:$0xff]
        %v1267 = vld [vmem:[%s1262 + $0x20] sm:$0xff]
        %v1268 = vld [vmem:[%s1262 + $0x28] sm:$0xff]
        %v1269 = vld [vmem:[%s1262 + $0x30] sm:$0xff]
        %v1270 = vld [vmem:[%s1262 + $0x38] sm:$0xff]
        %v1271 = vld [vmem:[%s1262 + $0x40] sm:$0xff]
        %v1272 = vld [vmem:[%s1262 + $0x48] sm:$0xff]
        %v1273 = vld [vmem:[%s1262 + $0x50] sm:$0xff]
        %v1274 = vld [vmem:[%s1262 + $0x58] sm:$0xff]
        %v1275 = vld [vmem:[%s1262 + $0x60] sm:$0xff]
        %v1276 = vld [vmem:[%s1262 + $0x68] sm:$0xff]
        %v1277 = vld [vmem:[%s1262 + $0x70] sm:$0xff]
        %v1278 = vld [vmem:[%s1262 + $0x78] sm:$0xff]
        %v1279 = vld [vmem:[%s1262 + $0x80] sm:$0xff]
        %v1280 = vld [vmem:[%s1262 + $0x88] sm:$0xff]
        %v1281 = vld [vmem:[%s1262 + $0x90] sm:$0xff]
        %v1282 = vld [vmem:[%s1262 + $0x98] sm:$0xff]
        %v1283 = vld [vmem:[%s1262 + $0xa0] sm:$0xff]
        %v1284 = vld [vmem:[%s1262 + $0xa8] sm:$0xff]
        %v1285 = vld [vmem:[%s1262 + $0xb0] sm:$0xff]
        %v1286 = vld [vmem:[%s1262 + $0xb8] sm:$0xff]
        %v1287 = vld [vmem:[%s1262 + $0xc0] sm:$0xff]
        %v1288 = vld [vmem:[%s1262 + $0xc8] sm:$0xff]
        %v1289 = vld [vmem:[%s1262 + $0xd0] sm:$0xff]
        %v1290 = vld [vmem:[%s1262 + $0xd8] sm:$0xff]
        %v1291 = vld [vmem:[%s1262 + $0xe0] sm:$0xff]
        %v1292 = vld [vmem:[%s1262 + $0xe8] sm:$0xff]
        %v1293 = vld [vmem:[%s1262 + $0xf0] sm:$0xff]
        %v1294 = vld [vmem:[%s1262 + $0xf8] sm:$0xff]
        %1311 = vrot.lane.b32.xlu0 %v1152, 127
        %v1312 = vpop.permute.xlu0 %1311
        %1313 = vrot.lane.b32.xlu0 %v1157, 127
        %v1314 = vpop.permute.xlu0 %1313
        %1315 = vrot.lane.b32.xlu0 %v1162, 127
        %v1316 = vpop.permute.xlu0 %1315
        %1317 = vrot.lane.b32.xlu0 %v1167, 127
        %v1318 = vpop.permute.xlu0 %1317
        %1319 = vrot.lane.b32.xlu0 %v1172, 127
        %v1320 = vpop.permute.xlu0 %1319
        %1321 = vrot.lane.b32.xlu0 %v1177, 127
        %v1322 = vpop.permute.xlu0 %1321
        %1323 = vrot.lane.b32.xlu0 %v1182, 127
        %v1324 = vpop.permute.xlu0 %1323
        %1325 = vrot.lane.b32.xlu0 %v1187, 127
        %v1326 = vpop.permute.xlu0 %1325
        %1327 = vrot.lane.b32.xlu0 %v1192, 127
        %v1328 = vpop.permute.xlu0 %1327
        %1329 = vrot.lane.b32.xlu0 %v1197, 127
        %v1330 = vpop.permute.xlu0 %1329
        %1331 = vrot.lane.b32.xlu0 %v1202, 127
        %v1332 = vpop.permute.xlu0 %1331
        %1333 = vrot.lane.b32.xlu0 %v1207, 127
        %v1334 = vpop.permute.xlu0 %1333
        %1335 = vrot.lane.b32.xlu0 %v1212, 127
        %v1336 = vpop.permute.xlu0 %1335
        %1337 = vrot.lane.b32.xlu0 %v1217, 127
        %v1338 = vpop.permute.xlu0 %1337
        %1339 = vrot.lane.b32.xlu0 %v1222, 127
        %v1340 = vpop.permute.xlu0 %1339
        %1341 = vrot.lane.b32.xlu0 %v1227, 127
        %v1342 = vpop.permute.xlu0 %1341
        %1359 = vmatprep.subr.mxu0 0.0
        %1360 = vmatpush1.msra.mxu0 %v1312
        %1361 = vmatprep.subr.mxu0 0.0
        %1362 = vmatpush1.msra.mxu0 %v1314
        %1363 = vmatprep.subr.mxu0 0.0
        %1364 = vmatpush1.msra.mxu0 %v1316
        %1365 = vmatprep.subr.mxu0 0.0
        %1366 = vmatpush1.msra.mxu0 %v1318
        %1367 = vmatprep.subr.mxu0 0.0
        %1368 = vmatpush1.msra.mxu0 %v1320
        %1369 = vmatprep.subr.mxu0 0.0
        %1370 = vmatpush1.msra.mxu0 %v1322
        %1371 = vmatprep.subr.mxu0 0.0
        %1372 = vmatpush1.msra.mxu0 %v1324
        %1373 = vmatprep.subr.mxu0 0.0
        %1374 = vmatpush1.msra.mxu0 %v1326
        %1375 = vmatprep.subr.mxu0 0.0
        %1376 = vmatpush1.msra.mxu0 %v1328
        %1377 = vmatprep.subr.mxu0 0.0
        %1378 = vmatpush1.msra.mxu0 %v1330
        %1379 = vmatprep.subr.mxu0 0.0
        %1380 = vmatpush1.msra.mxu0 %v1332
        %1381 = vmatprep.subr.mxu0 0.0
        %1382 = vmatpush1.msra.mxu0 %v1334
        %1383 = vmatprep.subr.mxu0 0.0
        %1384 = vmatpush1.msra.mxu0 %v1336
        %1385 = vmatprep.subr.mxu0 0.0
        %1386 = vmatpush1.msra.mxu0 %v1338
        %1387 = vmatprep.subr.mxu0 0.0
        %1388 = vmatpush1.msra.mxu0 %v1340
        %1389 = vmatprep.subr.mxu0 0.0
        %1390 = vmatpush1.msra.mxu0 %v1342
        %1391 = vmatprep.subr.mxu0 0.0
        %1392 = vmatpush1.msra.mxu0 0.0
        %1393 = vmatprep.subr.mxu0 0.0
        %1394 = vmatpush1.msra.mxu0 0.0
        %1395 = vmatprep.subr.mxu0 0.0
        %1396 = vmatpush1.msra.mxu0 0.0
        %1397 = vmatprep.subr.mxu0 0.0
        %1398 = vmatpush1.msra.mxu0 0.0
        %1399 = vmatprep.subr.mxu0 0.0
        %1400 = vmatpush1.msra.mxu0 0.0
        %1401 = vmatprep.subr.mxu0 0.0
        %1402 = vmatpush1.msra.mxu0 0.0
        %1403 = vmatprep.subr.mxu0 0.0
        %1404 = vmatpush1.msra.mxu0 0.0
        %1405 = vmatprep.subr.mxu0 0.0
        %1406 = vmatpush1.msra.mxu0 0.0
        %1407 = vmatprep.subr.mxu0 0.0
        %1408 = vmatpush1.msra.mxu0 0.0
        %1409 = vmatprep.subr.mxu0 0.0
        %1410 = vmatpush1.msra.mxu0 0.0
        %1411 = vmatprep.subr.mxu0 0.0
        %1412 = vmatpush1.msra.mxu0 0.0
        %1413 = vmatprep.subr.mxu0 0.0
        %1414 = vmatpush1.msra.mxu0 0.0
        %1415 = vmatprep.subr.mxu0 0.0
        %1416 = vmatpush1.msra.mxu0 0.0
        %1417 = vmatprep.subr.mxu0 0.0
        %1418 = vmatpush1.msra.mxu0 0.0
        %1419 = vmatprep.subr.mxu0 0.0
        %1420 = vmatpush1.msra.mxu0 0.0
        %1421 = vmatprep.subr.mxu0 0.0
        %1422 = vmatpush1.msra.mxu0 0.0
        %1423 = vmatprep.mubr.f32.mxu0 0.0
        %1424 = vmatmul.mubr.f32.gmra.mrb[0].mxu0 %v1263
        %v1425 = vpop.f32.mrb[0].mxu0
        %v1426 = vadd.f32 0.0, %v1425
        %v1427 = vpop.f32.mrb[0].mxu0
        %1428 = vmatprep.mubr.f32.mxu0 0.0
        %1429 = vmatmul.mubr.f32.gmra.mrb[0].mxu0 %v1264
        %v1430 = vpop.f32.mrb[0].mxu0
        %v1431 = vadd.f32 0.0, %v1430
        %v1432 = vpop.f32.mrb[0].mxu0
        %1433 = vmatprep.mubr.f32.mxu0 0.0
        %1434 = vmatmul.mubr.f32.gmra.mrb[0].mxu0 %v1265
        %v1435 = vpop.f32.mrb[0].mxu0
        %v1436 = vadd.f32 0.0, %v1435
        %v1437 = vpop.f32.mrb[0].mxu0
        %1438 = vmatprep.mubr.f32.mxu0 0.0
        %1439 = vmatmul.mubr.f32.gmra.mrb[0].mxu0 %v1266
        %v1440 = vpop.f32.mrb[0].mxu0
        %v1441 = vadd.f32 0.0, %v1440
        %v1442 = vpop.f32.mrb[0].mxu0
        %1443 = vmatprep.mubr.f32.mxu0 0.0
        %1444 = vmatmul.mubr.f32.gmra.mrb[0].mxu0 %v1267
        %v1445 = vpop.f32.mrb[0].mxu0
        %v1446 = vadd.f32 0.0, %v1445
        %v1447 = vpop.f32.mrb[0].mxu0
        %1448 = vmatprep.mubr.f32.mxu0 0.0
        %1449 = vmatmul.mubr.f32.gmra.mrb[0].mxu0 %v1268
        %v1450 = vpop.f32.mrb[0].mxu0
        %v1451 = vadd.f32 0.0, %v1450
        %v1452 = vpop.f32.mrb[0].mxu0
        %1453 = vmatprep.mubr.f32.mxu0 0.0
        %1454 = vmatmul.mubr.f32.gmra.mrb[0].mxu0 %v1269
        %v1455 = vpop.f32.mrb[0].mxu0
        %v1456 = vadd.f32 0.0, %v1455
        %v1457 = vpop.f32.mrb[0].mxu0
        %1458 = vmatprep.mubr.f32.mxu0 0.0
        %1459 = vmatmul.mubr.f32.gmra.mrb[0].mxu0 %v1270
        %v1460 = vpop.f32.mrb[0].mxu0
        %v1461 = vadd.f32 0.0, %v1460
        %v1462 = vpop.f32.mrb[0].mxu0
        %1463 = vmatprep.mubr.f32.mxu0 0.0
        %1464 = vmatmul.mubr.f32.gmra.mrb[0].mxu0 %v1271
        %v1465 = vpop.f32.mrb[0].mxu0
        %v1466 = vadd.f32 0.0, %v1465
        %v1467 = vpop.f32.mrb[0].mxu0
        %1468 = vmatprep.mubr.f32.mxu0 0.0
        %1469 = vmatmul.mubr.f32.gmra.mrb[0].mxu0 %v1272
        %v1470 = vpop.f32.mrb[0].mxu0
        %v1471 = vadd.f32 0.0, %v1470
        %v1472 = vpop.f32.mrb[0].mxu0
        %1473 = vmatprep.mubr.f32.mxu0 0.0
        %1474 = vmatmul.mubr.f32.gmra.mrb[0].mxu0 %v1273
        %v1475 = vpop.f32.mrb[0].mxu0
        %v1476 = vadd.f32 0.0, %v1475
        %v1477 = vpop.f32.mrb[0].mxu0
        %1478 = vmatprep.mubr.f32.mxu0 0.0
        %1479 = vmatmul.mubr.f32.gmra.mrb[0].mxu0 %v1274
        %v1480 = vpop.f32.mrb[0].mxu0
        %v1481 = vadd.f32 0.0, %v1480
        %v1482 = vpop.f32.mrb[0].mxu0
        %1483 = vmatprep.mubr.f32.mxu0 0.0
        %1484 = vmatmul.mubr.f32.gmra.mrb[0].mxu0 %v1275
        %v1485 = vpop.f32.mrb[0].mxu0
        %v1486 = vadd.f32 0.0, %v1485
        %v1487 = vpop.f32.mrb[0].mxu0
        %1488 = vmatprep.mubr.f32.mxu0 0.0
        %1489 = vmatmul.mubr.f32.gmra.mrb[0].mxu0 %v1276
        %v1490 = vpop.f32.mrb[0].mxu0
        %v1491 = vadd.f32 0.0, %v1490
        %v1492 = vpop.f32.mrb[0].mxu0
        %1493 = vmatprep.mubr.f32.mxu0 0.0
        %1494 = vmatmul.mubr.f32.gmra.mrb[0].mxu0 %v1277
        %v1495 = vpop.f32.mrb[0].mxu0
        %v1496 = vadd.f32 0.0, %v1495
        %v1497 = vpop.f32.mrb[0].mxu0
        %1498 = vmatprep.mubr.f32.mxu0 0.0
        %1499 = vmatmul.mubr.f32.gmra.mrb[0].mxu0 %v1278
        %v1500 = vpop.f32.mrb[0].mxu0
        %v1501 = vadd.f32 0.0, %v1500
        %v1502 = vpop.f32.mrb[0].mxu0
        %1503 = vmatprep.mubr.f32.mxu0 0.0
        %1504 = vmatmul.mubr.f32.gmra.mrb[0].mxu0 %v1279
        %v1505 = vpop.f32.mrb[0].mxu0
        %v1506 = vadd.f32 0.0, %v1505
        %v1507 = vpop.f32.mrb[0].mxu0
        %1508 = vmatprep.mubr.f32.mxu0 0.0
        %1509 = vmatmul.mubr.f32.gmra.mrb[0].mxu0 %v1280
        %v1510 = vpop.f32.mrb[0].mxu0
        %v1511 = vadd.f32 0.0, %v1510
        %v1512 = vpop.f32.mrb[0].mxu0
        %1513 = vmatprep.mubr.f32.mxu0 0.0
        %1514 = vmatmul.mubr.f32.gmra.mrb[0].mxu0 %v1281
        %v1515 = vpop.f32.mrb[0].mxu0
        %v1516 = vadd.f32 0.0, %v1515
        %v1517 = vpop.f32.mrb[0].mxu0
        %1518 = vmatprep.mubr.f32.mxu0 0.0
        %1519 = vmatmul.mubr.f32.gmra.mrb[0].mxu0 %v1282
        %v1520 = vpop.f32.mrb[0].mxu0
        %v1521 = vadd.f32 0.0, %v1520
        %v1522 = vpop.f32.mrb[0].mxu0
        %1523 = vmatprep.mubr.f32.mxu0 0.0
        %1524 = vmatmul.mubr.f32.gmra.mrb[0].mxu0 %v1283
        %v1525 = vpop.f32.mrb[0].mxu0
        %v1526 = vadd.f32 0.0, %v1525
        %v1527 = vpop.f32.mrb[0].mxu0
        %1528 = vmatprep.mubr.f32.mxu0 0.0
        %1529 = vmatmul.mubr.f32.gmra.mrb[0].mxu0 %v1284
        %v1530 = vpop.f32.mrb[0].mxu0
        %v1531 = vadd.f32 0.0, %v1530
        %v1532 = vpop.f32.mrb[0].mxu0
        %1533 = vmatprep.mubr.f32.mxu0 0.0
        %1534 = vmatmul.mubr.f32.gmra.mrb[0].mxu0 %v1285
        %v1535 = vpop.f32.mrb[0].mxu0
        %v1536 = vadd.f32 0.0, %v1535
        %v1537 = vpop.f32.mrb[0].mxu0
        %1538 = vmatprep.mubr.f32.mxu0 0.0
        %1539 = vmatmul.mubr.f32.gmra.mrb[0].mxu0 %v1286
        %v1540 = vpop.f32.mrb[0].mxu0
        %v1541 = vadd.f32 0.0, %v1540
        %v1542 = vpop.f32.mrb[0].mxu0
        %1543 = vmatprep.mubr.f32.mxu0 0.0
        %1544 = vmatmul.mubr.f32.gmra.mrb[0].mxu0 %v1287
        %v1545 = vpop.f32.mrb[0].mxu0
        %v1546 = vadd.f32 0.0, %v1545
        %v1547 = vpop.f32.mrb[0].mxu0
        %1548 = vmatprep.mubr.f32.mxu0 0.0
        %1549 = vmatmul.mubr.f32.gmra.mrb[0].mxu0 %v1288
        %v1550 = vpop.f32.mrb[0].mxu0
        %v1551 = vadd.f32 0.0, %v1550
        %v1552 = vpop.f32.mrb[0].mxu0
        %1553 = vmatprep.mubr.f32.mxu0 0.0
        %1554 = vmatmul.mubr.f32.gmra.mrb[0].mxu0 %v1289
        %v1555 = vpop.f32.mrb[0].mxu0
        %v1556 = vadd.f32 0.0, %v1555
        %v1557 = vpop.f32.mrb[0].mxu0
        %1558 = vmatprep.mubr.f32.mxu0 0.0
        %1559 = vmatmul.mubr.f32.gmra.mrb[0].mxu0 %v1290
        %v1560 = vpop.f32.mrb[0].mxu0
        %v1561 = vadd.f32 0.0, %v1560
        %v1562 = vpop.f32.mrb[0].mxu0
        %1563 = vmatprep.mubr.f32.mxu0 0.0
        %1564 = vmatmul.mubr.f32.gmra.mrb[0].mxu0 %v1291
        %v1565 = vpop.f32.mrb[0].mxu0
        %v1566 = vadd.f32 0.0, %v1565
        %v1567 = vpop.f32.mrb[0].mxu0
        %1568 = vmatprep.mubr.f32.mxu0 0.0
        %1569 = vmatmul.mubr.f32.gmra.mrb[0].mxu0 %v1292
        %v1570 = vpop.f32.mrb[0].mxu0
        %v1571 = vadd.f32 0.0, %v1570
        %v1572 = vpop.f32.mrb[0].mxu0
        %1573 = vmatprep.mubr.f32.mxu0 0.0
        %1574 = vmatmul.mubr.f32.gmra.mrb[0].mxu0 %v1293
        %v1575 = vpop.f32.mrb[0].mxu0
        %v1576 = vadd.f32 0.0, %v1575
        %v1577 = vpop.f32.mrb[0].mxu0
        %1578 = vmatprep.mubr.f32.mxu0 0.0
        %1579 = vmatmul.mubr.f32.gmra.mrb[0].mxu0 %v1294
        %v1580 = vpop.f32.mrb[0].mxu0
        %v1581 = vadd.f32 0.0, %v1580
        %v1582 = vpop.f32.mrb[0].mxu0
        %1583 = vdwg.mxu0
        %1584 = vmatprep.subr.mxu0 0.0
        %1585 = vmatpush1.msra.mxu0 %v1152
        %1586 = vmatprep.subr.mxu0 0.0
        %1587 = vmatpush1.msra.mxu0 %v1157
        %1588 = vmatprep.subr.mxu0 0.0
        %1589 = vmatpush1.msra.mxu0 %v1162
        %1590 = vmatprep.subr.mxu0 0.0
        %1591 = vmatpush1.msra.mxu0 %v1167
        %1592 = vmatprep.subr.mxu0 0.0
        %1593 = vmatpush1.msra.mxu0 %v1172
        %1594 = vmatprep.subr.mxu0 0.0
        %1595 = vmatpush1.msra.mxu0 %v1177
        %1596 = vmatprep.subr.mxu0 0.0
        %1597 = vmatpush1.msra.mxu0 %v1182
        %1598 = vmatprep.subr.mxu0 0.0
        %1599 = vmatpush1.msra.mxu0 %v1187
        %1600 = vmatprep.subr.mxu0 0.0
        %1601 = vmatpush1.msra.mxu0 %v1192
        %1602 = vmatprep.subr.mxu0 0.0
        %1603 = vmatpush1.msra.mxu0 %v1197
        %1604 = vmatprep.subr.mxu0 0.0
        %1605 = vmatpush1.msra.mxu0 %v1202
        %1606 = vmatprep.subr.mxu0 0.0
        %1607 = vmatpush1.msra.mxu0 %v1207
        %1608 = vmatprep.subr.mxu0 0.0
        %1609 = vmatpush1.msra.mxu0 %v1212
        %1610 = vmatprep.subr.mxu0 0.0
        %1611 = vmatpush1.msra.mxu0 %v1217
        %1612 = vmatprep.subr.mxu0 0.0
        %1613 = vmatpush1.msra.mxu0 %v1222
        %1614 = vmatprep.subr.mxu0 0.0
        %1615 = vmatpush1.msra.mxu0 %v1227
        %1616 = vmatprep.subr.mxu0 0.0
        %1617 = vmatpush1.msra.mxu0 0.0
        %1618 = vmatprep.subr.mxu0 0.0
        %1619 = vmatpush1.msra.mxu0 0.0
        %1620 = vmatprep.subr.mxu0 0.0
        %1621 = vmatpush1.msra.mxu0 0.0
        %1622 = vmatprep.subr.mxu0 0.0
        %1623 = vmatpush1.msra.mxu0 0.0
        %1624 = vmatprep.subr.mxu0 0.0
        %1625 = vmatpush1.msra.mxu0 0.0
        %1626 = vmatprep.subr.mxu0 0.0
        %1627 = vmatpush1.msra.mxu0 0.0
        %1628 = vmatprep.subr.mxu0 0.0
        %1629 = vmatpush1.msra.mxu0 0.0
        %1630 = vmatprep.subr.mxu0 0.0
        %1631 = vmatpush1.msra.mxu0 0.0
        %1632 = vmatprep.subr.mxu0 0.0
        %1633 = vmatpush1.msra.mxu0 0.0
        %1634 = vmatprep.subr.mxu0 0.0
        %1635 = vmatpush1.msra.mxu0 0.0
        %1636 = vmatprep.subr.mxu0 0.0
        %1637 = vmatpush1.msra.mxu0 0.0
        %1638 = vmatprep.subr.mxu0 0.0
        %1639 = vmatpush1.msra.mxu0 0.0
        %1640 = vmatprep.subr.mxu0 0.0
        %1641 = vmatpush1.msra.mxu0 0.0
        %1642 = vmatprep.subr.mxu0 0.0
        %1643 = vmatpush1.msra.mxu0 0.0
        %1644 = vmatprep.subr.mxu0 0.0
        %1645 = vmatpush1.msra.mxu0 0.0
        %1646 = vmatprep.subr.mxu0 0.0
        %1647 = vmatpush1.msra.mxu0 0.0
        %1648 = vmatprep.mubr.f32.mxu0 0.0
        %1649 = vmatmul.mubr.f32.gmra.mrb[0].mxu0 %v1230
        %v1650 = vpop.f32.mrb[0].mxu0
        %v1651 = vadd.f32 %v1426, %v1650
        %v1652 = vpop.f32.mrb[0].mxu0
        %1653 = vmatprep.mubr.f32.mxu0 0.0
        %1654 = vmatmul.mubr.f32.gmra.mrb[0].mxu0 %v1231
        %v1655 = vpop.f32.mrb[0].mxu0
        %v1656 = vadd.f32 %v1431, %v1655
        %v1657 = vpop.f32.mrb[0].mxu0
        %1658 = vmatprep.mubr.f32.mxu0 0.0
        %1659 = vmatmul.mubr.f32.gmra.mrb[0].mxu0 %v1232
        %v1660 = vpop.f32.mrb[0].mxu0
        %v1661 = vadd.f32 %v1436, %v1660
        %v1662 = vpop.f32.mrb[0].mxu0
        %1663 = vmatprep.mubr.f32.mxu0 0.0
        %1664 = vmatmul.mubr.f32.gmra.mrb[0].mxu0 %v1233
        %v1665 = vpop.f32.mrb[0].mxu0
        %v1666 = vadd.f32 %v1441, %v1665
        %v1667 = vpop.f32.mrb[0].mxu0
        %1668 = vmatprep.mubr.f32.mxu0 0.0
        %1669 = vmatmul.mubr.f32.gmra.mrb[0].mxu0 %v1234
        %v1670 = vpop.f32.mrb[0].mxu0
        %v1671 = vadd.f32 %v1446, %v1670
        %v1672 = vpop.f32.mrb[0].mxu0
        %1673 = vmatprep.mubr.f32.mxu0 0.0
        %1674 = vmatmul.mubr.f32.gmra.mrb[0].mxu0 %v1235
        %v1675 = vpop.f32.mrb[0].mxu0
        %v1676 = vadd.f32 %v1451, %v1675
        %v1677 = vpop.f32.mrb[0].mxu0
        %1678 = vmatprep.mubr.f32.mxu0 0.0
        %1679 = vmatmul.mubr.f32.gmra.mrb[0].mxu0 %v1236
        %v1680 = vpop.f32.mrb[0].mxu0
        %v1681 = vadd.f32 %v1456, %v1680
        %v1682 = vpop.f32.mrb[0].mxu0
        %1683 = vmatprep.mubr.f32.mxu0 0.0
        %1684 = vmatmul.mubr.f32.gmra.mrb[0].mxu0 %v1237
        %v1685 = vpop.f32.mrb[0].mxu0
        %v1686 = vadd.f32 %v1461, %v1685
        %v1687 = vpop.f32.mrb[0].mxu0
        %1688 = vmatprep.mubr.f32.mxu0 0.0
        %1689 = vmatmul.mubr.f32.gmra.mrb[0].mxu0 %v1238
        %v1690 = vpop.f32.mrb[0].mxu0
        %v1691 = vadd.f32 %v1466, %v1690
        %v1692 = vpop.f32.mrb[0].mxu0
        %1693 = vmatprep.mubr.f32.mxu0 0.0
        %1694 = vmatmul.mubr.f32.gmra.mrb[0].mxu0 %v1239
        %v1695 = vpop.f32.mrb[0].mxu0
        %v1696 = vadd.f32 %v1471, %v1695
        %v1697 = vpop.f32.mrb[0].mxu0
        %1698 = vmatprep.mubr.f32.mxu0 0.0
        %1699 = vmatmul.mubr.f32.gmra.mrb[0].mxu0 %v1240
        %v1700 = vpop.f32.mrb[0].mxu0
        %v1701 = vadd.f32 %v1476, %v1700
        %v1702 = vpop.f32.mrb[0].mxu0
        %1703 = vmatprep.mubr.f32.mxu0 0.0
        %1704 = vmatmul.mubr.f32.gmra.mrb[0].mxu0 %v1241
        %v1705 = vpop.f32.mrb[0].mxu0
        %v1706 = vadd.f32 %v1481, %v1705
        %v1707 = vpop.f32.mrb[0].mxu0
        %1708 = vmatprep.mubr.f32.mxu0 0.0
        %1709 = vmatmul.mubr.f32.gmra.mrb[0].mxu0 %v1242
        %v1710 = vpop.f32.mrb[0].mxu0
        %v1711 = vadd.f32 %v1486, %v1710
        %v1712 = vpop.f32.mrb[0].mxu0
        %1713 = vmatprep.mubr.f32.mxu0 0.0
        %1714 = vmatmul.mubr.f32.gmra.mrb[0].mxu0 %v1243
        %v1715 = vpop.f32.mrb[0].mxu0
        %v1716 = vadd.f32 %v1491, %v1715
        %v1717 = vpop.f32.mrb[0].mxu0
        %1718 = vmatprep.mubr.f32.mxu0 0.0
        %1719 = vmatmul.mubr.f32.gmra.mrb[0].mxu0 %v1244
        %v1720 = vpop.f32.mrb[0].mxu0
        %v1721 = vadd.f32 %v1496, %v1720
        %v1722 = vpop.f32.mrb[0].mxu0
        %1723 = vmatprep.mubr.f32.mxu0 0.0
        %1724 = vmatmul.mubr.f32.gmra.mrb[0].mxu0 %v1245
        %v1725 = vpop.f32.mrb[0].mxu0
        %v1726 = vadd.f32 %v1501, %v1725
        %v1727 = vpop.f32.mrb[0].mxu0
        %1728 = vmatprep.mubr.f32.mxu0 0.0
        %1729 = vmatmul.mubr.f32.gmra.mrb[0].mxu0 %v1246
        %v1730 = vpop.f32.mrb[0].mxu0
        %v1731 = vadd.f32 %v1506, %v1730
        %v1732 = vpop.f32.mrb[0].mxu0
        %1733 = vmatprep.mubr.f32.mxu0 0.0
        %1734 = vmatmul.mubr.f32.gmra.mrb[0].mxu0 %v1247
        %v1735 = vpop.f32.mrb[0].mxu0
        %v1736 = vadd.f32 %v1511, %v1735
        %v1737 = vpop.f32.mrb[0].mxu0
        %1738 = vmatprep.mubr.f32.mxu0 0.0
        %1739 = vmatmul.mubr.f32.gmra.mrb[0].mxu0 %v1248
        %v1740 = vpop.f32.mrb[0].mxu0
        %v1741 = vadd.f32 %v1516, %v1740
        %v1742 = vpop.f32.mrb[0].mxu0
        %1743 = vmatprep.mubr.f32.mxu0 0.0
        %1744 = vmatmul.mubr.f32.gmra.mrb[0].mxu0 %v1249
        %v1745 = vpop.f32.mrb[0].mxu0
        %v1746 = vadd.f32 %v1521, %v1745
        %v1747 = vpop.f32.mrb[0].mxu0
        %1748 = vmatprep.mubr.f32.mxu0 0.0
        %1749 = vmatmul.mubr.f32.gmra.mrb[0].mxu0 %v1250
        %v1750 = vpop.f32.mrb[0].mxu0
        %v1751 = vadd.f32 %v1526, %v1750
        %v1752 = vpop.f32.mrb[0].mxu0
        %1753 = vmatprep.mubr.f32.mxu0 0.0
        %1754 = vmatmul.mubr.f32.gmra.mrb[0].mxu0 %v1251
        %v1755 = vpop.f32.mrb[0].mxu0
        %v1756 = vadd.f32 %v1531, %v1755
        %v1757 = vpop.f32.mrb[0].mxu0
        %1758 = vmatprep.mubr.f32.mxu0 0.0
        %1759 = vmatmul.mubr.f32.gmra.mrb[0].mxu0 %v1252
        %v1760 = vpop.f32.mrb[0].mxu0
        %v1761 = vadd.f32 %v1536, %v1760
        %v1762 = vpop.f32.mrb[0].mxu0
        %1763 = vmatprep.mubr.f32.mxu0 0.0
        %1764 = vmatmul.mubr.f32.gmra.mrb[0].mxu0 %v1253
        %v1765 = vpop.f32.mrb[0].mxu0
        %v1766 = vadd.f32 %v1541, %v1765
        %v1767 = vpop.f32.mrb[0].mxu0
        %1768 = vmatprep.mubr.f32.mxu0 0.0
        %1769 = vmatmul.mubr.f32.gmra.mrb[0].mxu0 %v1254
        %v1770 = vpop.f32.mrb[0].mxu0
        %v1771 = vadd.f32 %v1546, %v1770
        %v1772 = vpop.f32.mrb[0].mxu0
        %1773 = vmatprep.mubr.f32.mxu0 0.0
        %1774 = vmatmul.mubr.f32.gmra.mrb[0].mxu0 %v1255
        %v1775 = vpop.f32.mrb[0].mxu0
        %v1776 = vadd.f32 %v1551, %v1775
        %v1777 = vpop.f32.mrb[0].mxu0
        %1778 = vmatprep.mubr.f32.mxu0 0.0
        %1779 = vmatmul.mubr.f32.gmra.mrb[0].mxu0 %v1256
        %v1780 = vpop.f32.mrb[0].mxu0
        %v1781 = vadd.f32 %v1556, %v1780
        %v1782 = vpop.f32.mrb[0].mxu0
        %1783 = vmatprep.mubr.f32.mxu0 0.0
        %1784 = vmatmul.mubr.f32.gmra.mrb[0].mxu0 %v1257
        %v1785 = vpop.f32.mrb[0].mxu0
        %v1786 = vadd.f32 %v1561, %v1785
        %v1787 = vpop.f32.mrb[0].mxu0
        %1788 = vmatprep.mubr.f32.mxu0 0.0
        %1789 = vmatmul.mubr.f32.gmra.mrb[0].mxu0 %v1258
        %v1790 = vpop.f32.mrb[0].mxu0
        %v1791 = vadd.f32 %v1566, %v1790
        %v1792 = vpop.f32.mrb[0].mxu0
        %1793 = vmatprep.mubr.f32.mxu0 0.0
        %1794 = vmatmul.mubr.f32.gmra.mrb[0].mxu0 %v1259
        %v1795 = vpop.f32.mrb[0].mxu0
        %v1796 = vadd.f32 %v1571, %v1795
        %v1797 = vpop.f32.mrb[0].mxu0
        %1798 = vmatprep.mubr.f32.mxu0 0.0
        %1799 = vmatmul.mubr.f32.gmra.mrb[0].mxu0 %v1260
        %v1800 = vpop.f32.mrb[0].mxu0
        %v1801 = vadd.f32 %v1576, %v1800
        %v1802 = vpop.f32.mrb[0].mxu0
        %1803 = vmatprep.mubr.f32.mxu0 0.0
        %1804 = vmatmul.mubr.f32.gmra.mrb[0].mxu0 %v1261
        %v1805 = vpop.f32.mrb[0].mxu0
        %v1806 = vadd.f32 %v1581, %v1805
        %v1807 = vpop.f32.mrb[0].mxu0
        %1808 = vdwg.mxu0
        %s1809 = scalar_lea.vmem [#allocation3], 512
        %v1810 = vld [vmem:[%s1809] sm:$0xff]
        %v1811 = vld [vmem:[%s1809 + $0x8] sm:$0xff]
        %v1812 = vld [vmem:[%s1809 + $0x10] sm:$0xff]
        %v1813 = vld [vmem:[%s1809 + $0x18] sm:$0xff]
        %v1814 = vld [vmem:[%s1809 + $0x20] sm:$0xff]
        %v1815 = vld [vmem:[%s1809 + $0x28] sm:$0xff]
        %v1816 = vld [vmem:[%s1809 + $0x30] sm:$0xff]
        %v1817 = vld [vmem:[%s1809 + $0x38] sm:$0xff]
        %v1818 = vld [vmem:[%s1809 + $0x40] sm:$0xff]
        %v1819 = vld [vmem:[%s1809 + $0x48] sm:$0xff]
        %v1820 = vld [vmem:[%s1809 + $0x50] sm:$0xff]
        %v1821 = vld [vmem:[%s1809 + $0x58] sm:$0xff]
        %v1822 = vld [vmem:[%s1809 + $0x60] sm:$0xff]
        %v1823 = vld [vmem:[%s1809 + $0x68] sm:$0xff]
        %v1824 = vld [vmem:[%s1809 + $0x70] sm:$0xff]
        %v1825 = vld [vmem:[%s1809 + $0x78] sm:$0xff]
        %v1826 = vld [vmem:[%s1809 + $0x80] sm:$0xff]
        %v1827 = vld [vmem:[%s1809 + $0x88] sm:$0xff]
        %v1828 = vld [vmem:[%s1809 + $0x90] sm:$0xff]
        %v1829 = vld [vmem:[%s1809 + $0x98] sm:$0xff]
        %v1830 = vld [vmem:[%s1809 + $0xa0] sm:$0xff]
        %v1831 = vld [vmem:[%s1809 + $0xa8] sm:$0xff]
        %v1832 = vld [vmem:[%s1809 + $0xb0] sm:$0xff]
        %v1833 = vld [vmem:[%s1809 + $0xb8] sm:$0xff]
        %v1834 = vld [vmem:[%s1809 + $0xc0] sm:$0xff]
        %v1835 = vld [vmem:[%s1809 + $0xc8] sm:$0xff]
        %v1836 = vld [vmem:[%s1809 + $0xd0] sm:$0xff]
        %v1837 = vld [vmem:[%s1809 + $0xd8] sm:$0xff]
        %v1838 = vld [vmem:[%s1809 + $0xe0] sm:$0xff]
        %v1839 = vld [vmem:[%s1809 + $0xe8] sm:$0xff]
        %v1840 = vld [vmem:[%s1809 + $0xf0] sm:$0xff]
        %v1841 = vld [vmem:[%s1809 + $0xf8] sm:$0xff]
        %1842 = vrot.lane.b32.xlu0 %v1152, 126
        %v1843 = vpop.permute.xlu0 %1842
        %1844 = vrot.lane.b32.xlu0 %v1157, 126
        %v1845 = vpop.permute.xlu0 %1844
        %1846 = vrot.lane.b32.xlu0 %v1162, 126
        %v1847 = vpop.permute.xlu0 %1846
        %1848 = vrot.lane.b32.xlu0 %v1167, 126
        %v1849 = vpop.permute.xlu0 %1848
        %1850 = vrot.lane.b32.xlu0 %v1172, 126
        %v1851 = vpop.permute.xlu0 %1850
        %1852 = vrot.lane.b32.xlu0 %v1177, 126
        %v1853 = vpop.permute.xlu0 %1852
        %1854 = vrot.lane.b32.xlu0 %v1182, 126
        %v1855 = vpop.permute.xlu0 %1854
        %1856 = vrot.lane.b32.xlu0 %v1187, 126
        %v1857 = vpop.permute.xlu0 %1856
        %1858 = vrot.lane.b32.xlu0 %v1192, 126
        %v1859 = vpop.permute.xlu0 %1858
        %1860 = vrot.lane.b32.xlu0 %v1197, 126
        %v1861 = vpop.permute.xlu0 %1860
        %1862 = vrot.lane.b32.xlu0 %v1202, 126
        %v1863 = vpop.permute.xlu0 %1862
        %1864 = vrot.lane.b32.xlu0 %v1207, 126
        %v1865 = vpop.permute.xlu0 %1864
        %1866 = vrot.lane.b32.xlu0 %v1212, 126
        %v1867 = vpop.permute.xlu0 %1866
        %1868 = vrot.lane.b32.xlu0 %v1217, 126
        %v1869 = vpop.permute.xlu0 %1868
        %1870 = vrot.lane.b32.xlu0 %v1222, 126
        %v1871 = vpop.permute.xlu0 %1870
        %1872 = vrot.lane.b32.xlu0 %v1227, 126
        %v1873 = vpop.permute.xlu0 %1872
        %1890 = vmatprep.subr.mxu0 0.0
        %1891 = vmatpush1.msra.mxu0 %v1843
        %1892 = vmatprep.subr.mxu0 0.0
        %1893 = vmatpush1.msra.mxu0 %v1845
        %1894 = vmatprep.subr.mxu0 0.0
        %1895 = vmatpush1.msra.mxu0 %v1847
        %1896 = vmatprep.subr.mxu0 0.0
        %1897 = vmatpush1.msra.mxu0 %v1849
        %1898 = vmatprep.subr.mxu0 0.0
        %1899 = vmatpush1.msra.mxu0 %v1851
        %1900 = vmatprep.subr.mxu0 0.0
        %1901 = vmatpush1.msra.mxu0 %v1853
        %1902 = vmatprep.subr.mxu0 0.0
        %1903 = vmatpush1.msra.mxu0 %v1855
        %1904 = vmatprep.subr.mxu0 0.0
        %1905 = vmatpush1.msra.mxu0 %v1857
        %1906 = vmatprep.subr.mxu0 0.0
        %1907 = vmatpush1.msra.mxu0 %v1859
        %1908 = vmatprep.subr.mxu0 0.0
        %1909 = vmatpush1.msra.mxu0 %v1861
        %1910 = vmatprep.subr.mxu0 0.0
        %1911 = vmatpush1.msra.mxu0 %v1863
        %1912 = vmatprep.subr.mxu0 0.0
        %1913 = vmatpush1.msra.mxu0 %v1865
        %1914 = vmatprep.subr.mxu0 0.0
        %1915 = vmatpush1.msra.mxu0 %v1867
        %1916 = vmatprep.subr.mxu0 0.0
        %1917 = vmatpush1.msra.mxu0 %v1869
        %1918 = vmatprep.subr.mxu0 0.0
        %1919 = vmatpush1.msra.mxu0 %v1871
        %1920 = vmatprep.subr.mxu0 0.0
        %1921 = vmatpush1.msra.mxu0 %v1873
        %1922 = vmatprep.subr.mxu0 0.0
        %1923 = vmatpush1.msra.mxu0 0.0
        %1924 = vmatprep.subr.mxu0 0.0
        %1925 = vmatpush1.msra.mxu0 0.0
        %1926 = vmatprep.subr.mxu0 0.0
        %1927 = vmatpush1.msra.mxu0 0.0
        %1928 = vmatprep.subr.mxu0 0.0
        %1929 = vmatpush1.msra.mxu0 0.0
        %1930 = vmatprep.subr.mxu0 0.0
        %1931 = vmatpush1.msra.mxu0 0.0
        %1932 = vmatprep.subr.mxu0 0.0
        %1933 = vmatpush1.msra.mxu0 0.0
        %1934 = vmatprep.subr.mxu0 0.0
        %1935 = vmatpush1.msra.mxu0 0.0
        %1936 = vmatprep.subr.mxu0 0.0
        %1937 = vmatpush1.msra.mxu0 0.0
        %1938 = vmatprep.subr.mxu0 0.0
        %1939 = vmatpush1.msra.mxu0 0.0
        %1940 = vmatprep.subr.mxu0 0.0
        %1941 = vmatpush1.msra.mxu0 0.0
        %1942 = vmatprep.subr.mxu0 0.0
        %1943 = vmatpush1.msra.mxu0 0.0
        %1944 = vmatprep.subr.mxu0 0.0
        %1945 = vmatpush1.msra.mxu0 0.0
        %1946 = vmatprep.subr.mxu0 0.0
        %1947 = vmatpush1.msra.mxu0 0.0
        %1948 = vmatprep.subr.mxu0 0.0
        %1949 = vmatpush1.msra.mxu0 0.0
        %1950 = vmatprep.subr.mxu0 0.0
        %1951 = vmatpush1.msra.mxu0 0.0
        %1952 = vmatprep.subr.mxu0 0.0
        %1953 = vmatpush1.msra.mxu0 0.0
        %1954 = vmatprep.mubr.f32.mxu0 0.0
        %1955 = vmatmul.mubr.f32.gmra.mrb[0].mxu0 %v1810
        %v1956 = vpop.f32.mrb[0].mxu0
        %v1957 = vadd.f32 0.0, %v1956
        %v1958 = vpop.f32.mrb[0].mxu0
        %1959 = vmatprep.mubr.f32.mxu0 0.0
        %1960 = vmatmul.mubr.f32.gmra.mrb[0].mxu0 %v1811
        %v1961 = vpop.f32.mrb[0].mxu0
        %v1962 = vadd.f32 0.0, %v1961
        %v1963 = vpop.f32.mrb[0].mxu0
        %1964 = vmatprep.mubr.f32.mxu0 0.0
        %1965 = vmatmul.mubr.f32.gmra.mrb[0].mxu0 %v1812
        %v1966 = vpop.f32.mrb[0].mxu0
        %v1967 = vadd.f32 0.0, %v1966
        %v1968 = vpop.f32.mrb[0].mxu0
        %1969 = vmatprep.mubr.f32.mxu0 0.0
        %1970 = vmatmul.mubr.f32.gmra.mrb[0].mxu0 %v1813
        %v1971 = vpop.f32.mrb[0].mxu0
        %v1972 = vadd.f32 0.0, %v1971
        %v1973 = vpop.f32.mrb[0].mxu0
        %1974 = vmatprep.mubr.f32.mxu0 0.0
        %1975 = vmatmul.mubr.f32.gmra.mrb[0].mxu0 %v1814
        %v1976 = vpop.f32.mrb[0].mxu0
        %v1977 = vadd.f32 0.0, %v1976
        %v1978 = vpop.f32.mrb[0].mxu0
        %1979 = vmatprep.mubr.f32.mxu0 0.0
        %1980 = vmatmul.mubr.f32.gmra.mrb[0].mxu0 %v1815
        %v1981 = vpop.f32.mrb[0].mxu0
        %v1982 = vadd.f32 0.0, %v1981
        %v1983 = vpop.f32.mrb[0].mxu0
        %1984 = vmatprep.mubr.f32.mxu0 0.0
        %1985 = vmatmul.mubr.f32.gmra.mrb[0].mxu0 %v1816
        %v1986 = vpop.f32.mrb[0].mxu0
        %v1987 = vadd.f32 0.0, %v1986
        %v1988 = vpop.f32.mrb[0].mxu0
        %1989 = vmatprep.mubr.f32.mxu0 0.0
        %1990 = vmatmul.mubr.f32.gmra.mrb[0].mxu0 %v1817
        %v1991 = vpop.f32.mrb[0].mxu0
        %v1992 = vadd.f32 0.0, %v1991
        %v1993 = vpop.f32.mrb[0].mxu0
        %1994 = vmatprep.mubr.f32.mxu0 0.0
        %1995 = vmatmul.mubr.f32.gmra.mrb[0].mxu0 %v1818
        %v1996 = vpop.f32.mrb[0].mxu0
        %v1997 = vadd.f32 0.0, %v1996
        %v1998 = vpop.f32.mrb[0].mxu0
        %1999 = vmatprep.mubr.f32.mxu0 0.0
        %2000 = vmatmul.mubr.f32.gmra.mrb[0].mxu0 %v1819
        %v2001 = vpop.f32.mrb[0].mxu0
        %v2002 = vadd.f32 0.0, %v2001
        %v2003 = vpop.f32.mrb[0].mxu0
        %2004 = vmatprep.mubr.f32.mxu0 0.0
        %2005 = vmatmul.mubr.f32.gmra.mrb[0].mxu0 %v1820
        %v2006 = vpop.f32.mrb[0].mxu0
        %v2007 = vadd.f32 0.0, %v2006
        %v2008 = vpop.f32.mrb[0].mxu0
        %2009 = vmatprep.mubr.f32.mxu0 0.0
        %2010 = vmatmul.mubr.f32.gmra.mrb[0].mxu0 %v1821
        %v2011 = vpop.f32.mrb[0].mxu0
        %v2012 = vadd.f32 0.0, %v2011
        %v2013 = vpop.f32.mrb[0].mxu0
        %2014 = vmatprep.mubr.f32.mxu0 0.0
        %2015 = vmatmul.mubr.f32.gmra.mrb[0].mxu0 %v1822
        %v2016 = vpop.f32.mrb[0].mxu0
        %v2017 = vadd.f32 0.0, %v2016
        %v2018 = vpop.f32.mrb[0].mxu0
        %2019 = vmatprep.mubr.f32.mxu0 0.0
        %2020 = vmatmul.mubr.f32.gmra.mrb[0].mxu0 %v1823
        %v2021 = vpop.f32.mrb[0].mxu0
        %v2022 = vadd.f32 0.0, %v2021
        %v2023 = vpop.f32.mrb[0].mxu0
        %2024 = vmatprep.mubr.f32.mxu0 0.0
        %2025 = vmatmul.mubr.f32.gmra.mrb[0].mxu0 %v1824
        %v2026 = vpop.f32.mrb[0].mxu0
        %v2027 = vadd.f32 0.0, %v2026
        %v2028 = vpop.f32.mrb[0].mxu0
        %2029 = vmatprep.mubr.f32.mxu0 0.0
        %2030 = vmatmul.mubr.f32.gmra.mrb[0].mxu0 %v1825
        %v2031 = vpop.f32.mrb[0].mxu0
        %v2032 = vadd.f32 0.0, %v2031
        %v2033 = vpop.f32.mrb[0].mxu0
        %2034 = vmatprep.mubr.f32.mxu0 0.0
        %2035 = vmatmul.mubr.f32.gmra.mrb[0].mxu0 %v1826
        %v2036 = vpop.f32.mrb[0].mxu0
        %v2037 = vadd.f32 0.0, %v2036
        %v2038 = vpop.f32.mrb[0].mxu0
        %2039 = vmatprep.mubr.f32.mxu0 0.0
        %2040 = vmatmul.mubr.f32.gmra.mrb[0].mxu0 %v1827
        %v2041 = vpop.f32.mrb[0].mxu0
        %v2042 = vadd.f32 0.0, %v2041
        %v2043 = vpop.f32.mrb[0].mxu0
        %2044 = vmatprep.mubr.f32.mxu0 0.0
        %2045 = vmatmul.mubr.f32.gmra.mrb[0].mxu0 %v1828
        %v2046 = vpop.f32.mrb[0].mxu0
        %v2047 = vadd.f32 0.0, %v2046
        %v2048 = vpop.f32.mrb[0].mxu0
        %2049 = vmatprep.mubr.f32.mxu0 0.0
        %2050 = vmatmul.mubr.f32.gmra.mrb[0].mxu0 %v1829
        %v2051 = vpop.f32.mrb[0].mxu0
        %v2052 = vadd.f32 0.0, %v2051
        %v2053 = vpop.f32.mrb[0].mxu0
        %2054 = vmatprep.mubr.f32.mxu0 0.0
        %2055 = vmatmul.mubr.f32.gmra.mrb[0].mxu0 %v1830
        %v2056 = vpop.f32.mrb[0].mxu0
        %v2057 = vadd.f32 0.0, %v2056
        %v2058 = vpop.f32.mrb[0].mxu0
        %2059 = vmatprep.mubr.f32.mxu0 0.0
        %2060 = vmatmul.mubr.f32.gmra.mrb[0].mxu0 %v1831
        %v2061 = vpop.f32.mrb[0].mxu0
        %v2062 = vadd.f32 0.0, %v2061
        %v2063 = vpop.f32.mrb[0].mxu0
        %2064 = vmatprep.mubr.f32.mxu0 0.0
        %2065 = vmatmul.mubr.f32.gmra.mrb[0].mxu0 %v1832
        %v2066 = vpop.f32.mrb[0].mxu0
        %v2067 = vadd.f32 0.0, %v2066
        %v2068 = vpop.f32.mrb[0].mxu0
        %2069 = vmatprep.mubr.f32.mxu0 0.0
        %2070 = vmatmul.mubr.f32.gmra.mrb[0].mxu0 %v1833
        %v2071 = vpop.f32.mrb[0].mxu0
        %v2072 = vadd.f32 0.0, %v2071
        %v2073 = vpop.f32.mrb[0].mxu0
        %2074 = vmatprep.mubr.f32.mxu0 0.0
        %2075 = vmatmul.mubr.f32.gmra.mrb[0].mxu0 %v1834
        %v2076 = vpop.f32.mrb[0].mxu0
        %v2077 = vadd.f32 0.0, %v2076
        %v2078 = vpop.f32.mrb[0].mxu0
        %2079 = vmatprep.mubr.f32.mxu0 0.0
        %2080 = vmatmul.mubr.f32.gmra.mrb[0].mxu0 %v1835
        %v2081 = vpop.f32.mrb[0].mxu0
        %v2082 = vadd.f32 0.0, %v2081
        %v2083 = vpop.f32.mrb[0].mxu0
        %2084 = vmatprep.mubr.f32.mxu0 0.0
        %2085 = vmatmul.mubr.f32.gmra.mrb[0].mxu0 %v1836
        %v2086 = vpop.f32.mrb[0].mxu0
        %v2087 = vadd.f32 0.0, %v2086
        %v2088 = vpop.f32.mrb[0].mxu0
        %2089 = vmatprep.mubr.f32.mxu0 0.0
        %2090 = vmatmul.mubr.f32.gmra.mrb[0].mxu0 %v1837
        %v2091 = vpop.f32.mrb[0].mxu0
        %v2092 = vadd.f32 0.0, %v2091
        %v2093 = vpop.f32.mrb[0].mxu0
        %2094 = vmatprep.mubr.f32.mxu0 0.0
        %2095 = vmatmul.mubr.f32.gmra.mrb[0].mxu0 %v1838
        %v2096 = vpop.f32.mrb[0].mxu0
        %v2097 = vadd.f32 0.0, %v2096
        %v2098 = vpop.f32.mrb[0].mxu0
        %2099 = vmatprep.mubr.f32.mxu0 0.0
        %2100 = vmatmul.mubr.f32.gmra.mrb[0].mxu0 %v1839
        %v2101 = vpop.f32.mrb[0].mxu0
        %v2102 = vadd.f32 0.0, %v2101
        %v2103 = vpop.f32.mrb[0].mxu0
        %2104 = vmatprep.mubr.f32.mxu0 0.0
        %2105 = vmatmul.mubr.f32.gmra.mrb[0].mxu0 %v1840
        %v2106 = vpop.f32.mrb[0].mxu0
        %v2107 = vadd.f32 0.0, %v2106
        %v2108 = vpop.f32.mrb[0].mxu0
        %2109 = vmatprep.mubr.f32.mxu0 0.0
        %2110 = vmatmul.mubr.f32.gmra.mrb[0].mxu0 %v1841
        %v2111 = vpop.f32.mrb[0].mxu0
        %v2112 = vadd.f32 0.0, %v2111
        %v2113 = vpop.f32.mrb[0].mxu0
        %2114 = vdwg.mxu0
        %v2115 = vadd.f32 %v1651, %v1957
        %v2116 = vadd.f32 %v1656, %v1962
        %v2117 = vadd.f32 %v1661, %v1967
        %v2118 = vadd.f32 %v1666, %v1972
        %v2119 = vadd.f32 %v1671, %v1977
        %v2120 = vadd.f32 %v1676, %v1982
        %v2121 = vadd.f32 %v1681, %v1987
        %v2122 = vadd.f32 %v1686, %v1992
        %v2123 = vadd.f32 %v1691, %v1997
        %v2124 = vadd.f32 %v1696, %v2002
        %v2125 = vadd.f32 %v1701, %v2007
        %v2126 = vadd.f32 %v1706, %v2012
        %v2127 = vadd.f32 %v1711, %v2017
        %v2128 = vadd.f32 %v1716, %v2022
        %v2129 = vadd.f32 %v1721, %v2027
        %v2130 = vadd.f32 %v1726, %v2032
        %v2131 = vadd.f32 %v1731, %v2037
        %v2132 = vadd.f32 %v1736, %v2042
        %v2133 = vadd.f32 %v1741, %v2047
        %v2134 = vadd.f32 %v1746, %v2052
        %v2135 = vadd.f32 %v1751, %v2057
        %v2136 = vadd.f32 %v1756, %v2062
        %v2137 = vadd.f32 %v1761, %v2067
        %v2138 = vadd.f32 %v1766, %v2072
        %v2139 = vadd.f32 %v1771, %v2077
        %v2140 = vadd.f32 %v1776, %v2082
        %v2141 = vadd.f32 %v1781, %v2087
        %v2142 = vadd.f32 %v1786, %v2092
        %v2143 = vadd.f32 %v1791, %v2097
        %v2144 = vadd.f32 %v1796, %v2102
        %v2145 = vadd.f32 %v1801, %v2107
        %v2146 = vadd.f32 %v1806, %v2112
        %s2147 = scalar_lea.vmem [#allocation3], 768
        %v2148 = vld [vmem:[%s2147] sm:$0xff]
        %v2149 = vld [vmem:[%s2147 + $0x8] sm:$0xff]
        %v2150 = vld [vmem:[%s2147 + $0x10] sm:$0xff]
        %v2151 = vld [vmem:[%s2147 + $0x18] sm:$0xff]
        %v2152 = vld [vmem:[%s2147 + $0x20] sm:$0xff]
        %v2153 = vld [vmem:[%s2147 + $0x28] sm:$0xff]
        %v2154 = vld [vmem:[%s2147 + $0x30] sm:$0xff]
        %v2155 = vld [vmem:[%s2147 + $0x38] sm:$0xff]
        %v2156 = vld [vmem:[%s2147 + $0x40] sm:$0xff]
        %v2157 = vld [vmem:[%s2147 + $0x48] sm:$0xff]
        %v2158 = vld [vmem:[%s2147 + $0x50] sm:$0xff]
        %v2159 = vld [vmem:[%s2147 + $0x58] sm:$0xff]
        %v2160 = vld [vmem:[%s2147 + $0x60] sm:$0xff]
        %v2161 = vld [vmem:[%s2147 + $0x68] sm:$0xff]
        %v2162 = vld [vmem:[%s2147 + $0x70] sm:$0xff]
        %v2163 = vld [vmem:[%s2147 + $0x78] sm:$0xff]
        %v2164 = vld [vmem:[%s2147 + $0x80] sm:$0xff]
        %v2165 = vld [vmem:[%s2147 + $0x88] sm:$0xff]
        %v2166 = vld [vmem:[%s2147 + $0x90] sm:$0xff]
        %v2167 = vld [vmem:[%s2147 + $0x98] sm:$0xff]
        %v2168 = vld [vmem:[%s2147 + $0xa0] sm:$0xff]
        %v2169 = vld [vmem:[%s2147 + $0xa8] sm:$0xff]
        %v2170 = vld [vmem:[%s2147 + $0xb0] sm:$0xff]
        %v2171 = vld [vmem:[%s2147 + $0xb8] sm:$0xff]
        %v2172 = vld [vmem:[%s2147 + $0xc0] sm:$0xff]
        %v2173 = vld [vmem:[%s2147 + $0xc8] sm:$0xff]
        %v2174 = vld [vmem:[%s2147 + $0xd0] sm:$0xff]
        %v2175 = vld [vmem:[%s2147 + $0xd8] sm:$0xff]
        %v2176 = vld [vmem:[%s2147 + $0xe0] sm:$0xff]
        %v2177 = vld [vmem:[%s2147 + $0xe8] sm:$0xff]
        %v2178 = vld [vmem:[%s2147 + $0xf0] sm:$0xff]
        %v2179 = vld [vmem:[%s2147 + $0xf8] sm:$0xff]
        %2180 = vrot.lane.b32.xlu0 %v1152, 125
        %v2181 = vpop.permute.xlu0 %2180
        %2182 = vrot.lane.b32.xlu0 %v1157, 125
        %v2183 = vpop.permute.xlu0 %2182
        %2184 = vrot.lane.b32.xlu0 %v1162, 125
        %v2185 = vpop.permute.xlu0 %2184
        %2186 = vrot.lane.b32.xlu0 %v1167, 125
        %v2187 = vpop.permute.xlu0 %2186
        %2188 = vrot.lane.b32.xlu0 %v1172, 125
        %v2189 = vpop.permute.xlu0 %2188
        %2190 = vrot.lane.b32.xlu0 %v1177, 125
        %v2191 = vpop.permute.xlu0 %2190
        %2192 = vrot.lane.b32.xlu0 %v1182, 125
        %v2193 = vpop.permute.xlu0 %2192
        %2194 = vrot.lane.b32.xlu0 %v1187, 125
        %v2195 = vpop.permute.xlu0 %2194
        %2196 = vrot.lane.b32.xlu0 %v1192, 125
        %v2197 = vpop.permute.xlu0 %2196
        %2198 = vrot.lane.b32.xlu0 %v1197, 125
        %v2199 = vpop.permute.xlu0 %2198
        %2200 = vrot.lane.b32.xlu0 %v1202, 125
        %v2201 = vpop.permute.xlu0 %2200
        %2202 = vrot.lane.b32.xlu0 %v1207, 125
        %v2203 = vpop.permute.xlu0 %2202
        %2204 = vrot.lane.b32.xlu0 %v1212, 125
        %v2205 = vpop.permute.xlu0 %2204
        %2206 = vrot.lane.b32.xlu0 %v1217, 125
        %v2207 = vpop.permute.xlu0 %2206
        %2208 = vrot.lane.b32.xlu0 %v1222, 125
        %v2209 = vpop.permute.xlu0 %2208
        %2210 = vrot.lane.b32.xlu0 %v1227, 125
        %v2211 = vpop.permute.xlu0 %2210
        %2228 = vmatprep.subr.mxu0 0.0
        %2229 = vmatpush1.msra.mxu0 %v2181
        %2230 = vmatprep.subr.mxu0 0.0
        %2231 = vmatpush1.msra.mxu0 %v2183
        %2232 = vmatprep.subr.mxu0 0.0
        %2233 = vmatpush1.msra.mxu0 %v2185
        %2234 = vmatprep.subr.mxu0 0.0
        %2235 = vmatpush1.msra.mxu0 %v2187
        %2236 = vmatprep.subr.mxu0 0.0
        %2237 = vmatpush1.msra.mxu0 %v2189
        %2238 = vmatprep.subr.mxu0 0.0
        %2239 = vmatpush1.msra.mxu0 %v2191
        %2240 = vmatprep.subr.mxu0 0.0
        %2241 = vmatpush1.msra.mxu0 %v2193
        %2242 = vmatprep.subr.mxu0 0.0
        %2243 = vmatpush1.msra.mxu0 %v2195
        %2244 = vmatprep.subr.mxu0 0.0
        %2245 = vmatpush1.msra.mxu0 %v2197
        %2246 = vmatprep.subr.mxu0 0.0
        %2247 = vmatpush1.msra.mxu0 %v2199
        %2248 = vmatprep.subr.mxu0 0.0
        %2249 = vmatpush1.msra.mxu0 %v2201
        %2250 = vmatprep.subr.mxu0 0.0
        %2251 = vmatpush1.msra.mxu0 %v2203
        %2252 = vmatprep.subr.mxu0 0.0
        %2253 = vmatpush1.msra.mxu0 %v2205
        %2254 = vmatprep.subr.mxu0 0.0
        %2255 = vmatpush1.msra.mxu0 %v2207
        %2256 = vmatprep.subr.mxu0 0.0
        %2257 = vmatpush1.msra.mxu0 %v2209
        %2258 = vmatprep.subr.mxu0 0.0
        %2259 = vmatpush1.msra.mxu0 %v2211
        %2260 = vmatprep.subr.mxu0 0.0
        %2261 = vmatpush1.msra.mxu0 0.0
        %2262 = vmatprep.subr.mxu0 0.0
        %2263 = vmatpush1.msra.mxu0 0.0
        %2264 = vmatprep.subr.mxu0 0.0
        %2265 = vmatpush1.msra.mxu0 0.0
        %2266 = vmatprep.subr.mxu0 0.0
        %2267 = vmatpush1.msra.mxu0 0.0
        %2268 = vmatprep.subr.mxu0 0.0
        %2269 = vmatpush1.msra.mxu0 0.0
        %2270 = vmatprep.subr.mxu0 0.0
        %2271 = vmatpush1.msra.mxu0 0.0
        %2272 = vmatprep.subr.mxu0 0.0
        %2273 = vmatpush1.msra.mxu0 0.0
        %2274 = vmatprep.subr.mxu0 0.0
        %2275 = vmatpush1.msra.mxu0 0.0
        %2276 = vmatprep.subr.mxu0 0.0
        %2277 = vmatpush1.msra.mxu0 0.0
        %2278 = vmatprep.subr.mxu0 0.0
        %2279 = vmatpush1.msra.mxu0 0.0
        %2280 = vmatprep.subr.mxu0 0.0
        %2281 = vmatpush1.msra.mxu0 0.0
        %2282 = vmatprep.subr.mxu0 0.0
        %2283 = vmatpush1.msra.mxu0 0.0
        %2284 = vmatprep.subr.mxu0 0.0
        %2285 = vmatpush1.msra.mxu0 0.0
        %2286 = vmatprep.subr.mxu0 0.0
        %2287 = vmatpush1.msra.mxu0 0.0
        %2288 = vmatprep.subr.mxu0 0.0
        %2289 = vmatpush1.msra.mxu0 0.0
        %2290 = vmatprep.subr.mxu0 0.0
        %2291 = vmatpush1.msra.mxu0 0.0
        %2292 = vmatprep.mubr.f32.mxu0 0.0
        %2293 = vmatmul.mubr.f32.gmra.mrb[0].mxu0 %v2148
        %v2294 = vpop.f32.mrb[0].mxu0
        %v2295 = vadd.f32 0.0, %v2294
        %v2296 = vpop.f32.mrb[0].mxu0
        %2297 = vmatprep.mubr.f32.mxu0 0.0
        %2298 = vmatmul.mubr.f32.gmra.mrb[0].mxu0 %v2149
        %v2299 = vpop.f32.mrb[0].mxu0
        %v2300 = vadd.f32 0.0, %v2299
        %v2301 = vpop.f32.mrb[0].mxu0
        %2302 = vmatprep.mubr.f32.mxu0 0.0
        %2303 = vmatmul.mubr.f32.gmra.mrb[0].mxu0 %v2150
        %v2304 = vpop.f32.mrb[0].mxu0
        %v2305 = vadd.f32 0.0, %v2304
        %v2306 = vpop.f32.mrb[0].mxu0
        %2307 = vmatprep.mubr.f32.mxu0 0.0
        %2308 = vmatmul.mubr.f32.gmra.mrb[0].mxu0 %v2151
        %v2309 = vpop.f32.mrb[0].mxu0
        %v2310 = vadd.f32 0.0, %v2309
        %v2311 = vpop.f32.mrb[0].mxu0
        %2312 = vmatprep.mubr.f32.mxu0 0.0
        %2313 = vmatmul.mubr.f32.gmra.mrb[0].mxu0 %v2152
        %v2314 = vpop.f32.mrb[0].mxu0
        %v2315 = vadd.f32 0.0, %v2314
        %v2316 = vpop.f32.mrb[0].mxu0
        %2317 = vmatprep.mubr.f32.mxu0 0.0
        %2318 = vmatmul.mubr.f32.gmra.mrb[0].mxu0 %v2153
        %v2319 = vpop.f32.mrb[0].mxu0
        %v2320 = vadd.f32 0.0, %v2319
        %v2321 = vpop.f32.mrb[0].mxu0
        %2322 = vmatprep.mubr.f32.mxu0 0.0
        %2323 = vmatmul.mubr.f32.gmra.mrb[0].mxu0 %v2154
        %v2324 = vpop.f32.mrb[0].mxu0
        %v2325 = vadd.f32 0.0, %v2324
        %v2326 = vpop.f32.mrb[0].mxu0
        %2327 = vmatprep.mubr.f32.mxu0 0.0
        %2328 = vmatmul.mubr.f32.gmra.mrb[0].mxu0 %v2155
        %v2329 = vpop.f32.mrb[0].mxu0
        %v2330 = vadd.f32 0.0, %v2329
        %v2331 = vpop.f32.mrb[0].mxu0
        %2332 = vmatprep.mubr.f32.mxu0 0.0
        %2333 = vmatmul.mubr.f32.gmra.mrb[0].mxu0 %v2156
        %v2334 = vpop.f32.mrb[0].mxu0
        %v2335 = vadd.f32 0.0, %v2334
        %v2336 = vpop.f32.mrb[0].mxu0
        %2337 = vmatprep.mubr.f32.mxu0 0.0
        %2338 = vmatmul.mubr.f32.gmra.mrb[0].mxu0 %v2157
        %v2339 = vpop.f32.mrb[0].mxu0
        %v2340 = vadd.f32 0.0, %v2339
        %v2341 = vpop.f32.mrb[0].mxu0
        %2342 = vmatprep.mubr.f32.mxu0 0.0
        %2343 = vmatmul.mubr.f32.gmra.mrb[0].mxu0 %v2158
        %v2344 = vpop.f32.mrb[0].mxu0
        %v2345 = vadd.f32 0.0, %v2344
        %v2346 = vpop.f32.mrb[0].mxu0
        %2347 = vmatprep.mubr.f32.mxu0 0.0
        %2348 = vmatmul.mubr.f32.gmra.mrb[0].mxu0 %v2159
        %v2349 = vpop.f32.mrb[0].mxu0
        %v2350 = vadd.f32 0.0, %v2349
        %v2351 = vpop.f32.mrb[0].mxu0
        %2352 = vmatprep.mubr.f32.mxu0 0.0
        %2353 = vmatmul.mubr.f32.gmra.mrb[0].mxu0 %v2160
        %v2354 = vpop.f32.mrb[0].mxu0
        %v2355 = vadd.f32 0.0, %v2354
        %v2356 = vpop.f32.mrb[0].mxu0
        %2357 = vmatprep.mubr.f32.mxu0 0.0
        %2358 = vmatmul.mubr.f32.gmra.mrb[0].mxu0 %v2161
        %v2359 = vpop.f32.mrb[0].mxu0
        %v2360 = vadd.f32 0.0, %v2359
        %v2361 = vpop.f32.mrb[0].mxu0
        %2362 = vmatprep.mubr.f32.mxu0 0.0
        %2363 = vmatmul.mubr.f32.gmra.mrb[0].mxu0 %v2162
        %v2364 = vpop.f32.mrb[0].mxu0
        %v2365 = vadd.f32 0.0, %v2364
        %v2366 = vpop.f32.mrb[0].mxu0
        %2367 = vmatprep.mubr.f32.mxu0 0.0
        %2368 = vmatmul.mubr.f32.gmra.mrb[0].mxu0 %v2163
        %v2369 = vpop.f32.mrb[0].mxu0
        %v2370 = vadd.f32 0.0, %v2369
        %v2371 = vpop.f32.mrb[0].mxu0
        %2372 = vmatprep.mubr.f32.mxu0 0.0
        %2373 = vmatmul.mubr.f32.gmra.mrb[0].mxu0 %v2164
        %v2374 = vpop.f32.mrb[0].mxu0
        %v2375 = vadd.f32 0.0, %v2374
        %v2376 = vpop.f32.mrb[0].mxu0
        %2377 = vmatprep.mubr.f32.mxu0 0.0
        %2378 = vmatmul.mubr.f32.gmra.mrb[0].mxu0 %v2165
        %v2379 = vpop.f32.mrb[0].mxu0
        %v2380 = vadd.f32 0.0, %v2379
        %v2381 = vpop.f32.mrb[0].mxu0
        %2382 = vmatprep.mubr.f32.mxu0 0.0
        %2383 = vmatmul.mubr.f32.gmra.mrb[0].mxu0 %v2166
        %v2384 = vpop.f32.mrb[0].mxu0
        %v2385 = vadd.f32 0.0, %v2384
        %v2386 = vpop.f32.mrb[0].mxu0
        %2387 = vmatprep.mubr.f32.mxu0 0.0
        %2388 = vmatmul.mubr.f32.gmra.mrb[0].mxu0 %v2167
        %v2389 = vpop.f32.mrb[0].mxu0
        %v2390 = vadd.f32 0.0, %v2389
        %v2391 = vpop.f32.mrb[0].mxu0
        %2392 = vmatprep.mubr.f32.mxu0 0.0
        %2393 = vmatmul.mubr.f32.gmra.mrb[0].mxu0 %v2168
        %v2394 = vpop.f32.mrb[0].mxu0
        %v2395 = vadd.f32 0.0, %v2394
        %v2396 = vpop.f32.mrb[0].mxu0
        %2397 = vmatprep.mubr.f32.mxu0 0.0
        %2398 = vmatmul.mubr.f32.gmra.mrb[0].mxu0 %v2169
        %v2399 = vpop.f32.mrb[0].mxu0
        %v2400 = vadd.f32 0.0, %v2399
        %v2401 = vpop.f32.mrb[0].mxu0
        %2402 = vmatprep.mubr.f32.mxu0 0.0
        %2403 = vmatmul.mubr.f32.gmra.mrb[0].mxu0 %v2170
        %v2404 = vpop.f32.mrb[0].mxu0
        %v2405 = vadd.f32 0.0, %v2404
        %v2406 = vpop.f32.mrb[0].mxu0
        %2407 = vmatprep.mubr.f32.mxu0 0.0
        %2408 = vmatmul.mubr.f32.gmra.mrb[0].mxu0 %v2171
        %v2409 = vpop.f32.mrb[0].mxu0
        %v2410 = vadd.f32 0.0, %v2409
        %v2411 = vpop.f32.mrb[0].mxu0
        %2412 = vmatprep.mubr.f32.mxu0 0.0
        %2413 = vmatmul.mubr.f32.gmra.mrb[0].mxu0 %v2172
        %v2414 = vpop.f32.mrb[0].mxu0
        %v2415 = vadd.f32 0.0, %v2414
        %v2416 = vpop.f32.mrb[0].mxu0
        %2417 = vmatprep.mubr.f32.mxu0 0.0
        %2418 = vmatmul.mubr.f32.gmra.mrb[0].mxu0 %v2173
        %v2419 = vpop.f32.mrb[0].mxu0
        %v2420 = vadd.f32 0.0, %v2419
        %v2421 = vpop.f32.mrb[0].mxu0
        %2422 = vmatprep.mubr.f32.mxu0 0.0
        %2423 = vmatmul.mubr.f32.gmra.mrb[0].mxu0 %v2174
        %v2424 = vpop.f32.mrb[0].mxu0
        %v2425 = vadd.f32 0.0, %v2424
        %v2426 = vpop.f32.mrb[0].mxu0
        %2427 = vmatprep.mubr.f32.mxu0 0.0
        %2428 = vmatmul.mubr.f32.gmra.mrb[0].mxu0 %v2175
        %v2429 = vpop.f32.mrb[0].mxu0
        %v2430 = vadd.f32 0.0, %v2429
        %v2431 = vpop.f32.mrb[0].mxu0
        %2432 = vmatprep.mubr.f32.mxu0 0.0
        %2433 = vmatmul.mubr.f32.gmra.mrb[0].mxu0 %v2176
        %v2434 = vpop.f32.mrb[0].mxu0
        %v2435 = vadd.f32 0.0, %v2434
        %v2436 = vpop.f32.mrb[0].mxu0
        %2437 = vmatprep.mubr.f32.mxu0 0.0
        %2438 = vmatmul.mubr.f32.gmra.mrb[0].mxu0 %v2177
        %v2439 = vpop.f32.mrb[0].mxu0
        %v2440 = vadd.f32 0.0, %v2439
        %v2441 = vpop.f32.mrb[0].mxu0
        %2442 = vmatprep.mubr.f32.mxu0 0.0
        %2443 = vmatmul.mubr.f32.gmra.mrb[0].mxu0 %v2178
        %v2444 = vpop.f32.mrb[0].mxu0
        %v2445 = vadd.f32 0.0, %v2444
        %v2446 = vpop.f32.mrb[0].mxu0
        %2447 = vmatprep.mubr.f32.mxu0 0.0
        %2448 = vmatmul.mubr.f32.gmra.mrb[0].mxu0 %v2179
        %v2449 = vpop.f32.mrb[0].mxu0
        %v2450 = vadd.f32 0.0, %v2449
        %v2451 = vpop.f32.mrb[0].mxu0
        %2452 = vdwg.mxu0
        %v2453 = vadd.f32 %v2115, %v2295
        %v2454 = vadd.f32 %v2116, %v2300
        %v2455 = vadd.f32 %v2117, %v2305
        %v2456 = vadd.f32 %v2118, %v2310
        %v2457 = vadd.f32 %v2119, %v2315
        %v2458 = vadd.f32 %v2120, %v2320
        %v2459 = vadd.f32 %v2121, %v2325
        %v2460 = vadd.f32 %v2122, %v2330
        %v2461 = vadd.f32 %v2123, %v2335
        %v2462 = vadd.f32 %v2124, %v2340
        %v2463 = vadd.f32 %v2125, %v2345
        %v2464 = vadd.f32 %v2126, %v2350
        %v2465 = vadd.f32 %v2127, %v2355
        %v2466 = vadd.f32 %v2128, %v2360
        %v2467 = vadd.f32 %v2129, %v2365
        %v2468 = vadd.f32 %v2130, %v2370
        %v2469 = vadd.f32 %v2131, %v2375
        %v2470 = vadd.f32 %v2132, %v2380
        %v2471 = vadd.f32 %v2133, %v2385
        %v2472 = vadd.f32 %v2134, %v2390
        %v2473 = vadd.f32 %v2135, %v2395
        %v2474 = vadd.f32 %v2136, %v2400
        %v2475 = vadd.f32 %v2137, %v2405
        %v2476 = vadd.f32 %v2138, %v2410
        %v2477 = vadd.f32 %v2139, %v2415
        %v2478 = vadd.f32 %v2140, %v2420
        %v2479 = vadd.f32 %v2141, %v2425
        %v2480 = vadd.f32 %v2142, %v2430
        %v2481 = vadd.f32 %v2143, %v2435
        %v2482 = vadd.f32 %v2144, %v2440
        %v2483 = vadd.f32 %v2145, %v2445
        %v2484 = vadd.f32 %v2146, %v2450
        %s2485 = scalar_lea.vmem [#allocation3], 1024
        %v2486 = vld [vmem:[%s2485] sm:$0xff]
        %v2487 = vld [vmem:[%s2485 + $0x8] sm:$0xff]
        %v2488 = vld [vmem:[%s2485 + $0x10] sm:$0xff]
        %v2489 = vld [vmem:[%s2485 + $0x18] sm:$0xff]
        %v2490 = vld [vmem:[%s2485 + $0x20] sm:$0xff]
        %v2491 = vld [vmem:[%s2485 + $0x28] sm:$0xff]
        %v2492 = vld [vmem:[%s2485 + $0x30] sm:$0xff]
        %v2493 = vld [vmem:[%s2485 + $0x38] sm:$0xff]
        %v2494 = vld [vmem:[%s2485 + $0x40] sm:$0xff]
        %v2495 = vld [vmem:[%s2485 + $0x48] sm:$0xff]
        %v2496 = vld [vmem:[%s2485 + $0x50] sm:$0xff]
        %v2497 = vld [vmem:[%s2485 + $0x58] sm:$0xff]
        %v2498 = vld [vmem:[%s2485 + $0x60] sm:$0xff]
        %v2499 = vld [vmem:[%s2485 + $0x68] sm:$0xff]
        %v2500 = vld [vmem:[%s2485 + $0x70] sm:$0xff]
        %v2501 = vld [vmem:[%s2485 + $0x78] sm:$0xff]
        %v2502 = vld [vmem:[%s2485 + $0x80] sm:$0xff]
        %v2503 = vld [vmem:[%s2485 + $0x88] sm:$0xff]
        %v2504 = vld [vmem:[%s2485 + $0x90] sm:$0xff]
        %v2505 = vld [vmem:[%s2485 + $0x98] sm:$0xff]
        %v2506 = vld [vmem:[%s2485 + $0xa0] sm:$0xff]
        %v2507 = vld [vmem:[%s2485 + $0xa8] sm:$0xff]
        %v2508 = vld [vmem:[%s2485 + $0xb0] sm:$0xff]
        %v2509 = vld [vmem:[%s2485 + $0xb8] sm:$0xff]
        %v2510 = vld [vmem:[%s2485 + $0xc0] sm:$0xff]
        %v2511 = vld [vmem:[%s2485 + $0xc8] sm:$0xff]
        %v2512 = vld [vmem:[%s2485 + $0xd0] sm:$0xff]
        %v2513 = vld [vmem:[%s2485 + $0xd8] sm:$0xff]
        %v2514 = vld [vmem:[%s2485 + $0xe0] sm:$0xff]
        %v2515 = vld [vmem:[%s2485 + $0xe8] sm:$0xff]
        %v2516 = vld [vmem:[%s2485 + $0xf0] sm:$0xff]
        %v2517 = vld [vmem:[%s2485 + $0xf8] sm:$0xff]
        %2518 = vrot.lane.b32.xlu0 %v1152, 124
        %v2519 = vpop.permute.xlu0 %2518
        %2520 = vrot.lane.b32.xlu0 %v1157, 124
        %v2521 = vpop.permute.xlu0 %2520
        %2522 = vrot.lane.b32.xlu0 %v1162, 124
        %v2523 = vpop.permute.xlu0 %2522
        %2524 = vrot.lane.b32.xlu0 %v1167, 124
        %v2525 = vpop.permute.xlu0 %2524
        %2526 = vrot.lane.b32.xlu0 %v1172, 124
        %v2527 = vpop.permute.xlu0 %2526
        %2528 = vrot.lane.b32.xlu0 %v1177, 124
        %v2529 = vpop.permute.xlu0 %2528
        %2530 = vrot.lane.b32.xlu0 %v1182, 124
        %v2531 = vpop.permute.xlu0 %2530
        %2532 = vrot.lane.b32.xlu0 %v1187, 124
        %v2533 = vpop.permute.xlu0 %2532
        %2534 = vrot.lane.b32.xlu0 %v1192, 124
        %v2535 = vpop.permute.xlu0 %2534
        %2536 = vrot.lane.b32.xlu0 %v1197, 124
        %v2537 = vpop.permute.xlu0 %2536
        %2538 = vrot.lane.b32.xlu0 %v1202, 124
        %v2539 = vpop.permute.xlu0 %2538
        %2540 = vrot.lane.b32.xlu0 %v1207, 124
        %v2541 = vpop.permute.xlu0 %2540
        %2542 = vrot.lane.b32.xlu0 %v1212, 124
        %v2543 = vpop.permute.xlu0 %2542
        %2544 = vrot.lane.b32.xlu0 %v1217, 124
        %v2545 = vpop.permute.xlu0 %2544
        %2546 = vrot.lane.b32.xlu0 %v1222, 124
        %v2547 = vpop.permute.xlu0 %2546
        %2548 = vrot.lane.b32.xlu0 %v1227, 124
        %v2549 = vpop.permute.xlu0 %2548
        %2566 = vmatprep.subr.mxu0 0.0
        %2567 = vmatpush1.msra.mxu0 %v2519
        %2568 = vmatprep.subr.mxu0 0.0
        %2569 = vmatpush1.msra.mxu0 %v2521
        %2570 = vmatprep.subr.mxu0 0.0
        %2571 = vmatpush1.msra.mxu0 %v2523
        %2572 = vmatprep.subr.mxu0 0.0
        %2573 = vmatpush1.msra.mxu0 %v2525
        %2574 = vmatprep.subr.mxu0 0.0
        %2575 = vmatpush1.msra.mxu0 %v2527
        %2576 = vmatprep.subr.mxu0 0.0
        %2577 = vmatpush1.msra.mxu0 %v2529
        %2578 = vmatprep.subr.mxu0 0.0
        %2579 = vmatpush1.msra.mxu0 %v2531
        %2580 = vmatprep.subr.mxu0 0.0
        %2581 = vmatpush1.msra.mxu0 %v2533
        %2582 = vmatprep.subr.mxu0 0.0
        %2583 = vmatpush1.msra.mxu0 %v2535
        %2584 = vmatprep.subr.mxu0 0.0
        %2585 = vmatpush1.msra.mxu0 %v2537
        %2586 = vmatprep.subr.mxu0 0.0
        %2587 = vmatpush1.msra.mxu0 %v2539
        %2588 = vmatprep.subr.mxu0 0.0
        %2589 = vmatpush1.msra.mxu0 %v2541
        %2590 = vmatprep.subr.mxu0 0.0
        %2591 = vmatpush1.msra.mxu0 %v2543
        %2592 = vmatprep.subr.mxu0 0.0
        %2593 = vmatpush1.msra.mxu0 %v2545
        %2594 = vmatprep.subr.mxu0 0.0
        %2595 = vmatpush1.msra.mxu0 %v2547
        %2596 = vmatprep.subr.mxu0 0.0
        %2597 = vmatpush1.msra.mxu0 %v2549
        %2598 = vmatprep.subr.mxu0 0.0
        %2599 = vmatpush1.msra.mxu0 0.0
        %2600 = vmatprep.subr.mxu0 0.0
        %2601 = vmatpush1.msra.mxu0 0.0
        %2602 = vmatprep.subr.mxu0 0.0
        %2603 = vmatpush1.msra.mxu0 0.0
        %2604 = vmatprep.subr.mxu0 0.0
        %2605 = vmatpush1.msra.mxu0 0.0
        %2606 = vmatprep.subr.mxu0 0.0
        %2607 = vmatpush1.msra.mxu0 0.0
        %2608 = vmatprep.subr.mxu0 0.0
        %2609 = vmatpush1.msra.mxu0 0.0
        %2610 = vmatprep.subr.mxu0 0.0
        %2611 = vmatpush1.msra.mxu0 0.0
        %2612 = vmatprep.subr.mxu0 0.0
        %2613 = vmatpush1.msra.mxu0 0.0
        %2614 = vmatprep.subr.mxu0 0.0
        %2615 = vmatpush1.msra.mxu0 0.0
        %2616 = vmatprep.subr.mxu0 0.0
        %2617 = vmatpush1.msra.mxu0 0.0
        %2618 = vmatprep.subr.mxu0 0.0
        %2619 = vmatpush1.msra.mxu0 0.0
        %2620 = vmatprep.subr.mxu0 0.0
        %2621 = vmatpush1.msra.mxu0 0.0
        %2622 = vmatprep.subr.mxu0 0.0
        %2623 = vmatpush1.msra.mxu0 0.0
        %2624 = vmatprep.subr.mxu0 0.0
        %2625 = vmatpush1.msra.mxu0 0.0
        %2626 = vmatprep.subr.mxu0 0.0
        %2627 = vmatpush1.msra.mxu0 0.0
        %2628 = vmatprep.subr.mxu0 0.0
        %2629 = vmatpush1.msra.mxu0 0.0
        %2630 = vmatprep.mubr.f32.mxu0 0.0
        %2631 = vmatmul.mubr.f32.gmra.mrb[0].mxu0 %v2486
        %v2632 = vpop.f32.mrb[0].mxu0
        %v2633 = vadd.f32 0.0, %v2632
        %v2634 = vpop.f32.mrb[0].mxu0
        %2635 = vmatprep.mubr.f32.mxu0 0.0
        %2636 = vmatmul.mubr.f32.gmra.mrb[0].mxu0 %v2487
        %v2637 = vpop.f32.mrb[0].mxu0
        %v2638 = vadd.f32 0.0, %v2637
        %v2639 = vpop.f32.mrb[0].mxu0
        %2640 = vmatprep.mubr.f32.mxu0 0.0
        %2641 = vmatmul.mubr.f32.gmra.mrb[0].mxu0 %v2488
        %v2642 = vpop.f32.mrb[0].mxu0
        %v2643 = vadd.f32 0.0, %v2642
        %v2644 = vpop.f32.mrb[0].mxu0
        %2645 = vmatprep.mubr.f32.mxu0 0.0
        %2646 = vmatmul.mubr.f32.gmra.mrb[0].mxu0 %v2489
        %v2647 = vpop.f32.mrb[0].mxu0
        %v2648 = vadd.f32 0.0, %v2647
        %v2649 = vpop.f32.mrb[0].mxu0
        %2650 = vmatprep.mubr.f32.mxu0 0.0
        %2651 = vmatmul.mubr.f32.gmra.mrb[0].mxu0 %v2490
        %v2652 = vpop.f32.mrb[0].mxu0
        %v2653 = vadd.f32 0.0, %v2652
        %v2654 = vpop.f32.mrb[0].mxu0
        %2655 = vmatprep.mubr.f32.mxu0 0.0
        %2656 = vmatmul.mubr.f32.gmra.mrb[0].mxu0 %v2491
        %v2657 = vpop.f32.mrb[0].mxu0
        %v2658 = vadd.f32 0.0, %v2657
        %v2659 = vpop.f32.mrb[0].mxu0
        %2660 = vmatprep.mubr.f32.mxu0 0.0
        %2661 = vmatmul.mubr.f32.gmra.mrb[0].mxu0 %v2492
        %v2662 = vpop.f32.mrb[0].mxu0
        %v2663 = vadd.f32 0.0, %v2662
        %v2664 = vpop.f32.mrb[0].mxu0
        %2665 = vmatprep.mubr.f32.mxu0 0.0
        %2666 = vmatmul.mubr.f32.gmra.mrb[0].mxu0 %v2493
        %v2667 = vpop.f32.mrb[0].mxu0
        %v2668 = vadd.f32 0.0, %v2667
        %v2669 = vpop.f32.mrb[0].mxu0
        %2670 = vmatprep.mubr.f32.mxu0 0.0
        %2671 = vmatmul.mubr.f32.gmra.mrb[0].mxu0 %v2494
        %v2672 = vpop.f32.mrb[0].mxu0
        %v2673 = vadd.f32 0.0, %v2672
        %v2674 = vpop.f32.mrb[0].mxu0
        %2675 = vmatprep.mubr.f32.mxu0 0.0
        %2676 = vmatmul.mubr.f32.gmra.mrb[0].mxu0 %v2495
        %v2677 = vpop.f32.mrb[0].mxu0
        %v2678 = vadd.f32 0.0, %v2677
        %v2679 = vpop.f32.mrb[0].mxu0
        %2680 = vmatprep.mubr.f32.mxu0 0.0
        %2681 = vmatmul.mubr.f32.gmra.mrb[0].mxu0 %v2496
        %v2682 = vpop.f32.mrb[0].mxu0
        %v2683 = vadd.f32 0.0, %v2682
        %v2684 = vpop.f32.mrb[0].mxu0
        %2685 = vmatprep.mubr.f32.mxu0 0.0
        %2686 = vmatmul.mubr.f32.gmra.mrb[0].mxu0 %v2497
        %v2687 = vpop.f32.mrb[0].mxu0
        %v2688 = vadd.f32 0.0, %v2687
        %v2689 = vpop.f32.mrb[0].mxu0
        %2690 = vmatprep.mubr.f32.mxu0 0.0
        %2691 = vmatmul.mubr.f32.gmra.mrb[0].mxu0 %v2498
        %v2692 = vpop.f32.mrb[0].mxu0
        %v2693 = vadd.f32 0.0, %v2692
        %v2694 = vpop.f32.mrb[0].mxu0
        %2695 = vmatprep.mubr.f32.mxu0 0.0
        %2696 = vmatmul.mubr.f32.gmra.mrb[0].mxu0 %v2499
        %v2697 = vpop.f32.mrb[0].mxu0
        %v2698 = vadd.f32 0.0, %v2697
        %v2699 = vpop.f32.mrb[0].mxu0
        %2700 = vmatprep.mubr.f32.mxu0 0.0
        %2701 = vmatmul.mubr.f32.gmra.mrb[0].mxu0 %v2500
        %v2702 = vpop.f32.mrb[0].mxu0
        %v2703 = vadd.f32 0.0, %v2702
        %v2704 = vpop.f32.mrb[0].mxu0
        %2705 = vmatprep.mubr.f32.mxu0 0.0
        %2706 = vmatmul.mubr.f32.gmra.mrb[0].mxu0 %v2501
        %v2707 = vpop.f32.mrb[0].mxu0
        %v2708 = vadd.f32 0.0, %v2707
        %v2709 = vpop.f32.mrb[0].mxu0
        %2710 = vmatprep.mubr.f32.mxu0 0.0
        %2711 = vmatmul.mubr.f32.gmra.mrb[0].mxu0 %v2502
        %v2712 = vpop.f32.mrb[0].mxu0
        %v2713 = vadd.f32 0.0, %v2712
        %v2714 = vpop.f32.mrb[0].mxu0
        %2715 = vmatprep.mubr.f32.mxu0 0.0
        %2716 = vmatmul.mubr.f32.gmra.mrb[0].mxu0 %v2503
        %v2717 = vpop.f32.mrb[0].mxu0
        %v2718 = vadd.f32 0.0, %v2717
        %v2719 = vpop.f32.mrb[0].mxu0
        %2720 = vmatprep.mubr.f32.mxu0 0.0
        %2721 = vmatmul.mubr.f32.gmra.mrb[0].mxu0 %v2504
        %v2722 = vpop.f32.mrb[0].mxu0
        %v2723 = vadd.f32 0.0, %v2722
        %v2724 = vpop.f32.mrb[0].mxu0
        %2725 = vmatprep.mubr.f32.mxu0 0.0
        %2726 = vmatmul.mubr.f32.gmra.mrb[0].mxu0 %v2505
        %v2727 = vpop.f32.mrb[0].mxu0
        %v2728 = vadd.f32 0.0, %v2727
        %v2729 = vpop.f32.mrb[0].mxu0
        %2730 = vmatprep.mubr.f32.mxu0 0.0
        %2731 = vmatmul.mubr.f32.gmra.mrb[0].mxu0 %v2506
        %v2732 = vpop.f32.mrb[0].mxu0
        %v2733 = vadd.f32 0.0, %v2732
        %v2734 = vpop.f32.mrb[0].mxu0
        %2735 = vmatprep.mubr.f32.mxu0 0.0
        %2736 = vmatmul.mubr.f32.gmra.mrb[0].mxu0 %v2507
        %v2737 = vpop.f32.mrb[0].mxu0
        %v2738 = vadd.f32 0.0, %v2737
        %v2739 = vpop.f32.mrb[0].mxu0
        %2740 = vmatprep.mubr.f32.mxu0 0.0
        %2741 = vmatmul.mubr.f32.gmra.mrb[0].mxu0 %v2508
        %v2742 = vpop.f32.mrb[0].mxu0
        %v2743 = vadd.f32 0.0, %v2742
        %v2744 = vpop.f32.mrb[0].mxu0
        %2745 = vmatprep.mubr.f32.mxu0 0.0
        %2746 = vmatmul.mubr.f32.gmra.mrb[0].mxu0 %v2509
        %v2747 = vpop.f32.mrb[0].mxu0
        %v2748 = vadd.f32 0.0, %v2747
        %v2749 = vpop.f32.mrb[0].mxu0
        %2750 = vmatprep.mubr.f32.mxu0 0.0
        %2751 = vmatmul.mubr.f32.gmra.mrb[0].mxu0 %v2510
        %v2752 = vpop.f32.mrb[0].mxu0
        %v2753 = vadd.f32 0.0, %v2752
        %v2754 = vpop.f32.mrb[0].mxu0
        %2755 = vmatprep.mubr.f32.mxu0 0.0
        %2756 = vmatmul.mubr.f32.gmra.mrb[0].mxu0 %v2511
        %v2757 = vpop.f32.mrb[0].mxu0
        %v2758 = vadd.f32 0.0, %v2757
        %v2759 = vpop.f32.mrb[0].mxu0
        %2760 = vmatprep.mubr.f32.mxu0 0.0
        %2761 = vmatmul.mubr.f32.gmra.mrb[0].mxu0 %v2512
        %v2762 = vpop.f32.mrb[0].mxu0
        %v2763 = vadd.f32 0.0, %v2762
        %v2764 = vpop.f32.mrb[0].mxu0
        %2765 = vmatprep.mubr.f32.mxu0 0.0
        %2766 = vmatmul.mubr.f32.gmra.mrb[0].mxu0 %v2513
        %v2767 = vpop.f32.mrb[0].mxu0
        %v2768 = vadd.f32 0.0, %v2767
        %v2769 = vpop.f32.mrb[0].mxu0
        %2770 = vmatprep.mubr.f32.mxu0 0.0
        %2771 = vmatmul.mubr.f32.gmra.mrb[0].mxu0 %v2514
        %v2772 = vpop.f32.mrb[0].mxu0
        %v2773 = vadd.f32 0.0, %v2772
        %v2774 = vpop.f32.mrb[0].mxu0
        %2775 = vmatprep.mubr.f32.mxu0 0.0
        %2776 = vmatmul.mubr.f32.gmra.mrb[0].mxu0 %v2515
        %v2777 = vpop.f32.mrb[0].mxu0
        %v2778 = vadd.f32 0.0, %v2777
        %v2779 = vpop.f32.mrb[0].mxu0
        %2780 = vmatprep.mubr.f32.mxu0 0.0
        %2781 = vmatmul.mubr.f32.gmra.mrb[0].mxu0 %v2516
        %v2782 = vpop.f32.mrb[0].mxu0
        %v2783 = vadd.f32 0.0, %v2782
        %v2784 = vpop.f32.mrb[0].mxu0
        %2785 = vmatprep.mubr.f32.mxu0 0.0
        %2786 = vmatmul.mubr.f32.gmra.mrb[0].mxu0 %v2517
        %v2787 = vpop.f32.mrb[0].mxu0
        %v2788 = vadd.f32 0.0, %v2787
        %v2789 = vpop.f32.mrb[0].mxu0
        %2790 = vdwg.mxu0
        %v2791 = vadd.f32 %v2453, %v2633
        %v2792 = vadd.f32 %v2454, %v2638
        %v2793 = vadd.f32 %v2455, %v2643
        %v2794 = vadd.f32 %v2456, %v2648
        %v2795 = vadd.f32 %v2457, %v2653
        %v2796 = vadd.f32 %v2458, %v2658
        %v2797 = vadd.f32 %v2459, %v2663
        %v2798 = vadd.f32 %v2460, %v2668
        %v2799 = vadd.f32 %v2461, %v2673
        %v2800 = vadd.f32 %v2462, %v2678
        %v2801 = vadd.f32 %v2463, %v2683
        %v2802 = vadd.f32 %v2464, %v2688
        %v2803 = vadd.f32 %v2465, %v2693
        %v2804 = vadd.f32 %v2466, %v2698
        %v2805 = vadd.f32 %v2467, %v2703
        %v2806 = vadd.f32 %v2468, %v2708
        %v2807 = vadd.f32 %v2469, %v2713
        %v2808 = vadd.f32 %v2470, %v2718
        %v2809 = vadd.f32 %v2471, %v2723
        %v2810 = vadd.f32 %v2472, %v2728
        %v2811 = vadd.f32 %v2473, %v2733
        %v2812 = vadd.f32 %v2474, %v2738
        %v2813 = vadd.f32 %v2475, %v2743
        %v2814 = vadd.f32 %v2476, %v2748
        %v2815 = vadd.f32 %v2477, %v2753
        %v2816 = vadd.f32 %v2478, %v2758
        %v2817 = vadd.f32 %v2479, %v2763
        %v2818 = vadd.f32 %v2480, %v2768
        %v2819 = vadd.f32 %v2481, %v2773
        %v2820 = vadd.f32 %v2482, %v2778
        %v2821 = vadd.f32 %v2483, %v2783
        %v2822 = vadd.f32 %v2484, %v2788
        %v2823 = vld [vmem:[%s4] sm:$0xff]
        %v2824 = vld [vmem:[%s4 + $0x8] sm:$0xff]
        %v2825 = vld [vmem:[%s4 + $0x10] sm:$0xff]
        %v2826 = vld [vmem:[%s4 + $0x18] sm:$0xff]
        %v2827 = vld [vmem:[%s4 + $0x20] sm:$0xff]
        %v2828 = vld [vmem:[%s4 + $0x28] sm:$0xff]
        %v2829 = vld [vmem:[%s4 + $0x30] sm:$0xff]
        %v2830 = vld [vmem:[%s4 + $0x38] sm:$0xff]
        %v2831 = vld [vmem:[%s4 + $0x40] sm:$0xff]
        %v2832 = vld [vmem:[%s4 + $0x48] sm:$0xff]
        %v2833 = vld [vmem:[%s4 + $0x50] sm:$0xff]
        %v2834 = vld [vmem:[%s4 + $0x58] sm:$0xff]
        %v2835 = vld [vmem:[%s4 + $0x60] sm:$0xff]
        %v2836 = vld [vmem:[%s4 + $0x68] sm:$0xff]
        %v2837 = vld [vmem:[%s4 + $0x70] sm:$0xff]
        %v2838 = vld [vmem:[%s4 + $0x78] sm:$0xff]
        %v2839 = vld [vmem:[%s4 + $0x80] sm:$0xff]
        %v2840 = vld [vmem:[%s4 + $0x88] sm:$0xff]
        %v2841 = vld [vmem:[%s4 + $0x90] sm:$0xff]
        %v2842 = vld [vmem:[%s4 + $0x98] sm:$0xff]
        %v2843 = vld [vmem:[%s4 + $0xa0] sm:$0xff]
        %v2844 = vld [vmem:[%s4 + $0xa8] sm:$0xff]
        %v2845 = vld [vmem:[%s4 + $0xb0] sm:$0xff]
        %v2846 = vld [vmem:[%s4 + $0xb8] sm:$0xff]
        %v2847 = vld [vmem:[%s4 + $0xc0] sm:$0xff]
        %v2848 = vld [vmem:[%s4 + $0xc8] sm:$0xff]
        %v2849 = vld [vmem:[%s4 + $0xd0] sm:$0xff]
        %v2850 = vld [vmem:[%s4 + $0xd8] sm:$0xff]
        %v2851 = vld [vmem:[%s4 + $0xe0] sm:$0xff]
        %v2852 = vld [vmem:[%s4 + $0xe8] sm:$0xff]
        %v2853 = vld [vmem:[%s4 + $0xf0] sm:$0xff]
        %v2854 = vld [vmem:[%s4 + $0xf8] sm:$0xff]
        %2856 = vset.pattern.permute.xlu0 0
        %2857 = vperm.xlu0 %2856, %v2823
        %v2858 = vpop.permute.xlu0 %2857
        %2861 = vset.pattern.permute.xlu0 0
        %2862 = vperm.xlu0 %2861, %v2824
        %v2863 = vpop.permute.xlu0 %2862
        %2866 = vset.pattern.permute.xlu0 0
        %2867 = vperm.xlu0 %2866, %v2825
        %v2868 = vpop.permute.xlu0 %2867
        %2871 = vset.pattern.permute.xlu0 0
        %2872 = vperm.xlu0 %2871, %v2826
        %v2873 = vpop.permute.xlu0 %2872
        %2876 = vset.pattern.permute.xlu0 0
        %2877 = vperm.xlu0 %2876, %v2827
        %v2878 = vpop.permute.xlu0 %2877
        %2881 = vset.pattern.permute.xlu0 0
        %2882 = vperm.xlu0 %2881, %v2828
        %v2883 = vpop.permute.xlu0 %2882
        %2886 = vset.pattern.permute.xlu0 0
        %2887 = vperm.xlu0 %2886, %v2829
        %v2888 = vpop.permute.xlu0 %2887
        %2891 = vset.pattern.permute.xlu0 0
        %2892 = vperm.xlu0 %2891, %v2830
        %v2893 = vpop.permute.xlu0 %2892
        %2896 = vset.pattern.permute.xlu0 0
        %2897 = vperm.xlu0 %2896, %v2831
        %v2898 = vpop.permute.xlu0 %2897
        %2901 = vset.pattern.permute.xlu0 0
        %2902 = vperm.xlu0 %2901, %v2832
        %v2903 = vpop.permute.xlu0 %2902
        %2906 = vset.pattern.permute.xlu0 0
        %2907 = vperm.xlu0 %2906, %v2833
        %v2908 = vpop.permute.xlu0 %2907
        %2911 = vset.pattern.permute.xlu0 0
        %2912 = vperm.xlu0 %2911, %v2834
        %v2913 = vpop.permute.xlu0 %2912
        %2916 = vset.pattern.permute.xlu0 0
        %2917 = vperm.xlu0 %2916, %v2835
        %v2918 = vpop.permute.xlu0 %2917
        %2921 = vset.pattern.permute.xlu0 0
        %2922 = vperm.xlu0 %2921, %v2836
        %v2923 = vpop.permute.xlu0 %2922
        %2926 = vset.pattern.permute.xlu0 0
        %2927 = vperm.xlu0 %2926, %v2837
        %v2928 = vpop.permute.xlu0 %2927
        %2931 = vset.pattern.permute.xlu0 0
        %2932 = vperm.xlu0 %2931, %v2838
        %v2933 = vpop.permute.xlu0 %2932
        %2936 = vset.pattern.permute.xlu0 0
        %2937 = vperm.xlu0 %2936, %v2839
        %v2938 = vpop.permute.xlu0 %2937
        %2941 = vset.pattern.permute.xlu0 0
        %2942 = vperm.xlu0 %2941, %v2840
        %v2943 = vpop.permute.xlu0 %2942
        %2946 = vset.pattern.permute.xlu0 0
        %2947 = vperm.xlu0 %2946, %v2841
        %v2948 = vpop.permute.xlu0 %2947
        %2951 = vset.pattern.permute.xlu0 0
        %2952 = vperm.xlu0 %2951, %v2842
        %v2953 = vpop.permute.xlu0 %2952
        %2956 = vset.pattern.permute.xlu0 0
        %2957 = vperm.xlu0 %2956, %v2843
        %v2958 = vpop.permute.xlu0 %2957
        %2961 = vset.pattern.permute.xlu0 0
        %2962 = vperm.xlu0 %2961, %v2844
        %v2963 = vpop.permute.xlu0 %2962
        %2966 = vset.pattern.permute.xlu0 0
        %2967 = vperm.xlu0 %2966, %v2845
        %v2968 = vpop.permute.xlu0 %2967
        %2971 = vset.pattern.permute.xlu0 0
        %2972 = vperm.xlu0 %2971, %v2846
        %v2973 = vpop.permute.xlu0 %2972
        %2976 = vset.pattern.permute.xlu0 0
        %2977 = vperm.xlu0 %2976, %v2847
        %v2978 = vpop.permute.xlu0 %2977
        %2981 = vset.pattern.permute.xlu0 0
        %2982 = vperm.xlu0 %2981, %v2848
        %v2983 = vpop.permute.xlu0 %2982
        %2986 = vset.pattern.permute.xlu0 0
        %2987 = vperm.xlu0 %2986, %v2849
        %v2988 = vpop.permute.xlu0 %2987
        %2991 = vset.pattern.permute.xlu0 0
        %2992 = vperm.xlu0 %2991, %v2850
        %v2993 = vpop.permute.xlu0 %2992
        %2996 = vset.pattern.permute.xlu0 0
        %2997 = vperm.xlu0 %2996, %v2851
        %v2998 = vpop.permute.xlu0 %2997
        %3001 = vset.pattern.permute.xlu0 0
        %3002 = vperm.xlu0 %3001, %v2852
        %v3003 = vpop.permute.xlu0 %3002
        %3006 = vset.pattern.permute.xlu0 0
        %3007 = vperm.xlu0 %3006, %v2853
        %v3008 = vpop.permute.xlu0 %3007
        %3011 = vset.pattern.permute.xlu0 0
        %3012 = vperm.xlu0 %3011, %v2854
        %v3013 = vpop.permute.xlu0 %3012
        %v3015 = vadd.f32 %v2791, %v2858
        %v3016 = vadd.f32 %v2792, %v2863
        %v3017 = vadd.f32 %v2793, %v2868
        %v3018 = vadd.f32 %v2794, %v2873
        %v3019 = vadd.f32 %v2795, %v2878
        %v3020 = vadd.f32 %v2796, %v2883
        %v3021 = vadd.f32 %v2797, %v2888
        %v3022 = vadd.f32 %v2798, %v2893
        %v3023 = vadd.f32 %v2799, %v2898
        %v3024 = vadd.f32 %v2800, %v2903
        %v3025 = vadd.f32 %v2801, %v2908
        %v3026 = vadd.f32 %v2802, %v2913
        %v3027 = vadd.f32 %v2803, %v2918
        %v3028 = vadd.f32 %v2804, %v2923
        %v3029 = vadd.f32 %v2805, %v2928
        %v3030 = vadd.f32 %v2806, %v2933
        %v3031 = vadd.f32 %v2807, %v2938
        %v3032 = vadd.f32 %v2808, %v2943
        %v3033 = vadd.f32 %v2809, %v2948
        %v3034 = vadd.f32 %v2810, %v2953
        %v3035 = vadd.f32 %v2811, %v2958
        %v3036 = vadd.f32 %v2812, %v2963
        %v3037 = vadd.f32 %v2813, %v2968
        %v3038 = vadd.f32 %v2814, %v2973
        %v3039 = vadd.f32 %v2815, %v2978
        %v3040 = vadd.f32 %v2816, %v2983
        %v3041 = vadd.f32 %v2817, %v2988
        %v3042 = vadd.f32 %v2818, %v2993
        %v3043 = vadd.f32 %v2819, %v2998
        %v3044 = vadd.f32 %v2820, %v3003
        %v3045 = vadd.f32 %v2821, %v3008
        %v3046 = vadd.f32 %v2822, %v3013
        %v3047 = vmax.f32 %v3015, 0.0
        %v3048 = vmax.f32 %v3016, 0.0
        %v3049 = vmax.f32 %v3017, 0.0
        %v3050 = vmax.f32 %v3018, 0.0
        %v3051 = vmax.f32 %v3019, 0.0
        %v3052 = vmax.f32 %v3020, 0.0
        %v3053 = vmax.f32 %v3021, 0.0
        %v3054 = vmax.f32 %v3022, 0.0
        %v3055 = vmax.f32 %v3023, 0.0
        %v3056 = vmax.f32 %v3024, 0.0
        %v3057 = vmax.f32 %v3025, 0.0
        %v3058 = vmax.f32 %v3026, 0.0
        %v3059 = vmax.f32 %v3027, 0.0
        %v3060 = vmax.f32 %v3028, 0.0
        %v3061 = vmax.f32 %v3029, 0.0
        %v3062 = vmax.f32 %v3030, 0.0
        %v3063 = vmax.f32 %v3031, 0.0
        %v3064 = vmax.f32 %v3032, 0.0
        %v3065 = vmax.f32 %v3033, 0.0
        %v3066 = vmax.f32 %v3034, 0.0
        %v3067 = vmax.f32 %v3035, 0.0
        %v3068 = vmax.f32 %v3036, 0.0
        %v3069 = vmax.f32 %v3037, 0.0
        %v3070 = vmax.f32 %v3038, 0.0
        %v3071 = vmax.f32 %v3039, 0.0
        %v3072 = vmax.f32 %v3040, 0.0
        %v3073 = vmax.f32 %v3041, 0.0
        %v3074 = vmax.f32 %v3042, 0.0
        %v3075 = vmax.f32 %v3043, 0.0
        %v3076 = vmax.f32 %v3044, 0.0
        %v3077 = vmax.f32 %v3045, 0.0
        %v3078 = vmax.f32 %v3046, 0.0
        %3111 = vrot.lane.b32.xlu0 %v3047, 127
        %v3112 = vpop.permute.xlu0 %3111
        %3113 = vrot.lane.b32.xlu0 %v3048, 127
        %v3114 = vpop.permute.xlu0 %3113
        %3115 = vrot.lane.b32.xlu0 %v3049, 127
        %v3116 = vpop.permute.xlu0 %3115
        %3117 = vrot.lane.b32.xlu0 %v3050, 127
        %v3118 = vpop.permute.xlu0 %3117
        %3119 = vrot.lane.b32.xlu0 %v3051, 127
        %v3120 = vpop.permute.xlu0 %3119
        %3121 = vrot.lane.b32.xlu0 %v3052, 127
        %v3122 = vpop.permute.xlu0 %3121
        %3123 = vrot.lane.b32.xlu0 %v3053, 127
        %v3124 = vpop.permute.xlu0 %3123
        %3125 = vrot.lane.b32.xlu0 %v3054, 127
        %v3126 = vpop.permute.xlu0 %3125
        %3127 = vrot.lane.b32.xlu0 %v3055, 127
        %v3128 = vpop.permute.xlu0 %3127
        %3129 = vrot.lane.b32.xlu0 %v3056, 127
        %v3130 = vpop.permute.xlu0 %3129
        %3131 = vrot.lane.b32.xlu0 %v3057, 127
        %v3132 = vpop.permute.xlu0 %3131
        %3133 = vrot.lane.b32.xlu0 %v3058, 127
        %v3134 = vpop.permute.xlu0 %3133
        %3135 = vrot.lane.b32.xlu0 %v3059, 127
        %v3136 = vpop.permute.xlu0 %3135
        %3137 = vrot.lane.b32.xlu0 %v3060, 127
        %v3138 = vpop.permute.xlu0 %3137
        %3139 = vrot.lane.b32.xlu0 %v3061, 127
        %v3140 = vpop.permute.xlu0 %3139
        %3141 = vrot.lane.b32.xlu0 %v3062, 127
        %v3142 = vpop.permute.xlu0 %3141
        %3143 = vrot.lane.b32.xlu0 %v3063, 127
        %v3144 = vpop.permute.xlu0 %3143
        %3145 = vrot.lane.b32.xlu0 %v3064, 127
        %v3146 = vpop.permute.xlu0 %3145
        %3147 = vrot.lane.b32.xlu0 %v3065, 127
        %v3148 = vpop.permute.xlu0 %3147
        %3149 = vrot.lane.b32.xlu0 %v3066, 127
        %v3150 = vpop.permute.xlu0 %3149
        %3151 = vrot.lane.b32.xlu0 %v3067, 127
        %v3152 = vpop.permute.xlu0 %3151
        %3153 = vrot.lane.b32.xlu0 %v3068, 127
        %v3154 = vpop.permute.xlu0 %3153
        %3155 = vrot.lane.b32.xlu0 %v3069, 127
        %v3156 = vpop.permute.xlu0 %3155
        %3157 = vrot.lane.b32.xlu0 %v3070, 127
        %v3158 = vpop.permute.xlu0 %3157
        %3159 = vrot.lane.b32.xlu0 %v3071, 127
        %v3160 = vpop.permute.xlu0 %3159
        %3161 = vrot.lane.b32.xlu0 %v3072, 127
        %v3162 = vpop.permute.xlu0 %3161
        %3163 = vrot.lane.b32.xlu0 %v3073, 127
        %v3164 = vpop.permute.xlu0 %3163
        %3165 = vrot.lane.b32.xlu0 %v3074, 127
        %v3166 = vpop.permute.xlu0 %3165
        %3167 = vrot.lane.b32.xlu0 %v3075, 127
        %v3168 = vpop.permute.xlu0 %3167
        %3169 = vrot.lane.b32.xlu0 %v3076, 127
        %v3170 = vpop.permute.xlu0 %3169
        %3171 = vrot.lane.b32.xlu0 %v3077, 127
        %v3172 = vpop.permute.xlu0 %3171
        %3173 = vrot.lane.b32.xlu0 %v3078, 127
        %v3174 = vpop.permute.xlu0 %3173
        %v3207 = vmax.f32 %v3047, %v3112
        %v3208 = vmax.f32 %v3048, %v3114
        %v3209 = vmax.f32 %v3049, %v3116
        %v3210 = vmax.f32 %v3050, %v3118
        %v3211 = vmax.f32 %v3051, %v3120
        %v3212 = vmax.f32 %v3052, %v3122
        %v3213 = vmax.f32 %v3053, %v3124
        %v3214 = vmax.f32 %v3054, %v3126
        %v3215 = vmax.f32 %v3055, %v3128
        %v3216 = vmax.f32 %v3056, %v3130
        %v3217 = vmax.f32 %v3057, %v3132
        %v3218 = vmax.f32 %v3058, %v3134
        %v3219 = vmax.f32 %v3059, %v3136
        %v3220 = vmax.f32 %v3060, %v3138
        %v3221 = vmax.f32 %v3061, %v3140
        %v3222 = vmax.f32 %v3062, %v3142
        %v3223 = vmax.f32 %v3063, %v3144
        %v3224 = vmax.f32 %v3064, %v3146
        %v3225 = vmax.f32 %v3065, %v3148
        %v3226 = vmax.f32 %v3066, %v3150
        %v3227 = vmax.f32 %v3067, %v3152
        %v3228 = vmax.f32 %v3068, %v3154
        %v3229 = vmax.f32 %v3069, %v3156
        %v3230 = vmax.f32 %v3070, %v3158
        %v3231 = vmax.f32 %v3071, %v3160
        %v3232 = vmax.f32 %v3072, %v3162
        %v3233 = vmax.f32 %v3073, %v3164
        %v3234 = vmax.f32 %v3074, %v3166
        %v3235 = vmax.f32 %v3075, %v3168
        %v3236 = vmax.f32 %v3076, %v3170
        %v3237 = vmax.f32 %v3077, %v3172
        %v3238 = vmax.f32 %v3078, %v3174
        %3239 = vrot.lane.b32.xlu0 %v3047, 126
        %v3240 = vpop.permute.xlu0 %3239
        %3241 = vrot.lane.b32.xlu0 %v3048, 126
        %v3242 = vpop.permute.xlu0 %3241
        %3243 = vrot.lane.b32.xlu0 %v3049, 126
        %v3244 = vpop.permute.xlu0 %3243
        %3245 = vrot.lane.b32.xlu0 %v3050, 126
        %v3246 = vpop.permute.xlu0 %3245
        %3247 = vrot.lane.b32.xlu0 %v3051, 126
        %v3248 = vpop.permute.xlu0 %3247
        %3249 = vrot.lane.b32.xlu0 %v3052, 126
        %v3250 = vpop.permute.xlu0 %3249
        %3251 = vrot.lane.b32.xlu0 %v3053, 126
        %v3252 = vpop.permute.xlu0 %3251
        %3253 = vrot.lane.b32.xlu0 %v3054, 126
        %v3254 = vpop.permute.xlu0 %3253
        %3255 = vrot.lane.b32.xlu0 %v3055, 126
        %v3256 = vpop.permute.xlu0 %3255
        %3257 = vrot.lane.b32.xlu0 %v3056, 126
        %v3258 = vpop.permute.xlu0 %3257
        %3259 = vrot.lane.b32.xlu0 %v3057, 126
        %v3260 = vpop.permute.xlu0 %3259
        %3261 = vrot.lane.b32.xlu0 %v3058, 126
        %v3262 = vpop.permute.xlu0 %3261
        %3263 = vrot.lane.b32.xlu0 %v3059, 126
        %v3264 = vpop.permute.xlu0 %3263
        %3265 = vrot.lane.b32.xlu0 %v3060, 126
        %v3266 = vpop.permute.xlu0 %3265
        %3267 = vrot.lane.b32.xlu0 %v3061, 126
        %v3268 = vpop.permute.xlu0 %3267
        %3269 = vrot.lane.b32.xlu0 %v3062, 126
        %v3270 = vpop.permute.xlu0 %3269
        %3271 = vrot.lane.b32.xlu0 %v3063, 126
        %v3272 = vpop.permute.xlu0 %3271
        %3273 = vrot.lane.b32.xlu0 %v3064, 126
        %v3274 = vpop.permute.xlu0 %3273
        %3275 = vrot.lane.b32.xlu0 %v3065, 126
        %v3276 = vpop.permute.xlu0 %3275
        %3277 = vrot.lane.b32.xlu0 %v3066, 126
        %v3278 = vpop.permute.xlu0 %3277
        %3279 = vrot.lane.b32.xlu0 %v3067, 126
        %v3280 = vpop.permute.xlu0 %3279
        %3281 = vrot.lane.b32.xlu0 %v3068, 126
        %v3282 = vpop.permute.xlu0 %3281
        %3283 = vrot.lane.b32.xlu0 %v3069, 126
        %v3284 = vpop.permute.xlu0 %3283
        %3285 = vrot.lane.b32.xlu0 %v3070, 126
        %v3286 = vpop.permute.xlu0 %3285
        %3287 = vrot.lane.b32.xlu0 %v3071, 126
        %v3288 = vpop.permute.xlu0 %3287
        %3289 = vrot.lane.b32.xlu0 %v3072, 126
        %v3290 = vpop.permute.xlu0 %3289
        %3291 = vrot.lane.b32.xlu0 %v3073, 126
        %v3292 = vpop.permute.xlu0 %3291
        %3293 = vrot.lane.b32.xlu0 %v3074, 126
        %v3294 = vpop.permute.xlu0 %3293
        %3295 = vrot.lane.b32.xlu0 %v3075, 126
        %v3296 = vpop.permute.xlu0 %3295
        %3297 = vrot.lane.b32.xlu0 %v3076, 126
        %v3298 = vpop.permute.xlu0 %3297
        %3299 = vrot.lane.b32.xlu0 %v3077, 126
        %v3300 = vpop.permute.xlu0 %3299
        %3301 = vrot.lane.b32.xlu0 %v3078, 126
        %v3302 = vpop.permute.xlu0 %3301
        %v3335 = vmax.f32 %v3207, %v3240
        %v3336 = vmax.f32 %v3208, %v3242
        %v3337 = vmax.f32 %v3209, %v3244
        %v3338 = vmax.f32 %v3210, %v3246
        %v3339 = vmax.f32 %v3211, %v3248
        %v3340 = vmax.f32 %v3212, %v3250
        %v3341 = vmax.f32 %v3213, %v3252
        %v3342 = vmax.f32 %v3214, %v3254
        %v3343 = vmax.f32 %v3215, %v3256
        %v3344 = vmax.f32 %v3216, %v3258
        %v3345 = vmax.f32 %v3217, %v3260
        %v3346 = vmax.f32 %v3218, %v3262
        %v3347 = vmax.f32 %v3219, %v3264
        %v3348 = vmax.f32 %v3220, %v3266
        %v3349 = vmax.f32 %v3221, %v3268
        %v3350 = vmax.f32 %v3222, %v3270
        %v3351 = vmax.f32 %v3223, %v3272
        %v3352 = vmax.f32 %v3224, %v3274
        %v3353 = vmax.f32 %v3225, %v3276
        %v3354 = vmax.f32 %v3226, %v3278
        %v3355 = vmax.f32 %v3227, %v3280
        %v3356 = vmax.f32 %v3228, %v3282
        %v3357 = vmax.f32 %v3229, %v3284
        %v3358 = vmax.f32 %v3230, %v3286
        %v3359 = vmax.f32 %v3231, %v3288
        %v3360 = vmax.f32 %v3232, %v3290
        %v3361 = vmax.f32 %v3233, %v3292
        %v3362 = vmax.f32 %v3234, %v3294
        %v3363 = vmax.f32 %v3235, %v3296
        %v3364 = vmax.f32 %v3236, %v3298
        %v3365 = vmax.f32 %v3237, %v3300
        %v3366 = vmax.f32 %v3238, %v3302
        %vm3367 = vcmask 277504
        %v3369 = vsel %vm3367, %v3335, 0
        %v3372 = vsel %vm3367, %v3336, 0
        %v3375 = vsel %vm3367, %v3337, 0
        %v3378 = vsel %vm3367, %v3338, 0
        %v3381 = vsel %vm3367, %v3339, 0
        %v3384 = vsel %vm3367, %v3340, 0
        %v3387 = vsel %vm3367, %v3341, 0
        %v3390 = vsel %vm3367, %v3342, 0
        %v3393 = vsel %vm3367, %v3343, 0
        %v3396 = vsel %vm3367, %v3344, 0
        %v3399 = vsel %vm3367, %v3345, 0
        %v3402 = vsel %vm3367, %v3346, 0
        %v3405 = vsel %vm3367, %v3347, 0
        %v3408 = vsel %vm3367, %v3348, 0
        %v3411 = vsel %vm3367, %v3349, 0
        %v3414 = vsel %vm3367, %v3350, 0
        %v3417 = vsel %vm3367, %v3351, 0
        %v3420 = vsel %vm3367, %v3352, 0
        %v3423 = vsel %vm3367, %v3353, 0
        %v3426 = vsel %vm3367, %v3354, 0
        %v3429 = vsel %vm3367, %v3355, 0
        %v3432 = vsel %vm3367, %v3356, 0
        %v3435 = vsel %vm3367, %v3357, 0
        %v3438 = vsel %vm3367, %v3358, 0
        %v3441 = vsel %vm3367, %v3359, 0
        %v3444 = vsel %vm3367, %v3360, 0
        %v3447 = vsel %vm3367, %v3361, 0
        %v3450 = vsel %vm3367, %v3362, 0
        %v3453 = vsel %vm3367, %v3363, 0
        %v3456 = vsel %vm3367, %v3364, 0
        %v3459 = vsel %vm3367, %v3365, 0
        %v3462 = vsel %vm3367, %v3366, 0
        %vm3464 = vcmask 1041408
        %v3466 = vsel %vm3464, %v1025, 0
        %3468 = vmatprep.subr.mxu0 0.0
        %3469 = vmatpush1.msra.mxu0 %v1021
        %3470 = vmatprep.subr.mxu0 0.0
        %3471 = vmatpush1.msra.mxu0 %v1022
        %3472 = vmatprep.subr.mxu0 0.0
        %3473 = vmatpush1.msra.mxu0 %v1023
        %3474 = vmatprep.subr.mxu0 0.0
        %3475 = vmatpush1.msra.mxu0 %v1024
        %3476 = vmatprep.subr.mxu0 0.0
        %3477 = vmatpush1.msra.mxu0 %v3466
        %3478 = vmatprep.subr.mxu0 0.0
        %3479 = vmatpush1.msra.mxu0 0.0
        %3480 = vmatprep.subr.mxu0 0.0
        %3481 = vmatpush1.msra.mxu0 0.0
        %3482 = vmatprep.subr.mxu0 0.0
        %3483 = vmatpush1.msra.mxu0 0.0
        %3484 = vmatprep.subr.mxu0 0.0
        %3485 = vmatpush1.msra.mxu0 0.0
        %3486 = vmatprep.subr.mxu0 0.0
        %3487 = vmatpush1.msra.mxu0 0.0
        %3488 = vmatprep.subr.mxu0 0.0
        %3489 = vmatpush1.msra.mxu0 0.0
        %3490 = vmatprep.subr.mxu0 0.0
        %3491 = vmatpush1.msra.mxu0 0.0
        %3492 = vmatprep.subr.mxu0 0.0
        %3493 = vmatpush1.msra.mxu0 0.0
        %3494 = vmatprep.subr.mxu0 0.0
        %3495 = vmatpush1.msra.mxu0 0.0
        %3496 = vmatprep.subr.mxu0 0.0
        %3497 = vmatpush1.msra.mxu0 0.0
        %3498 = vmatprep.subr.mxu0 0.0
        %3499 = vmatpush1.msra.mxu0 0.0
        %3500 = vmatprep.subr.mxu0 0.0
        %3501 = vmatpush1.msra.mxu0 0.0
        %3502 = vmatprep.subr.mxu0 0.0
        %3503 = vmatpush1.msra.mxu0 0.0
        %3504 = vmatprep.subr.mxu0 0.0
        %3505 = vmatpush1.msra.mxu0 0.0
        %3506 = vmatprep.subr.mxu0 0.0
        %3507 = vmatpush1.msra.mxu0 0.0
        %3508 = vmatprep.subr.mxu0 0.0
        %3509 = vmatpush1.msra.mxu0 0.0
        %3510 = vmatprep.subr.mxu0 0.0
        %3511 = vmatpush1.msra.mxu0 0.0
        %3512 = vmatprep.subr.mxu0 0.0
        %3513 = vmatpush1.msra.mxu0 0.0
        %3514 = vmatprep.subr.mxu0 0.0
        %3515 = vmatpush1.msra.mxu0 0.0
        %3516 = vmatprep.subr.mxu0 0.0
        %3517 = vmatpush1.msra.mxu0 0.0
        %3518 = vmatprep.subr.mxu0 0.0
        %3519 = vmatpush1.msra.mxu0 0.0
        %3520 = vmatprep.subr.mxu0 0.0
        %3521 = vmatpush1.msra.mxu0 0.0
        %3522 = vmatprep.subr.mxu0 0.0
        %3523 = vmatpush1.msra.mxu0 0.0
        %3524 = vmatprep.subr.mxu0 0.0
        %3525 = vmatpush1.msra.mxu0 0.0
        %3526 = vmatprep.subr.mxu0 0.0
        %3527 = vmatpush1.msra.mxu0 0.0
        %3528 = vmatprep.subr.mxu0 0.0
        %3529 = vmatpush1.msra.mxu0 0.0
        %3530 = vmatprep.subr.mxu0 0.0
        %3531 = vmatpush1.msra.mxu0 0.0
        %3532 = vmatprep.mubr.f32.mxu0 0.0
        %3533 = vmatmul.mubr.f32.gmra.mrb[0].mxu0 %v3369
        %v3534 = vpop.f32.mrb[0].mxu0
        %v3535 = vadd.f32 0.0, %v3534
        %v3536 = vpop.f32.mrb[0].mxu0
        %3537 = vmatprep.mubr.f32.mxu0 0.0
        %3538 = vmatmul.mubr.f32.gmra.mrb[0].mxu0 %v3372
        %v3539 = vpop.f32.mrb[0].mxu0
        %v3540 = vadd.f32 0.0, %v3539
        %v3541 = vpop.f32.mrb[0].mxu0
        %3542 = vmatprep.mubr.f32.mxu0 0.0
        %3543 = vmatmul.mubr.f32.gmra.mrb[0].mxu0 %v3375
        %v3544 = vpop.f32.mrb[0].mxu0
        %v3545 = vadd.f32 0.0, %v3544
        %v3546 = vpop.f32.mrb[0].mxu0
        %3547 = vmatprep.mubr.f32.mxu0 0.0
        %3548 = vmatmul.mubr.f32.gmra.mrb[0].mxu0 %v3378
        %v3549 = vpop.f32.mrb[0].mxu0
        %v3550 = vadd.f32 0.0, %v3549
        %v3551 = vpop.f32.mrb[0].mxu0
        %3552 = vmatprep.mubr.f32.mxu0 0.0
        %3553 = vmatmul.mubr.f32.gmra.mrb[0].mxu0 %v3381
        %v3554 = vpop.f32.mrb[0].mxu0
        %v3555 = vadd.f32 0.0, %v3554
        %v3556 = vpop.f32.mrb[0].mxu0
        %3557 = vmatprep.mubr.f32.mxu0 0.0
        %3558 = vmatmul.mubr.f32.gmra.mrb[0].mxu0 %v3384
        %v3559 = vpop.f32.mrb[0].mxu0
        %v3560 = vadd.f32 0.0, %v3559
        %v3561 = vpop.f32.mrb[0].mxu0
        %3562 = vmatprep.mubr.f32.mxu0 0.0
        %3563 = vmatmul.mubr.f32.gmra.mrb[0].mxu0 %v3387
        %v3564 = vpop.f32.mrb[0].mxu0
        %v3565 = vadd.f32 0.0, %v3564
        %v3566 = vpop.f32.mrb[0].mxu0
        %3567 = vmatprep.mubr.f32.mxu0 0.0
        %3568 = vmatmul.mubr.f32.gmra.mrb[0].mxu0 %v3390
        %v3569 = vpop.f32.mrb[0].mxu0
        %v3570 = vadd.f32 0.0, %v3569
        %v3571 = vpop.f32.mrb[0].mxu0
        %3572 = vmatprep.mubr.f32.mxu0 0.0
        %3573 = vmatmul.mubr.f32.gmra.mrb[0].mxu0 %v3393
        %v3574 = vpop.f32.mrb[0].mxu0
        %v3575 = vadd.f32 0.0, %v3574
        %v3576 = vpop.f32.mrb[0].mxu0
        %3577 = vmatprep.mubr.f32.mxu0 0.0
        %3578 = vmatmul.mubr.f32.gmra.mrb[0].mxu0 %v3396
        %v3579 = vpop.f32.mrb[0].mxu0
        %v3580 = vadd.f32 0.0, %v3579
        %v3581 = vpop.f32.mrb[0].mxu0
        %3582 = vmatprep.mubr.f32.mxu0 0.0
        %3583 = vmatmul.mubr.f32.gmra.mrb[0].mxu0 %v3399
        %v3584 = vpop.f32.mrb[0].mxu0
        %v3585 = vadd.f32 0.0, %v3584
        %v3586 = vpop.f32.mrb[0].mxu0
        %3587 = vmatprep.mubr.f32.mxu0 0.0
        %3588 = vmatmul.mubr.f32.gmra.mrb[0].mxu0 %v3402
        %v3589 = vpop.f32.mrb[0].mxu0
        %v3590 = vadd.f32 0.0, %v3589
        %v3591 = vpop.f32.mrb[0].mxu0
        %3592 = vmatprep.mubr.f32.mxu0 0.0
        %3593 = vmatmul.mubr.f32.gmra.mrb[0].mxu0 %v3405
        %v3594 = vpop.f32.mrb[0].mxu0
        %v3595 = vadd.f32 0.0, %v3594
        %v3596 = vpop.f32.mrb[0].mxu0
        %3597 = vmatprep.mubr.f32.mxu0 0.0
        %3598 = vmatmul.mubr.f32.gmra.mrb[0].mxu0 %v3408
        %v3599 = vpop.f32.mrb[0].mxu0
        %v3600 = vadd.f32 0.0, %v3599
        %v3601 = vpop.f32.mrb[0].mxu0
        %3602 = vmatprep.mubr.f32.mxu0 0.0
        %3603 = vmatmul.mubr.f32.gmra.mrb[0].mxu0 %v3411
        %v3604 = vpop.f32.mrb[0].mxu0
        %v3605 = vadd.f32 0.0, %v3604
        %v3606 = vpop.f32.mrb[0].mxu0
        %3607 = vmatprep.mubr.f32.mxu0 0.0
        %3608 = vmatmul.mubr.f32.gmra.mrb[0].mxu0 %v3414
        %v3609 = vpop.f32.mrb[0].mxu0
        %v3610 = vadd.f32 0.0, %v3609
        %v3611 = vpop.f32.mrb[0].mxu0
        %3612 = vmatprep.mubr.f32.mxu0 0.0
        %3613 = vmatmul.mubr.f32.gmra.mrb[0].mxu0 %v3417
        %v3614 = vpop.f32.mrb[0].mxu0
        %v3615 = vadd.f32 0.0, %v3614
        %v3616 = vpop.f32.mrb[0].mxu0
        %3617 = vmatprep.mubr.f32.mxu0 0.0
        %3618 = vmatmul.mubr.f32.gmra.mrb[0].mxu0 %v3420
        %v3619 = vpop.f32.mrb[0].mxu0
        %v3620 = vadd.f32 0.0, %v3619
        %v3621 = vpop.f32.mrb[0].mxu0
        %3622 = vmatprep.mubr.f32.mxu0 0.0
        %3623 = vmatmul.mubr.f32.gmra.mrb[0].mxu0 %v3423
        %v3624 = vpop.f32.mrb[0].mxu0
        %v3625 = vadd.f32 0.0, %v3624
        %v3626 = vpop.f32.mrb[0].mxu0
        %3627 = vmatprep.mubr.f32.mxu0 0.0
        %3628 = vmatmul.mubr.f32.gmra.mrb[0].mxu0 %v3426
        %v3629 = vpop.f32.mrb[0].mxu0
        %v3630 = vadd.f32 0.0, %v3629
        %v3631 = vpop.f32.mrb[0].mxu0
        %3632 = vmatprep.mubr.f32.mxu0 0.0
        %3633 = vmatmul.mubr.f32.gmra.mrb[0].mxu0 %v3429
        %v3634 = vpop.f32.mrb[0].mxu0
        %v3635 = vadd.f32 0.0, %v3634
        %v3636 = vpop.f32.mrb[0].mxu0
        %3637 = vmatprep.mubr.f32.mxu0 0.0
        %3638 = vmatmul.mubr.f32.gmra.mrb[0].mxu0 %v3432
        %v3639 = vpop.f32.mrb[0].mxu0
        %v3640 = vadd.f32 0.0, %v3639
        %v3641 = vpop.f32.mrb[0].mxu0
        %3642 = vmatprep.mubr.f32.mxu0 0.0
        %3643 = vmatmul.mubr.f32.gmra.mrb[0].mxu0 %v3435
        %v3644 = vpop.f32.mrb[0].mxu0
        %v3645 = vadd.f32 0.0, %v3644
        %v3646 = vpop.f32.mrb[0].mxu0
        %3647 = vmatprep.mubr.f32.mxu0 0.0
        %3648 = vmatmul.mubr.f32.gmra.mrb[0].mxu0 %v3438
        %v3649 = vpop.f32.mrb[0].mxu0
        %v3650 = vadd.f32 0.0, %v3649
        %v3651 = vpop.f32.mrb[0].mxu0
        %3652 = vmatprep.mubr.f32.mxu0 0.0
        %3653 = vmatmul.mubr.f32.gmra.mrb[0].mxu0 %v3441
        %v3654 = vpop.f32.mrb[0].mxu0
        %v3655 = vadd.f32 0.0, %v3654
        %v3656 = vpop.f32.mrb[0].mxu0
        %3657 = vmatprep.mubr.f32.mxu0 0.0
        %3658 = vmatmul.mubr.f32.gmra.mrb[0].mxu0 %v3444
        %v3659 = vpop.f32.mrb[0].mxu0
        %v3660 = vadd.f32 0.0, %v3659
        %v3661 = vpop.f32.mrb[0].mxu0
        %3662 = vmatprep.mubr.f32.mxu0 0.0
        %3663 = vmatmul.mubr.f32.gmra.mrb[0].mxu0 %v3447
        %v3664 = vpop.f32.mrb[0].mxu0
        %v3665 = vadd.f32 0.0, %v3664
        %v3666 = vpop.f32.mrb[0].mxu0
        %3667 = vmatprep.mubr.f32.mxu0 0.0
        %3668 = vmatmul.mubr.f32.gmra.mrb[0].mxu0 %v3450
        %v3669 = vpop.f32.mrb[0].mxu0
        %v3670 = vadd.f32 0.0, %v3669
        %v3671 = vpop.f32.mrb[0].mxu0
        %3672 = vmatprep.mubr.f32.mxu0 0.0
        %3673 = vmatmul.mubr.f32.gmra.mrb[0].mxu0 %v3453
        %v3674 = vpop.f32.mrb[0].mxu0
        %v3675 = vadd.f32 0.0, %v3674
        %v3676 = vpop.f32.mrb[0].mxu0
        %3677 = vmatprep.mubr.f32.mxu0 0.0
        %3678 = vmatmul.mubr.f32.gmra.mrb[0].mxu0 %v3456
        %v3679 = vpop.f32.mrb[0].mxu0
        %v3680 = vadd.f32 0.0, %v3679
        %v3681 = vpop.f32.mrb[0].mxu0
        %3682 = vmatprep.mubr.f32.mxu0 0.0
        %3683 = vmatmul.mubr.f32.gmra.mrb[0].mxu0 %v3459
        %v3684 = vpop.f32.mrb[0].mxu0
        %v3685 = vadd.f32 0.0, %v3684
        %v3686 = vpop.f32.mrb[0].mxu0
        %3687 = vmatprep.mubr.f32.mxu0 0.0
        %3688 = vmatmul.mubr.f32.gmra.mrb[0].mxu0 %v3462
        %v3689 = vpop.f32.mrb[0].mxu0
        %v3690 = vadd.f32 0.0, %v3689
        %v3691 = vpop.f32.mrb[0].mxu0
        %3692 = vdwg.mxu0
        %v3693 = vld [vmem:[#allocation5] sm:$0xff]
        %v3694 = vld [vmem:[#allocation5 + $0x8] sm:$0xff]
        %v3695 = vld [vmem:[#allocation5 + $0x10] sm:$0xff]
        %v3696 = vld [vmem:[#allocation5 + $0x18] sm:$0xff]
        %v3697 = vld [vmem:[#allocation5 + $0x20] sm:$0xff]
        %v3698 = vld [vmem:[#allocation5 + $0x28] sm:$0xff]
        %v3699 = vld [vmem:[#allocation5 + $0x30] sm:$0xff]
        %v3700 = vld [vmem:[#allocation5 + $0x38] sm:$0xff]
        %v3701 = vld [vmem:[#allocation5 + $0x40] sm:$0xff]
        %v3702 = vld [vmem:[#allocation5 + $0x48] sm:$0xff]
        %v3703 = vld [vmem:[#allocation5 + $0x50] sm:$0xff]
        %v3704 = vld [vmem:[#allocation5 + $0x58] sm:$0xff]
        %v3705 = vld [vmem:[#allocation5 + $0x60] sm:$0xff]
        %v3706 = vld [vmem:[#allocation5 + $0x68] sm:$0xff]
        %v3707 = vld [vmem:[#allocation5 + $0x70] sm:$0xff]
        %v3708 = vld [vmem:[#allocation5 + $0x78] sm:$0xff]
        %v3709 = vld [vmem:[#allocation5 + $0x80] sm:$0xff]
        %v3710 = vld [vmem:[#allocation5 + $0x88] sm:$0xff]
        %v3711 = vld [vmem:[#allocation5 + $0x90] sm:$0xff]
        %v3712 = vld [vmem:[#allocation5 + $0x98] sm:$0xff]
        %v3713 = vld [vmem:[#allocation5 + $0xa0] sm:$0xff]
        %v3714 = vld [vmem:[#allocation5 + $0xa8] sm:$0xff]
        %v3715 = vld [vmem:[#allocation5 + $0xb0] sm:$0xff]
        %v3716 = vld [vmem:[#allocation5 + $0xb8] sm:$0xff]
        %v3717 = vld [vmem:[#allocation5 + $0xc0] sm:$0xff]
        %v3718 = vld [vmem:[#allocation5 + $0xc8] sm:$0xff]
        %v3719 = vld [vmem:[#allocation5 + $0xd0] sm:$0xff]
        %v3720 = vld [vmem:[#allocation5 + $0xd8] sm:$0xff]
        %v3721 = vld [vmem:[#allocation5 + $0xe0] sm:$0xff]
        %v3722 = vld [vmem:[#allocation5 + $0xe8] sm:$0xff]
        %v3723 = vld [vmem:[#allocation5 + $0xf0] sm:$0xff]
        %v3724 = vld [vmem:[#allocation5 + $0xf8] sm:$0xff]
        %v3725 = vld [vmem:[#allocation5 + $0x100] sm:$0xff]
        %v3726 = vld [vmem:[#allocation5 + $0x108] sm:$0xff]
        %v3727 = vld [vmem:[#allocation5 + $0x110] sm:$0xff]
        %v3728 = vld [vmem:[#allocation5 + $0x118] sm:$0xff]
        %v3729 = vld [vmem:[#allocation5 + $0x120] sm:$0xff]
        %v3730 = vld [vmem:[#allocation5 + $0x128] sm:$0xff]
        %v3731 = vld [vmem:[#allocation5 + $0x130] sm:$0xff]
        %v3732 = vld [vmem:[#allocation5 + $0x138] sm:$0xff]
        %v3733 = vld [vmem:[#allocation5 + $0x140] sm:$0xff]
        %v3734 = vld [vmem:[#allocation5 + $0x148] sm:$0xff]
        %v3735 = vld [vmem:[#allocation5 + $0x150] sm:$0xff]
        %v3736 = vld [vmem:[#allocation5 + $0x158] sm:$0xff]
        %v3737 = vld [vmem:[#allocation5 + $0x160] sm:$0xff]
        %v3738 = vld [vmem:[#allocation5 + $0x168] sm:$0xff]
        %v3739 = vld [vmem:[#allocation5 + $0x170] sm:$0xff]
        %v3740 = vld [vmem:[#allocation5 + $0x178] sm:$0xff]
        %v3741 = vld [vmem:[#allocation5 + $0x180] sm:$0xff]
        %v3742 = vld [vmem:[#allocation5 + $0x188] sm:$0xff]
        %v3743 = vld [vmem:[#allocation5 + $0x190] sm:$0xff]
        %v3744 = vld [vmem:[#allocation5 + $0x198] sm:$0xff]
        %v3745 = vld [vmem:[#allocation5 + $0x1a0] sm:$0xff]
        %v3746 = vld [vmem:[#allocation5 + $0x1a8] sm:$0xff]
        %v3747 = vld [vmem:[#allocation5 + $0x1b0] sm:$0xff]
        %v3748 = vld [vmem:[#allocation5 + $0x1b8] sm:$0xff]
        %v3749 = vld [vmem:[#allocation5 + $0x1c0] sm:$0xff]
        %v3750 = vld [vmem:[#allocation5 + $0x1c8] sm:$0xff]
        %v3751 = vld [vmem:[#allocation5 + $0x1d0] sm:$0xff]
        %v3752 = vld [vmem:[#allocation5 + $0x1d8] sm:$0xff]
        %v3753 = vld [vmem:[#allocation5 + $0x1e0] sm:$0xff]
        %v3754 = vld [vmem:[#allocation5 + $0x1e8] sm:$0xff]
        %v3755 = vld [vmem:[#allocation5 + $0x1f0] sm:$0xff]
        %v3756 = vld [vmem:[#allocation5 + $0x1f8] sm:$0xff]
        %s3757 = scalar_lea.vmem [#allocation5], 512
        %v3758 = vld [vmem:[%s3757] sm:$0xff]
        %v3759 = vld [vmem:[%s3757 + $0x8] sm:$0xff]
        %v3760 = vld [vmem:[%s3757 + $0x10] sm:$0xff]
        %v3761 = vld [vmem:[%s3757 + $0x18] sm:$0xff]
        %v3762 = vld [vmem:[%s3757 + $0x20] sm:$0xff]
        %v3763 = vld [vmem:[%s3757 + $0x28] sm:$0xff]
        %v3764 = vld [vmem:[%s3757 + $0x30] sm:$0xff]
        %v3765 = vld [vmem:[%s3757 + $0x38] sm:$0xff]
        %v3766 = vld [vmem:[%s3757 + $0x40] sm:$0xff]
        %v3767 = vld [vmem:[%s3757 + $0x48] sm:$0xff]
        %v3768 = vld [vmem:[%s3757 + $0x50] sm:$0xff]
        %v3769 = vld [vmem:[%s3757 + $0x58] sm:$0xff]
        %v3770 = vld [vmem:[%s3757 + $0x60] sm:$0xff]
        %v3771 = vld [vmem:[%s3757 + $0x68] sm:$0xff]
        %v3772 = vld [vmem:[%s3757 + $0x70] sm:$0xff]
        %v3773 = vld [vmem:[%s3757 + $0x78] sm:$0xff]
        %v3774 = vld [vmem:[%s3757 + $0x80] sm:$0xff]
        %v3775 = vld [vmem:[%s3757 + $0x88] sm:$0xff]
        %v3776 = vld [vmem:[%s3757 + $0x90] sm:$0xff]
        %v3777 = vld [vmem:[%s3757 + $0x98] sm:$0xff]
        %v3778 = vld [vmem:[%s3757 + $0xa0] sm:$0xff]
        %v3779 = vld [vmem:[%s3757 + $0xa8] sm:$0xff]
        %v3780 = vld [vmem:[%s3757 + $0xb0] sm:$0xff]
        %v3781 = vld [vmem:[%s3757 + $0xb8] sm:$0xff]
        %v3782 = vld [vmem:[%s3757 + $0xc0] sm:$0xff]
        %v3783 = vld [vmem:[%s3757 + $0xc8] sm:$0xff]
        %v3784 = vld [vmem:[%s3757 + $0xd0] sm:$0xff]
        %v3785 = vld [vmem:[%s3757 + $0xd8] sm:$0xff]
        %v3786 = vld [vmem:[%s3757 + $0xe0] sm:$0xff]
        %v3787 = vld [vmem:[%s3757 + $0xe8] sm:$0xff]
        %v3788 = vld [vmem:[%s3757 + $0xf0] sm:$0xff]
        %v3789 = vld [vmem:[%s3757 + $0xf8] sm:$0xff]
        %v3790 = vld [vmem:[%s3757 + $0x100] sm:$0xff]
        %v3791 = vld [vmem:[%s3757 + $0x108] sm:$0xff]
        %v3792 = vld [vmem:[%s3757 + $0x110] sm:$0xff]
        %v3793 = vld [vmem:[%s3757 + $0x118] sm:$0xff]
        %v3794 = vld [vmem:[%s3757 + $0x120] sm:$0xff]
        %v3795 = vld [vmem:[%s3757 + $0x128] sm:$0xff]
        %v3796 = vld [vmem:[%s3757 + $0x130] sm:$0xff]
        %v3797 = vld [vmem:[%s3757 + $0x138] sm:$0xff]
        %v3798 = vld [vmem:[%s3757 + $0x140] sm:$0xff]
        %v3799 = vld [vmem:[%s3757 + $0x148] sm:$0xff]
        %v3800 = vld [vmem:[%s3757 + $0x150] sm:$0xff]
        %v3801 = vld [vmem:[%s3757 + $0x158] sm:$0xff]
        %v3802 = vld [vmem:[%s3757 + $0x160] sm:$0xff]
        %v3803 = vld [vmem:[%s3757 + $0x168] sm:$0xff]
        %v3804 = vld [vmem:[%s3757 + $0x170] sm:$0xff]
        %v3805 = vld [vmem:[%s3757 + $0x178] sm:$0xff]
        %v3806 = vld [vmem:[%s3757 + $0x180] sm:$0xff]
        %v3807 = vld [vmem:[%s3757 + $0x188] sm:$0xff]
        %v3808 = vld [vmem:[%s3757 + $0x190] sm:$0xff]
        %v3809 = vld [vmem:[%s3757 + $0x198] sm:$0xff]
        %v3810 = vld [vmem:[%s3757 + $0x1a0] sm:$0xff]
        %v3811 = vld [vmem:[%s3757 + $0x1a8] sm:$0xff]
        %v3812 = vld [vmem:[%s3757 + $0x1b0] sm:$0xff]
        %v3813 = vld [vmem:[%s3757 + $0x1b8] sm:$0xff]
        %v3814 = vld [vmem:[%s3757 + $0x1c0] sm:$0xff]
        %v3815 = vld [vmem:[%s3757 + $0x1c8] sm:$0xff]
        %v3816 = vld [vmem:[%s3757 + $0x1d0] sm:$0xff]
        %v3817 = vld [vmem:[%s3757 + $0x1d8] sm:$0xff]
        %v3818 = vld [vmem:[%s3757 + $0x1e0] sm:$0xff]
        %v3819 = vld [vmem:[%s3757 + $0x1e8] sm:$0xff]
        %v3820 = vld [vmem:[%s3757 + $0x1f0] sm:$0xff]
        %v3821 = vld [vmem:[%s3757 + $0x1f8] sm:$0xff]
        %3854 = vrot.lane.b32.xlu0 %v3535, 127
        %v3855 = vpop.permute.xlu0 %3854
        %3856 = vrot.lane.b32.xlu0 %v3540, 127
        %v3857 = vpop.permute.xlu0 %3856
        %3858 = vrot.lane.b32.xlu0 %v3545, 127
        %v3859 = vpop.permute.xlu0 %3858
        %3860 = vrot.lane.b32.xlu0 %v3550, 127
        %v3861 = vpop.permute.xlu0 %3860
        %3862 = vrot.lane.b32.xlu0 %v3555, 127
        %v3863 = vpop.permute.xlu0 %3862
        %3864 = vrot.lane.b32.xlu0 %v3560, 127
        %v3865 = vpop.permute.xlu0 %3864
        %3866 = vrot.lane.b32.xlu0 %v3565, 127
        %v3867 = vpop.permute.xlu0 %3866
        %3868 = vrot.lane.b32.xlu0 %v3570, 127
        %v3869 = vpop.permute.xlu0 %3868
        %3870 = vrot.lane.b32.xlu0 %v3575, 127
        %v3871 = vpop.permute.xlu0 %3870
        %3872 = vrot.lane.b32.xlu0 %v3580, 127
        %v3873 = vpop.permute.xlu0 %3872
        %3874 = vrot.lane.b32.xlu0 %v3585, 127
        %v3875 = vpop.permute.xlu0 %3874
        %3876 = vrot.lane.b32.xlu0 %v3590, 127
        %v3877 = vpop.permute.xlu0 %3876
        %3878 = vrot.lane.b32.xlu0 %v3595, 127
        %v3879 = vpop.permute.xlu0 %3878
        %3880 = vrot.lane.b32.xlu0 %v3600, 127
        %v3881 = vpop.permute.xlu0 %3880
        %3882 = vrot.lane.b32.xlu0 %v3605, 127
        %v3883 = vpop.permute.xlu0 %3882
        %3884 = vrot.lane.b32.xlu0 %v3610, 127
        %v3885 = vpop.permute.xlu0 %3884
        %3886 = vrot.lane.b32.xlu0 %v3615, 127
        %v3887 = vpop.permute.xlu0 %3886
        %3888 = vrot.lane.b32.xlu0 %v3620, 127
        %v3889 = vpop.permute.xlu0 %3888
        %3890 = vrot.lane.b32.xlu0 %v3625, 127
        %v3891 = vpop.permute.xlu0 %3890
        %3892 = vrot.lane.b32.xlu0 %v3630, 127
        %v3893 = vpop.permute.xlu0 %3892
        %3894 = vrot.lane.b32.xlu0 %v3635, 127
        %v3895 = vpop.permute.xlu0 %3894
        %3896 = vrot.lane.b32.xlu0 %v3640, 127
        %v3897 = vpop.permute.xlu0 %3896
        %3898 = vrot.lane.b32.xlu0 %v3645, 127
        %v3899 = vpop.permute.xlu0 %3898
        %3900 = vrot.lane.b32.xlu0 %v3650, 127
        %v3901 = vpop.permute.xlu0 %3900
        %3902 = vrot.lane.b32.xlu0 %v3655, 127
        %v3903 = vpop.permute.xlu0 %3902
        %3904 = vrot.lane.b32.xlu0 %v3660, 127
        %v3905 = vpop.permute.xlu0 %3904
        %3906 = vrot.lane.b32.xlu0 %v3665, 127
        %v3907 = vpop.permute.xlu0 %3906
        %3908 = vrot.lane.b32.xlu0 %v3670, 127
        %v3909 = vpop.permute.xlu0 %3908
        %3910 = vrot.lane.b32.xlu0 %v3675, 127
        %v3911 = vpop.permute.xlu0 %3910
        %3912 = vrot.lane.b32.xlu0 %v3680, 127
        %v3913 = vpop.permute.xlu0 %3912
        %3914 = vrot.lane.b32.xlu0 %v3685, 127
        %v3915 = vpop.permute.xlu0 %3914
        %3916 = vrot.lane.b32.xlu0 %v3690, 127
        %v3917 = vpop.permute.xlu0 %3916
        %3950 = vmatprep.subr.mxu0 0.0
        %3951 = vmatpush1.msra.mxu0 %v3855
        %3952 = vmatprep.subr.mxu0 0.0
        %3953 = vmatpush1.msra.mxu0 %v3857
        %3954 = vmatprep.subr.mxu0 0.0
        %3955 = vmatpush1.msra.mxu0 %v3859
        %3956 = vmatprep.subr.mxu0 0.0
        %3957 = vmatpush1.msra.mxu0 %v3861
        %3958 = vmatprep.subr.mxu0 0.0
        %3959 = vmatpush1.msra.mxu0 %v3863
        %3960 = vmatprep.subr.mxu0 0.0
        %3961 = vmatpush1.msra.mxu0 %v3865
        %3962 = vmatprep.subr.mxu0 0.0
        %3963 = vmatpush1.msra.mxu0 %v3867
        %3964 = vmatprep.subr.mxu0 0.0
        %3965 = vmatpush1.msra.mxu0 %v3869
        %3966 = vmatprep.subr.mxu0 0.0
        %3967 = vmatpush1.msra.mxu0 %v3871
        %3968 = vmatprep.subr.mxu0 0.0
        %3969 = vmatpush1.msra.mxu0 %v3873
        %3970 = vmatprep.subr.mxu0 0.0
        %3971 = vmatpush1.msra.mxu0 %v3875
        %3972 = vmatprep.subr.mxu0 0.0
        %3973 = vmatpush1.msra.mxu0 %v3877
        %3974 = vmatprep.subr.mxu0 0.0
        %3975 = vmatpush1.msra.mxu0 %v3879
        %3976 = vmatprep.subr.mxu0 0.0
        %3977 = vmatpush1.msra.mxu0 %v3881
        %3978 = vmatprep.subr.mxu0 0.0
        %3979 = vmatpush1.msra.mxu0 %v3883
        %3980 = vmatprep.subr.mxu0 0.0
        %3981 = vmatpush1.msra.mxu0 %v3885
        %3982 = vmatprep.subr.mxu0 0.0
        %3983 = vmatpush1.msra.mxu0 %v3887
        %3984 = vmatprep.subr.mxu0 0.0
        %3985 = vmatpush1.msra.mxu0 %v3889
        %3986 = vmatprep.subr.mxu0 0.0
        %3987 = vmatpush1.msra.mxu0 %v3891
        %3988 = vmatprep.subr.mxu0 0.0
        %3989 = vmatpush1.msra.mxu0 %v3893
        %3990 = vmatprep.subr.mxu0 0.0
        %3991 = vmatpush1.msra.mxu0 %v3895
        %3992 = vmatprep.subr.mxu0 0.0
        %3993 = vmatpush1.msra.mxu0 %v3897
        %3994 = vmatprep.subr.mxu0 0.0
        %3995 = vmatpush1.msra.mxu0 %v3899
        %3996 = vmatprep.subr.mxu0 0.0
        %3997 = vmatpush1.msra.mxu0 %v3901
        %3998 = vmatprep.subr.mxu0 0.0
        %3999 = vmatpush1.msra.mxu0 %v3903
        %4000 = vmatprep.subr.mxu0 0.0
        %4001 = vmatpush1.msra.mxu0 %v3905
        %4002 = vmatprep.subr.mxu0 0.0
        %4003 = vmatpush1.msra.mxu0 %v3907
        %4004 = vmatprep.subr.mxu0 0.0
        %4005 = vmatpush1.msra.mxu0 %v3909
        %4006 = vmatprep.subr.mxu0 0.0
        %4007 = vmatpush1.msra.mxu0 %v3911
        %4008 = vmatprep.subr.mxu0 0.0
        %4009 = vmatpush1.msra.mxu0 %v3913
        %4010 = vmatprep.subr.mxu0 0.0
        %4011 = vmatpush1.msra.mxu0 %v3915
        %4012 = vmatprep.subr.mxu0 0.0
        %4013 = vmatpush1.msra.mxu0 %v3917
        %4014 = vmatprep.mubr.f32.mxu0 %v3759
        %4015 = vmatmul.mubr.f32.gmra.mrb[0].mxu0 %v3758
        %v4016 = vpop.f32.mrb[0].mxu0
        %v4017 = vadd.f32 0.0, %v4016
        %v4018 = vpop.f32.mrb[0].mxu0
        %4019 = vmatprep.mubr.f32.mxu0 %v3761
        %4020 = vmatmul.mubr.f32.gmra.mrb[0].mxu0 %v3760
        %v4021 = vpop.f32.mrb[0].mxu0
        %v4022 = vadd.f32 0.0, %v4021
        %v4023 = vpop.f32.mrb[0].mxu0
        %4024 = vmatprep.mubr.f32.mxu0 %v3763
        %4025 = vmatmul.mubr.f32.gmra.mrb[0].mxu0 %v3762
        %v4026 = vpop.f32.mrb[0].mxu0
        %v4027 = vadd.f32 0.0, %v4026
        %v4028 = vpop.f32.mrb[0].mxu0
        %4029 = vmatprep.mubr.f32.mxu0 %v3765
        %4030 = vmatmul.mubr.f32.gmra.mrb[0].mxu0 %v3764
        %v4031 = vpop.f32.mrb[0].mxu0
        %v4032 = vadd.f32 0.0, %v4031
        %v4033 = vpop.f32.mrb[0].mxu0
        %4034 = vmatprep.mubr.f32.mxu0 %v3767
        %4035 = vmatmul.mubr.f32.gmra.mrb[0].mxu0 %v3766
        %v4036 = vpop.f32.mrb[0].mxu0
        %v4037 = vadd.f32 0.0, %v4036
        %v4038 = vpop.f32.mrb[0].mxu0
        %4039 = vmatprep.mubr.f32.mxu0 %v3769
        %4040 = vmatmul.mubr.f32.gmra.mrb[0].mxu0 %v3768
        %v4041 = vpop.f32.mrb[0].mxu0
        %v4042 = vadd.f32 0.0, %v4041
        %v4043 = vpop.f32.mrb[0].mxu0
        %4044 = vmatprep.mubr.f32.mxu0 %v3771
        %4045 = vmatmul.mubr.f32.gmra.mrb[0].mxu0 %v3770
        %v4046 = vpop.f32.mrb[0].mxu0
        %v4047 = vadd.f32 0.0, %v4046
        %v4048 = vpop.f32.mrb[0].mxu0
        %4049 = vmatprep.mubr.f32.mxu0 %v3773
        %4050 = vmatmul.mubr.f32.gmra.mrb[0].mxu0 %v3772
        %v4051 = vpop.f32.mrb[0].mxu0
        %v4052 = vadd.f32 0.0, %v4051
        %v4053 = vpop.f32.mrb[0].mxu0
        %4054 = vmatprep.mubr.f32.mxu0 %v3775
        %4055 = vmatmul.mubr.f32.gmra.mrb[0].mxu0 %v3774
        %v4056 = vpop.f32.mrb[0].mxu0
        %v4057 = vadd.f32 0.0, %v4056
        %v4058 = vpop.f32.mrb[0].mxu0
        %4059 = vmatprep.mubr.f32.mxu0 %v3777
        %4060 = vmatmul.mubr.f32.gmra.mrb[0].mxu0 %v3776
        %v4061 = vpop.f32.mrb[0].mxu0
        %v4062 = vadd.f32 0.0, %v4061
        %v4063 = vpop.f32.mrb[0].mxu0
        %4064 = vmatprep.mubr.f32.mxu0 %v3779
        %4065 = vmatmul.mubr.f32.gmra.mrb[0].mxu0 %v3778
        %v4066 = vpop.f32.mrb[0].mxu0
        %v4067 = vadd.f32 0.0, %v4066
        %v4068 = vpop.f32.mrb[0].mxu0
        %4069 = vmatprep.mubr.f32.mxu0 %v3781
        %4070 = vmatmul.mubr.f32.gmra.mrb[0].mxu0 %v3780
        %v4071 = vpop.f32.mrb[0].mxu0
        %v4072 = vadd.f32 0.0, %v4071
        %v4073 = vpop.f32.mrb[0].mxu0
        %4074 = vmatprep.mubr.f32.mxu0 %v3783
        %4075 = vmatmul.mubr.f32.gmra.mrb[0].mxu0 %v3782
        %v4076 = vpop.f32.mrb[0].mxu0
        %v4077 = vadd.f32 0.0, %v4076
        %v4078 = vpop.f32.mrb[0].mxu0
        %4079 = vmatprep.mubr.f32.mxu0 %v3785
        %4080 = vmatmul.mubr.f32.gmra.mrb[0].mxu0 %v3784
        %v4081 = vpop.f32.mrb[0].mxu0
        %v4082 = vadd.f32 0.0, %v4081
        %v4083 = vpop.f32.mrb[0].mxu0
        %4084 = vmatprep.mubr.f32.mxu0 %v3787
        %4085 = vmatmul.mubr.f32.gmra.mrb[0].mxu0 %v3786
        %v4086 = vpop.f32.mrb[0].mxu0
        %v4087 = vadd.f32 0.0, %v4086
        %v4088 = vpop.f32.mrb[0].mxu0
        %4089 = vmatprep.mubr.f32.mxu0 %v3789
        %4090 = vmatmul.mubr.f32.gmra.mrb[0].mxu0 %v3788
        %v4091 = vpop.f32.mrb[0].mxu0
        %v4092 = vadd.f32 0.0, %v4091
        %v4093 = vpop.f32.mrb[0].mxu0
        %4094 = vmatprep.mubr.f32.mxu0 %v3791
        %4095 = vmatmul.mubr.f32.gmra.mrb[0].mxu0 %v3790
        %v4096 = vpop.f32.mrb[0].mxu0
        %v4097 = vadd.f32 0.0, %v4096
        %v4098 = vpop.f32.mrb[0].mxu0
        %4099 = vmatprep.mubr.f32.mxu0 %v3793
        %4100 = vmatmul.mubr.f32.gmra.mrb[0].mxu0 %v3792
        %v4101 = vpop.f32.mrb[0].mxu0
        %v4102 = vadd.f32 0.0, %v4101
        %v4103 = vpop.f32.mrb[0].mxu0
        %4104 = vmatprep.mubr.f32.mxu0 %v3795
        %4105 = vmatmul.mubr.f32.gmra.mrb[0].mxu0 %v3794
        %v4106 = vpop.f32.mrb[0].mxu0
        %v4107 = vadd.f32 0.0, %v4106
        %v4108 = vpop.f32.mrb[0].mxu0
        %4109 = vmatprep.mubr.f32.mxu0 %v3797
        %4110 = vmatmul.mubr.f32.gmra.mrb[0].mxu0 %v3796
        %v4111 = vpop.f32.mrb[0].mxu0
        %v4112 = vadd.f32 0.0, %v4111
        %v4113 = vpop.f32.mrb[0].mxu0
        %4114 = vmatprep.mubr.f32.mxu0 %v3799
        %4115 = vmatmul.mubr.f32.gmra.mrb[0].mxu0 %v3798
        %v4116 = vpop.f32.mrb[0].mxu0
        %v4117 = vadd.f32 0.0, %v4116
        %v4118 = vpop.f32.mrb[0].mxu0
        %4119 = vmatprep.mubr.f32.mxu0 %v3801
        %4120 = vmatmul.mubr.f32.gmra.mrb[0].mxu0 %v3800
        %v4121 = vpop.f32.mrb[0].mxu0
        %v4122 = vadd.f32 0.0, %v4121
        %v4123 = vpop.f32.mrb[0].mxu0
        %4124 = vmatprep.mubr.f32.mxu0 %v3803
        %4125 = vmatmul.mubr.f32.gmra.mrb[0].mxu0 %v3802
        %v4126 = vpop.f32.mrb[0].mxu0
        %v4127 = vadd.f32 0.0, %v4126
        %v4128 = vpop.f32.mrb[0].mxu0
        %4129 = vmatprep.mubr.f32.mxu0 %v3805
        %4130 = vmatmul.mubr.f32.gmra.mrb[0].mxu0 %v3804
        %v4131 = vpop.f32.mrb[0].mxu0
        %v4132 = vadd.f32 0.0, %v4131
        %v4133 = vpop.f32.mrb[0].mxu0
        %4134 = vmatprep.mubr.f32.mxu0 %v3807
        %4135 = vmatmul.mubr.f32.gmra.mrb[0].mxu0 %v3806
        %v4136 = vpop.f32.mrb[0].mxu0
        %v4137 = vadd.f32 0.0, %v4136
        %v4138 = vpop.f32.mrb[0].mxu0
        %4139 = vmatprep.mubr.f32.mxu0 %v3809
        %4140 = vmatmul.mubr.f32.gmra.mrb[0].mxu0 %v3808
        %v4141 = vpop.f32.mrb[0].mxu0
        %v4142 = vadd.f32 0.0, %v4141
        %v4143 = vpop.f32.mrb[0].mxu0
        %4144 = vmatprep.mubr.f32.mxu0 %v3811
        %4145 = vmatmul.mubr.f32.gmra.mrb[0].mxu0 %v3810
        %v4146 = vpop.f32.mrb[0].mxu0
        %v4147 = vadd.f32 0.0, %v4146
        %v4148 = vpop.f32.mrb[0].mxu0
        %4149 = vmatprep.mubr.f32.mxu0 %v3813
        %4150 = vmatmul.mubr.f32.gmra.mrb[0].mxu0 %v3812
        %v4151 = vpop.f32.mrb[0].mxu0
        %v4152 = vadd.f32 0.0, %v4151
        %v4153 = vpop.f32.mrb[0].mxu0
        %4154 = vmatprep.mubr.f32.mxu0 %v3815
        %4155 = vmatmul.mubr.f32.gmra.mrb[0].mxu0 %v3814
        %v4156 = vpop.f32.mrb[0].mxu0
        %v4157 = vadd.f32 0.0, %v4156
        %v4158 = vpop.f32.mrb[0].mxu0
        %4159 = vmatprep.mubr.f32.mxu0 %v3817
        %4160 = vmatmul.mubr.f32.gmra.mrb[0].mxu0 %v3816
        %v4161 = vpop.f32.mrb[0].mxu0
        %v4162 = vadd.f32 0.0, %v4161
        %v4163 = vpop.f32.mrb[0].mxu0
        %4164 = vmatprep.mubr.f32.mxu0 %v3819
        %4165 = vmatmul.mubr.f32.gmra.mrb[0].mxu0 %v3818
        %v4166 = vpop.f32.mrb[0].mxu0
        %v4167 = vadd.f32 0.0, %v4166
        %v4168 = vpop.f32.mrb[0].mxu0
        %4169 = vmatprep.mubr.f32.mxu0 %v3821
        %4170 = vmatmul.mubr.f32.gmra.mrb[0].mxu0 %v3820
        %v4171 = vpop.f32.mrb[0].mxu0
        %v4172 = vadd.f32 0.0, %v4171
        %v4173 = vpop.f32.mrb[0].mxu0
        %4174 = vdwg.mxu0
        %4175 = vmatprep.subr.mxu0 0.0
        %4176 = vmatpush1.msra.mxu0 %v3535
        %4177 = vmatprep.subr.mxu0 0.0
        %4178 = vmatpush1.msra.mxu0 %v3540
        %4179 = vmatprep.subr.mxu0 0.0
        %4180 = vmatpush1.msra.mxu0 %v3545
        %4181 = vmatprep.subr.mxu0 0.0
        %4182 = vmatpush1.msra.mxu0 %v3550
        %4183 = vmatprep.subr.mxu0 0.0
        %4184 = vmatpush1.msra.mxu0 %v3555
        %4185 = vmatprep.subr.mxu0 0.0
        %4186 = vmatpush1.msra.mxu0 %v3560
        %4187 = vmatprep.subr.mxu0 0.0
        %4188 = vmatpush1.msra.mxu0 %v3565
        %4189 = vmatprep.subr.mxu0 0.0
        %4190 = vmatpush1.msra.mxu0 %v3570
        %4191 = vmatprep.subr.mxu0 0.0
        %4192 = vmatpush1.msra.mxu0 %v3575
        %4193 = vmatprep.subr.mxu0 0.0
        %4194 = vmatpush1.msra.mxu0 %v3580
        %4195 = vmatprep.subr.mxu0 0.0
        %4196 = vmatpush1.msra.mxu0 %v3585
        %4197 = vmatprep.subr.mxu0 0.0
        %4198 = vmatpush1.msra.mxu0 %v3590
        %4199 = vmatprep.subr.mxu0 0.0
        %4200 = vmatpush1.msra.mxu0 %v3595
        %4201 = vmatprep.subr.mxu0 0.0
        %4202 = vmatpush1.msra.mxu0 %v3600
        %4203 = vmatprep.subr.mxu0 0.0
        %4204 = vmatpush1.msra.mxu0 %v3605
        %4205 = vmatprep.subr.mxu0 0.0
        %4206 = vmatpush1.msra.mxu0 %v3610
        %4207 = vmatprep.subr.mxu0 0.0
        %4208 = vmatpush1.msra.mxu0 %v3615
        %4209 = vmatprep.subr.mxu0 0.0
        %4210 = vmatpush1.msra.mxu0 %v3620
        %4211 = vmatprep.subr.mxu0 0.0
        %4212 = vmatpush1.msra.mxu0 %v3625
        %4213 = vmatprep.subr.mxu0 0.0
        %4214 = vmatpush1.msra.mxu0 %v3630
        %4215 = vmatprep.subr.mxu0 0.0
        %4216 = vmatpush1.msra.mxu0 %v3635
        %4217 = vmatprep.subr.mxu0 0.0
        %4218 = vmatpush1.msra.mxu0 %v3640
        %4219 = vmatprep.subr.mxu0 0.0
        %4220 = vmatpush1.msra.mxu0 %v3645
        %4221 = vmatprep.subr.mxu0 0.0
        %4222 = vmatpush1.msra.mxu0 %v3650
        %4223 = vmatprep.subr.mxu0 0.0
        %4224 = vmatpush1.msra.mxu0 %v3655
        %4225 = vmatprep.subr.mxu0 0.0
        %4226 = vmatpush1.msra.mxu0 %v3660
        %4227 = vmatprep.subr.mxu0 0.0
        %4228 = vmatpush1.msra.mxu0 %v3665
        %4229 = vmatprep.subr.mxu0 0.0
        %4230 = vmatpush1.msra.mxu0 %v3670
        %4231 = vmatprep.subr.mxu0 0.0
        %4232 = vmatpush1.msra.mxu0 %v3675
        %4233 = vmatprep.subr.mxu0 0.0
        %4234 = vmatpush1.msra.mxu0 %v3680
        %4235 = vmatprep.subr.mxu0 0.0
        %4236 = vmatpush1.msra.mxu0 %v3685
        %4237 = vmatprep.subr.mxu0 0.0
        %4238 = vmatpush1.msra.mxu0 %v3690
        %4239 = vmatprep.mubr.f32.mxu0 %v3694
        %4240 = vmatmul.mubr.f32.gmra.mrb[0].mxu0 %v3693
        %v4241 = vpop.f32.mrb[0].mxu0
        %v4242 = vadd.f32 %v4017, %v4241
        %v4243 = vpop.f32.mrb[0].mxu0
        %4244 = vmatprep.mubr.f32.mxu0 %v3696
        %4245 = vmatmul.mubr.f32.gmra.mrb[0].mxu0 %v3695
        %v4246 = vpop.f32.mrb[0].mxu0
        %v4247 = vadd.f32 %v4022, %v4246
        %v4248 = vpop.f32.mrb[0].mxu0
        %4249 = vmatprep.mubr.f32.mxu0 %v3698
        %4250 = vmatmul.mubr.f32.gmra.mrb[0].mxu0 %v3697
        %v4251 = vpop.f32.mrb[0].mxu0
        %v4252 = vadd.f32 %v4027, %v4251
        %v4253 = vpop.f32.mrb[0].mxu0
        %4254 = vmatprep.mubr.f32.mxu0 %v3700
        %4255 = vmatmul.mubr.f32.gmra.mrb[0].mxu0 %v3699
        %v4256 = vpop.f32.mrb[0].mxu0
        %v4257 = vadd.f32 %v4032, %v4256
        %v4258 = vpop.f32.mrb[0].mxu0
        %4259 = vmatprep.mubr.f32.mxu0 %v3702
        %4260 = vmatmul.mubr.f32.gmra.mrb[0].mxu0 %v3701
        %v4261 = vpop.f32.mrb[0].mxu0
        %v4262 = vadd.f32 %v4037, %v4261
        %v4263 = vpop.f32.mrb[0].mxu0
        %4264 = vmatprep.mubr.f32.mxu0 %v3704
        %4265 = vmatmul.mubr.f32.gmra.mrb[0].mxu0 %v3703
        %v4266 = vpop.f32.mrb[0].mxu0
        %v4267 = vadd.f32 %v4042, %v4266
        %v4268 = vpop.f32.mrb[0].mxu0
        %4269 = vmatprep.mubr.f32.mxu0 %v3706
        %4270 = vmatmul.mubr.f32.gmra.mrb[0].mxu0 %v3705
        %v4271 = vpop.f32.mrb[0].mxu0
        %v4272 = vadd.f32 %v4047, %v4271
        %v4273 = vpop.f32.mrb[0].mxu0
        %4274 = vmatprep.mubr.f32.mxu0 %v3708
        %4275 = vmatmul.mubr.f32.gmra.mrb[0].mxu0 %v3707
        %v4276 = vpop.f32.mrb[0].mxu0
        %v4277 = vadd.f32 %v4052, %v4276
        %v4278 = vpop.f32.mrb[0].mxu0
        %4279 = vmatprep.mubr.f32.mxu0 %v3710
        %4280 = vmatmul.mubr.f32.gmra.mrb[0].mxu0 %v3709
        %v4281 = vpop.f32.mrb[0].mxu0
        %v4282 = vadd.f32 %v4057, %v4281
        %v4283 = vpop.f32.mrb[0].mxu0
        %4284 = vmatprep.mubr.f32.mxu0 %v3712
        %4285 = vmatmul.mubr.f32.gmra.mrb[0].mxu0 %v3711
        %v4286 = vpop.f32.mrb[0].mxu0
        %v4287 = vadd.f32 %v4062, %v4286
        %v4288 = vpop.f32.mrb[0].mxu0
        %4289 = vmatprep.mubr.f32.mxu0 %v3714
        %4290 = vmatmul.mubr.f32.gmra.mrb[0].mxu0 %v3713
        %v4291 = vpop.f32.mrb[0].mxu0
        %v4292 = vadd.f32 %v4067, %v4291
        %v4293 = vpop.f32.mrb[0].mxu0
        %4294 = vmatprep.mubr.f32.mxu0 %v3716
        %4295 = vmatmul.mubr.f32.gmra.mrb[0].mxu0 %v3715
        %v4296 = vpop.f32.mrb[0].mxu0
        %v4297 = vadd.f32 %v4072, %v4296
        %v4298 = vpop.f32.mrb[0].mxu0
        %4299 = vmatprep.mubr.f32.mxu0 %v3718
        %4300 = vmatmul.mubr.f32.gmra.mrb[0].mxu0 %v3717
        %v4301 = vpop.f32.mrb[0].mxu0
        %v4302 = vadd.f32 %v4077, %v4301
        %v4303 = vpop.f32.mrb[0].mxu0
        %4304 = vmatprep.mubr.f32.mxu0 %v3720
        %4305 = vmatmul.mubr.f32.gmra.mrb[0].mxu0 %v3719
        %v4306 = vpop.f32.mrb[0].mxu0
        %v4307 = vadd.f32 %v4082, %v4306
        %v4308 = vpop.f32.mrb[0].mxu0
        %4309 = vmatprep.mubr.f32.mxu0 %v3722
        %4310 = vmatmul.mubr.f32.gmra.mrb[0].mxu0 %v3721
        %v4311 = vpop.f32.mrb[0].mxu0
        %v4312 = vadd.f32 %v4087, %v4311
        %v4313 = vpop.f32.mrb[0].mxu0
        %4314 = vmatprep.mubr.f32.mxu0 %v3724
        %4315 = vmatmul.mubr.f32.gmra.mrb[0].mxu0 %v3723
        %v4316 = vpop.f32.mrb[0].mxu0
        %v4317 = vadd.f32 %v4092, %v4316
        %v4318 = vpop.f32.mrb[0].mxu0
        %4319 = vmatprep.mubr.f32.mxu0 %v3726
        %4320 = vmatmul.mubr.f32.gmra.mrb[0].mxu0 %v3725
        %v4321 = vpop.f32.mrb[0].mxu0
        %v4322 = vadd.f32 %v4097, %v4321
        %v4323 = vpop.f32.mrb[0].mxu0
        %4324 = vmatprep.mubr.f32.mxu0 %v3728
        %4325 = vmatmul.mubr.f32.gmra.mrb[0].mxu0 %v3727
        %v4326 = vpop.f32.mrb[0].mxu0
        %v4327 = vadd.f32 %v4102, %v4326
        %v4328 = vpop.f32.mrb[0].mxu0
        %4329 = vmatprep.mubr.f32.mxu0 %v3730
        %4330 = vmatmul.mubr.f32.gmra.mrb[0].mxu0 %v3729
        %v4331 = vpop.f32.mrb[0].mxu0
        %v4332 = vadd.f32 %v4107, %v4331
        %v4333 = vpop.f32.mrb[0].mxu0
        %4334 = vmatprep.mubr.f32.mxu0 %v3732
        %4335 = vmatmul.mubr.f32.gmra.mrb[0].mxu0 %v3731
        %v4336 = vpop.f32.mrb[0].mxu0
        %v4337 = vadd.f32 %v4112, %v4336
        %v4338 = vpop.f32.mrb[0].mxu0
        %4339 = vmatprep.mubr.f32.mxu0 %v3734
        %4340 = vmatmul.mubr.f32.gmra.mrb[0].mxu0 %v3733
        %v4341 = vpop.f32.mrb[0].mxu0
        %v4342 = vadd.f32 %v4117, %v4341
        %v4343 = vpop.f32.mrb[0].mxu0
        %4344 = vmatprep.mubr.f32.mxu0 %v3736
        %4345 = vmatmul.mubr.f32.gmra.mrb[0].mxu0 %v3735
        %v4346 = vpop.f32.mrb[0].mxu0
        %v4347 = vadd.f32 %v4122, %v4346
        %v4348 = vpop.f32.mrb[0].mxu0
        %4349 = vmatprep.mubr.f32.mxu0 %v3738
        %4350 = vmatmul.mubr.f32.gmra.mrb[0].mxu0 %v3737
        %v4351 = vpop.f32.mrb[0].mxu0
        %v4352 = vadd.f32 %v4127, %v4351
        %v4353 = vpop.f32.mrb[0].mxu0
        %4354 = vmatprep.mubr.f32.mxu0 %v3740
        %4355 = vmatmul.mubr.f32.gmra.mrb[0].mxu0 %v3739
        %v4356 = vpop.f32.mrb[0].mxu0
        %v4357 = vadd.f32 %v4132, %v4356
        %v4358 = vpop.f32.mrb[0].mxu0
        %4359 = vmatprep.mubr.f32.mxu0 %v3742
        %4360 = vmatmul.mubr.f32.gmra.mrb[0].mxu0 %v3741
        %v4361 = vpop.f32.mrb[0].mxu0
        %v4362 = vadd.f32 %v4137, %v4361
        %v4363 = vpop.f32.mrb[0].mxu0
        %4364 = vmatprep.mubr.f32.mxu0 %v3744
        %4365 = vmatmul.mubr.f32.gmra.mrb[0].mxu0 %v3743
        %v4366 = vpop.f32.mrb[0].mxu0
        %v4367 = vadd.f32 %v4142, %v4366
        %v4368 = vpop.f32.mrb[0].mxu0
        %4369 = vmatprep.mubr.f32.mxu0 %v3746
        %4370 = vmatmul.mubr.f32.gmra.mrb[0].mxu0 %v3745
        %v4371 = vpop.f32.mrb[0].mxu0
        %v4372 = vadd.f32 %v4147, %v4371
        %v4373 = vpop.f32.mrb[0].mxu0
        %4374 = vmatprep.mubr.f32.mxu0 %v3748
        %4375 = vmatmul.mubr.f32.gmra.mrb[0].mxu0 %v3747
        %v4376 = vpop.f32.mrb[0].mxu0
        %v4377 = vadd.f32 %v4152, %v4376
        %v4378 = vpop.f32.mrb[0].mxu0
        %4379 = vmatprep.mubr.f32.mxu0 %v3750
        %4380 = vmatmul.mubr.f32.gmra.mrb[0].mxu0 %v3749
        %v4381 = vpop.f32.mrb[0].mxu0
        %v4382 = vadd.f32 %v4157, %v4381
        %v4383 = vpop.f32.mrb[0].mxu0
        %4384 = vmatprep.mubr.f32.mxu0 %v3752
        %4385 = vmatmul.mubr.f32.gmra.mrb[0].mxu0 %v3751
        %v4386 = vpop.f32.mrb[0].mxu0
        %v4387 = vadd.f32 %v4162, %v4386
        %v4388 = vpop.f32.mrb[0].mxu0
        %4389 = vmatprep.mubr.f32.mxu0 %v3754
        %4390 = vmatmul.mubr.f32.gmra.mrb[0].mxu0 %v3753
        %v4391 = vpop.f32.mrb[0].mxu0
        %v4392 = vadd.f32 %v4167, %v4391
        %v4393 = vpop.f32.mrb[0].mxu0
        %4394 = vmatprep.mubr.f32.mxu0 %v3756
        %4395 = vmatmul.mubr.f32.gmra.mrb[0].mxu0 %v3755
        %v4396 = vpop.f32.mrb[0].mxu0
        %v4397 = vadd.f32 %v4172, %v4396
        %v4398 = vpop.f32.mrb[0].mxu0
        %4399 = vdwg.mxu0
        %s4400 = scalar_lea.vmem [#allocation5], 1024
        %v4401 = vld [vmem:[%s4400] sm:$0xff]
        %v4402 = vld [vmem:[%s4400 + $0x8] sm:$0xff]
        %v4403 = vld [vmem:[%s4400 + $0x10] sm:$0xff]
        %v4404 = vld [vmem:[%s4400 + $0x18] sm:$0xff]
        %v4405 = vld [vmem:[%s4400 + $0x20] sm:$0xff]
        %v4406 = vld [vmem:[%s4400 + $0x28] sm:$0xff]
        %v4407 = vld [vmem:[%s4400 + $0x30] sm:$0xff]
        %v4408 = vld [vmem:[%s4400 + $0x38] sm:$0xff]
        %v4409 = vld [vmem:[%s4400 + $0x40] sm:$0xff]
        %v4410 = vld [vmem:[%s4400 + $0x48] sm:$0xff]
        %v4411 = vld [vmem:[%s4400 + $0x50] sm:$0xff]
        %v4412 = vld [vmem:[%s4400 + $0x58] sm:$0xff]
        %v4413 = vld [vmem:[%s4400 + $0x60] sm:$0xff]
        %v4414 = vld [vmem:[%s4400 + $0x68] sm:$0xff]
        %v4415 = vld [vmem:[%s4400 + $0x70] sm:$0xff]
        %v4416 = vld [vmem:[%s4400 + $0x78] sm:$0xff]
        %v4417 = vld [vmem:[%s4400 + $0x80] sm:$0xff]
        %v4418 = vld [vmem:[%s4400 + $0x88] sm:$0xff]
        %v4419 = vld [vmem:[%s4400 + $0x90] sm:$0xff]
        %v4420 = vld [vmem:[%s4400 + $0x98] sm:$0xff]
        %v4421 = vld [vmem:[%s4400 + $0xa0] sm:$0xff]
        %v4422 = vld [vmem:[%s4400 + $0xa8] sm:$0xff]
        %v4423 = vld [vmem:[%s4400 + $0xb0] sm:$0xff]
        %v4424 = vld [vmem:[%s4400 + $0xb8] sm:$0xff]
        %v4425 = vld [vmem:[%s4400 + $0xc0] sm:$0xff]
        %v4426 = vld [vmem:[%s4400 + $0xc8] sm:$0xff]
        %v4427 = vld [vmem:[%s4400 + $0xd0] sm:$0xff]
        %v4428 = vld [vmem:[%s4400 + $0xd8] sm:$0xff]
        %v4429 = vld [vmem:[%s4400 + $0xe0] sm:$0xff]
        %v4430 = vld [vmem:[%s4400 + $0xe8] sm:$0xff]
        %v4431 = vld [vmem:[%s4400 + $0xf0] sm:$0xff]
        %v4432 = vld [vmem:[%s4400 + $0xf8] sm:$0xff]
        %v4433 = vld [vmem:[%s4400 + $0x100] sm:$0xff]
        %v4434 = vld [vmem:[%s4400 + $0x108] sm:$0xff]
        %v4435 = vld [vmem:[%s4400 + $0x110] sm:$0xff]
        %v4436 = vld [vmem:[%s4400 + $0x118] sm:$0xff]
        %v4437 = vld [vmem:[%s4400 + $0x120] sm:$0xff]
        %v4438 = vld [vmem:[%s4400 + $0x128] sm:$0xff]
        %v4439 = vld [vmem:[%s4400 + $0x130] sm:$0xff]
        %v4440 = vld [vmem:[%s4400 + $0x138] sm:$0xff]
        %v4441 = vld [vmem:[%s4400 + $0x140] sm:$0xff]
        %v4442 = vld [vmem:[%s4400 + $0x148] sm:$0xff]
        %v4443 = vld [vmem:[%s4400 + $0x150] sm:$0xff]
        %v4444 = vld [vmem:[%s4400 + $0x158] sm:$0xff]
        %v4445 = vld [vmem:[%s4400 + $0x160] sm:$0xff]
        %v4446 = vld [vmem:[%s4400 + $0x168] sm:$0xff]
        %v4447 = vld [vmem:[%s4400 + $0x170] sm:$0xff]
        %v4448 = vld [vmem:[%s4400 + $0x178] sm:$0xff]
        %v4449 = vld [vmem:[%s4400 + $0x180] sm:$0xff]
        %v4450 = vld [vmem:[%s4400 + $0x188] sm:$0xff]
        %v4451 = vld [vmem:[%s4400 + $0x190] sm:$0xff]
        %v4452 = vld [vmem:[%s4400 + $0x198] sm:$0xff]
        %v4453 = vld [vmem:[%s4400 + $0x1a0] sm:$0xff]
        %v4454 = vld [vmem:[%s4400 + $0x1a8] sm:$0xff]
        %v4455 = vld [vmem:[%s4400 + $0x1b0] sm:$0xff]
        %v4456 = vld [vmem:[%s4400 + $0x1b8] sm:$0xff]
        %v4457 = vld [vmem:[%s4400 + $0x1c0] sm:$0xff]
        %v4458 = vld [vmem:[%s4400 + $0x1c8] sm:$0xff]
        %v4459 = vld [vmem:[%s4400 + $0x1d0] sm:$0xff]
        %v4460 = vld [vmem:[%s4400 + $0x1d8] sm:$0xff]
        %v4461 = vld [vmem:[%s4400 + $0x1e0] sm:$0xff]
        %v4462 = vld [vmem:[%s4400 + $0x1e8] sm:$0xff]
        %v4463 = vld [vmem:[%s4400 + $0x1f0] sm:$0xff]
        %v4464 = vld [vmem:[%s4400 + $0x1f8] sm:$0xff]
        %4465 = vrot.lane.b32.xlu0 %v3535, 126
        %v4466 = vpop.permute.xlu0 %4465
        %4467 = vrot.lane.b32.xlu0 %v3540, 126
        %v4468 = vpop.permute.xlu0 %4467
        %4469 = vrot.lane.b32.xlu0 %v3545, 126
        %v4470 = vpop.permute.xlu0 %4469
        %4471 = vrot.lane.b32.xlu0 %v3550, 126
        %v4472 = vpop.permute.xlu0 %4471
        %4473 = vrot.lane.b32.xlu0 %v3555, 126
        %v4474 = vpop.permute.xlu0 %4473
        %4475 = vrot.lane.b32.xlu0 %v3560, 126
        %v4476 = vpop.permute.xlu0 %4475
        %4477 = vrot.lane.b32.xlu0 %v3565, 126
        %v4478 = vpop.permute.xlu0 %4477
        %4479 = vrot.lane.b32.xlu0 %v3570, 126
        %v4480 = vpop.permute.xlu0 %4479
        %4481 = vrot.lane.b32.xlu0 %v3575, 126
        %v4482 = vpop.permute.xlu0 %4481
        %4483 = vrot.lane.b32.xlu0 %v3580, 126
        %v4484 = vpop.permute.xlu0 %4483
        %4485 = vrot.lane.b32.xlu0 %v3585, 126
        %v4486 = vpop.permute.xlu0 %4485
        %4487 = vrot.lane.b32.xlu0 %v3590, 126
        %v4488 = vpop.permute.xlu0 %4487
        %4489 = vrot.lane.b32.xlu0 %v3595, 126
        %v4490 = vpop.permute.xlu0 %4489
        %4491 = vrot.lane.b32.xlu0 %v3600, 126
        %v4492 = vpop.permute.xlu0 %4491
        %4493 = vrot.lane.b32.xlu0 %v3605, 126
        %v4494 = vpop.permute.xlu0 %4493
        %4495 = vrot.lane.b32.xlu0 %v3610, 126
        %v4496 = vpop.permute.xlu0 %4495
        %4497 = vrot.lane.b32.xlu0 %v3615, 126
        %v4498 = vpop.permute.xlu0 %4497
        %4499 = vrot.lane.b32.xlu0 %v3620, 126
        %v4500 = vpop.permute.xlu0 %4499
        %4501 = vrot.lane.b32.xlu0 %v3625, 126
        %v4502 = vpop.permute.xlu0 %4501
        %4503 = vrot.lane.b32.xlu0 %v3630, 126
        %v4504 = vpop.permute.xlu0 %4503
        %4505 = vrot.lane.b32.xlu0 %v3635, 126
        %v4506 = vpop.permute.xlu0 %4505
        %4507 = vrot.lane.b32.xlu0 %v3640, 126
        %v4508 = vpop.permute.xlu0 %4507
        %4509 = vrot.lane.b32.xlu0 %v3645, 126
        %v4510 = vpop.permute.xlu0 %4509
        %4511 = vrot.lane.b32.xlu0 %v3650, 126
        %v4512 = vpop.permute.xlu0 %4511
        %4513 = vrot.lane.b32.xlu0 %v3655, 126
        %v4514 = vpop.permute.xlu0 %4513
        %4515 = vrot.lane.b32.xlu0 %v3660, 126
        %v4516 = vpop.permute.xlu0 %4515
        %4517 = vrot.lane.b32.xlu0 %v3665, 126
        %v4518 = vpop.permute.xlu0 %4517
        %4519 = vrot.lane.b32.xlu0 %v3670, 126
        %v4520 = vpop.permute.xlu0 %4519
        %4521 = vrot.lane.b32.xlu0 %v3675, 126
        %v4522 = vpop.permute.xlu0 %4521
        %4523 = vrot.lane.b32.xlu0 %v3680, 126
        %v4524 = vpop.permute.xlu0 %4523
        %4525 = vrot.lane.b32.xlu0 %v3685, 126
        %v4526 = vpop.permute.xlu0 %4525
        %4527 = vrot.lane.b32.xlu0 %v3690, 126
        %v4528 = vpop.permute.xlu0 %4527
        %4561 = vmatprep.subr.mxu0 0.0
        %4562 = vmatpush1.msra.mxu0 %v4466
        %4563 = vmatprep.subr.mxu0 0.0
        %4564 = vmatpush1.msra.mxu0 %v4468
        %4565 = vmatprep.subr.mxu0 0.0
        %4566 = vmatpush1.msra.mxu0 %v4470
        %4567 = vmatprep.subr.mxu0 0.0
        %4568 = vmatpush1.msra.mxu0 %v4472
        %4569 = vmatprep.subr.mxu0 0.0
        %4570 = vmatpush1.msra.mxu0 %v4474
        %4571 = vmatprep.subr.mxu0 0.0
        %4572 = vmatpush1.msra.mxu0 %v4476
        %4573 = vmatprep.subr.mxu0 0.0
        %4574 = vmatpush1.msra.mxu0 %v4478
        %4575 = vmatprep.subr.mxu0 0.0
        %4576 = vmatpush1.msra.mxu0 %v4480
        %4577 = vmatprep.subr.mxu0 0.0
        %4578 = vmatpush1.msra.mxu0 %v4482
        %4579 = vmatprep.subr.mxu0 0.0
        %4580 = vmatpush1.msra.mxu0 %v4484
        %4581 = vmatprep.subr.mxu0 0.0
        %4582 = vmatpush1.msra.mxu0 %v4486
        %4583 = vmatprep.subr.mxu0 0.0
        %4584 = vmatpush1.msra.mxu0 %v4488
        %4585 = vmatprep.subr.mxu0 0.0
        %4586 = vmatpush1.msra.mxu0 %v4490
        %4587 = vmatprep.subr.mxu0 0.0
        %4588 = vmatpush1.msra.mxu0 %v4492
        %4589 = vmatprep.subr.mxu0 0.0
        %4590 = vmatpush1.msra.mxu0 %v4494
        %4591 = vmatprep.subr.mxu0 0.0
        %4592 = vmatpush1.msra.mxu0 %v4496
        %4593 = vmatprep.subr.mxu0 0.0
        %4594 = vmatpush1.msra.mxu0 %v4498
        %4595 = vmatprep.subr.mxu0 0.0
        %4596 = vmatpush1.msra.mxu0 %v4500
        %4597 = vmatprep.subr.mxu0 0.0
        %4598 = vmatpush1.msra.mxu0 %v4502
        %4599 = vmatprep.subr.mxu0 0.0
        %4600 = vmatpush1.msra.mxu0 %v4504
        %4601 = vmatprep.subr.mxu0 0.0
        %4602 = vmatpush1.msra.mxu0 %v4506
        %4603 = vmatprep.subr.mxu0 0.0
        %4604 = vmatpush1.msra.mxu0 %v4508
        %4605 = vmatprep.subr.mxu0 0.0
        %4606 = vmatpush1.msra.mxu0 %v4510
        %4607 = vmatprep.subr.mxu0 0.0
        %4608 = vmatpush1.msra.mxu0 %v4512
        %4609 = vmatprep.subr.mxu0 0.0
        %4610 = vmatpush1.msra.mxu0 %v4514
        %4611 = vmatprep.subr.mxu0 0.0
        %4612 = vmatpush1.msra.mxu0 %v4516
        %4613 = vmatprep.subr.mxu0 0.0
        %4614 = vmatpush1.msra.mxu0 %v4518
        %4615 = vmatprep.subr.mxu0 0.0
        %4616 = vmatpush1.msra.mxu0 %v4520
        %4617 = vmatprep.subr.mxu0 0.0
        %4618 = vmatpush1.msra.mxu0 %v4522
        %4619 = vmatprep.subr.mxu0 0.0
        %4620 = vmatpush1.msra.mxu0 %v4524
        %4621 = vmatprep.subr.mxu0 0.0
        %4622 = vmatpush1.msra.mxu0 %v4526
        %4623 = vmatprep.subr.mxu0 0.0
        %4624 = vmatpush1.msra.mxu0 %v4528
        %4625 = vmatprep.mubr.f32.mxu0 %v4402
        %4626 = vmatmul.mubr.f32.gmra.mrb[0].mxu0 %v4401
        %v4627 = vpop.f32.mrb[0].mxu0
        %v4628 = vadd.f32 0.0, %v4627
        %v4629 = vpop.f32.mrb[0].mxu0
        %4630 = vmatprep.mubr.f32.mxu0 %v4404
        %4631 = vmatmul.mubr.f32.gmra.mrb[0].mxu0 %v4403
        %v4632 = vpop.f32.mrb[0].mxu0
        %v4633 = vadd.f32 0.0, %v4632
        %v4634 = vpop.f32.mrb[0].mxu0
        %4635 = vmatprep.mubr.f32.mxu0 %v4406
        %4636 = vmatmul.mubr.f32.gmra.mrb[0].mxu0 %v4405
        %v4637 = vpop.f32.mrb[0].mxu0
        %v4638 = vadd.f32 0.0, %v4637
        %v4639 = vpop.f32.mrb[0].mxu0
        %4640 = vmatprep.mubr.f32.mxu0 %v4408
        %4641 = vmatmul.mubr.f32.gmra.mrb[0].mxu0 %v4407
        %v4642 = vpop.f32.mrb[0].mxu0
        %v4643 = vadd.f32 0.0, %v4642
        %v4644 = vpop.f32.mrb[0].mxu0
        %4645 = vmatprep.mubr.f32.mxu0 %v4410
        %4646 = vmatmul.mubr.f32.gmra.mrb[0].mxu0 %v4409
        %v4647 = vpop.f32.mrb[0].mxu0
        %v4648 = vadd.f32 0.0, %v4647
        %v4649 = vpop.f32.mrb[0].mxu0
        %4650 = vmatprep.mubr.f32.mxu0 %v4412
        %4651 = vmatmul.mubr.f32.gmra.mrb[0].mxu0 %v4411
        %v4652 = vpop.f32.mrb[0].mxu0
        %v4653 = vadd.f32 0.0, %v4652
        %v4654 = vpop.f32.mrb[0].mxu0
        %4655 = vmatprep.mubr.f32.mxu0 %v4414
        %4656 = vmatmul.mubr.f32.gmra.mrb[0].mxu0 %v4413
        %v4657 = vpop.f32.mrb[0].mxu0
        %v4658 = vadd.f32 0.0, %v4657
        %v4659 = vpop.f32.mrb[0].mxu0
        %4660 = vmatprep.mubr.f32.mxu0 %v4416
        %4661 = vmatmul.mubr.f32.gmra.mrb[0].mxu0 %v4415
        %v4662 = vpop.f32.mrb[0].mxu0
        %v4663 = vadd.f32 0.0, %v4662
        %v4664 = vpop.f32.mrb[0].mxu0
        %4665 = vmatprep.mubr.f32.mxu0 %v4418
        %4666 = vmatmul.mubr.f32.gmra.mrb[0].mxu0 %v4417
        %v4667 = vpop.f32.mrb[0].mxu0
        %v4668 = vadd.f32 0.0, %v4667
        %v4669 = vpop.f32.mrb[0].mxu0
        %4670 = vmatprep.mubr.f32.mxu0 %v4420
        %4671 = vmatmul.mubr.f32.gmra.mrb[0].mxu0 %v4419
        %v4672 = vpop.f32.mrb[0].mxu0
        %v4673 = vadd.f32 0.0, %v4672
        %v4674 = vpop.f32.mrb[0].mxu0
        %4675 = vmatprep.mubr.f32.mxu0 %v4422
        %4676 = vmatmul.mubr.f32.gmra.mrb[0].mxu0 %v4421
        %v4677 = vpop.f32.mrb[0].mxu0
        %v4678 = vadd.f32 0.0, %v4677
        %v4679 = vpop.f32.mrb[0].mxu0
        %4680 = vmatprep.mubr.f32.mxu0 %v4424
        %4681 = vmatmul.mubr.f32.gmra.mrb[0].mxu0 %v4423
        %v4682 = vpop.f32.mrb[0].mxu0
        %v4683 = vadd.f32 0.0, %v4682
        %v4684 = vpop.f32.mrb[0].mxu0
        %4685 = vmatprep.mubr.f32.mxu0 %v4426
        %4686 = vmatmul.mubr.f32.gmra.mrb[0].mxu0 %v4425
        %v4687 = vpop.f32.mrb[0].mxu0
        %v4688 = vadd.f32 0.0, %v4687
        %v4689 = vpop.f32.mrb[0].mxu0
        %4690 = vmatprep.mubr.f32.mxu0 %v4428
        %4691 = vmatmul.mubr.f32.gmra.mrb[0].mxu0 %v4427
        %v4692 = vpop.f32.mrb[0].mxu0
        %v4693 = vadd.f32 0.0, %v4692
        %v4694 = vpop.f32.mrb[0].mxu0
        %4695 = vmatprep.mubr.f32.mxu0 %v4430
        %4696 = vmatmul.mubr.f32.gmra.mrb[0].mxu0 %v4429
        %v4697 = vpop.f32.mrb[0].mxu0
        %v4698 = vadd.f32 0.0, %v4697
        %v4699 = vpop.f32.mrb[0].mxu0
        %4700 = vmatprep.mubr.f32.mxu0 %v4432
        %4701 = vmatmul.mubr.f32.gmra.mrb[0].mxu0 %v4431
        %v4702 = vpop.f32.mrb[0].mxu0
        %v4703 = vadd.f32 0.0, %v4702
        %v4704 = vpop.f32.mrb[0].mxu0
        %4705 = vmatprep.mubr.f32.mxu0 %v4434
        %4706 = vmatmul.mubr.f32.gmra.mrb[0].mxu0 %v4433
        %v4707 = vpop.f32.mrb[0].mxu0
        %v4708 = vadd.f32 0.0, %v4707
        %v4709 = vpop.f32.mrb[0].mxu0
        %4710 = vmatprep.mubr.f32.mxu0 %v4436
        %4711 = vmatmul.mubr.f32.gmra.mrb[0].mxu0 %v4435
        %v4712 = vpop.f32.mrb[0].mxu0
        %v4713 = vadd.f32 0.0, %v4712
        %v4714 = vpop.f32.mrb[0].mxu0
        %4715 = vmatprep.mubr.f32.mxu0 %v4438
        %4716 = vmatmul.mubr.f32.gmra.mrb[0].mxu0 %v4437
        %v4717 = vpop.f32.mrb[0].mxu0
        %v4718 = vadd.f32 0.0, %v4717
        %v4719 = vpop.f32.mrb[0].mxu0
        %4720 = vmatprep.mubr.f32.mxu0 %v4440
        %4721 = vmatmul.mubr.f32.gmra.mrb[0].mxu0 %v4439
        %v4722 = vpop.f32.mrb[0].mxu0
        %v4723 = vadd.f32 0.0, %v4722
        %v4724 = vpop.f32.mrb[0].mxu0
        %4725 = vmatprep.mubr.f32.mxu0 %v4442
        %4726 = vmatmul.mubr.f32.gmra.mrb[0].mxu0 %v4441
        %v4727 = vpop.f32.mrb[0].mxu0
        %v4728 = vadd.f32 0.0, %v4727
        %v4729 = vpop.f32.mrb[0].mxu0
        %4730 = vmatprep.mubr.f32.mxu0 %v4444
        %4731 = vmatmul.mubr.f32.gmra.mrb[0].mxu0 %v4443
        %v4732 = vpop.f32.mrb[0].mxu0
        %v4733 = vadd.f32 0.0, %v4732
        %v4734 = vpop.f32.mrb[0].mxu0
        %4735 = vmatprep.mubr.f32.mxu0 %v4446
        %4736 = vmatmul.mubr.f32.gmra.mrb[0].mxu0 %v4445
        %v4737 = vpop.f32.mrb[0].mxu0
        %v4738 = vadd.f32 0.0, %v4737
        %v4739 = vpop.f32.mrb[0].mxu0
        %4740 = vmatprep.mubr.f32.mxu0 %v4448
        %4741 = vmatmul.mubr.f32.gmra.mrb[0].mxu0 %v4447
        %v4742 = vpop.f32.mrb[0].mxu0
        %v4743 = vadd.f32 0.0, %v4742
        %v4744 = vpop.f32.mrb[0].mxu0
        %4745 = vmatprep.mubr.f32.mxu0 %v4450
        %4746 = vmatmul.mubr.f32.gmra.mrb[0].mxu0 %v4449
        %v4747 = vpop.f32.mrb[0].mxu0
        %v4748 = vadd.f32 0.0, %v4747
        %v4749 = vpop.f32.mrb[0].mxu0
        %4750 = vmatprep.mubr.f32.mxu0 %v4452
        %4751 = vmatmul.mubr.f32.gmra.mrb[0].mxu0 %v4451
        %v4752 = vpop.f32.mrb[0].mxu0
        %v4753 = vadd.f32 0.0, %v4752
        %v4754 = vpop.f32.mrb[0].mxu0
        %4755 = vmatprep.mubr.f32.mxu0 %v4454
        %4756 = vmatmul.mubr.f32.gmra.mrb[0].mxu0 %v4453
        %v4757 = vpop.f32.mrb[0].mxu0
        %v4758 = vadd.f32 0.0, %v4757
        %v4759 = vpop.f32.mrb[0].mxu0
        %4760 = vmatprep.mubr.f32.mxu0 %v4456
        %4761 = vmatmul.mubr.f32.gmra.mrb[0].mxu0 %v4455
        %v4762 = vpop.f32.mrb[0].mxu0
        %v4763 = vadd.f32 0.0, %v4762
        %v4764 = vpop.f32.mrb[0].mxu0
        %4765 = vmatprep.mubr.f32.mxu0 %v4458
        %4766 = vmatmul.mubr.f32.gmra.mrb[0].mxu0 %v4457
        %v4767 = vpop.f32.mrb[0].mxu0
        %v4768 = vadd.f32 0.0, %v4767
        %v4769 = vpop.f32.mrb[0].mxu0
        %4770 = vmatprep.mubr.f32.mxu0 %v4460
        %4771 = vmatmul.mubr.f32.gmra.mrb[0].mxu0 %v4459
        %v4772 = vpop.f32.mrb[0].mxu0
        %v4773 = vadd.f32 0.0, %v4772
        %v4774 = vpop.f32.mrb[0].mxu0
        %4775 = vmatprep.mubr.f32.mxu0 %v4462
        %4776 = vmatmul.mubr.f32.gmra.mrb[0].mxu0 %v4461
        %v4777 = vpop.f32.mrb[0].mxu0
        %v4778 = vadd.f32 0.0, %v4777
        %v4779 = vpop.f32.mrb[0].mxu0
        %4780 = vmatprep.mubr.f32.mxu0 %v4464
        %4781 = vmatmul.mubr.f32.gmra.mrb[0].mxu0 %v4463
        %v4782 = vpop.f32.mrb[0].mxu0
        %v4783 = vadd.f32 0.0, %v4782
        %v4784 = vpop.f32.mrb[0].mxu0
        %4785 = vdwg.mxu0
        %v4786 = vadd.f32 %v4242, %v4628
        %v4787 = vadd.f32 %v4247, %v4633
        %v4788 = vadd.f32 %v4252, %v4638
        %v4789 = vadd.f32 %v4257, %v4643
        %v4790 = vadd.f32 %v4262, %v4648
        %v4791 = vadd.f32 %v4267, %v4653
        %v4792 = vadd.f32 %v4272, %v4658
        %v4793 = vadd.f32 %v4277, %v4663
        %v4794 = vadd.f32 %v4282, %v4668
        %v4795 = vadd.f32 %v4287, %v4673
        %v4796 = vadd.f32 %v4292, %v4678
        %v4797 = vadd.f32 %v4297, %v4683
        %v4798 = vadd.f32 %v4302, %v4688
        %v4799 = vadd.f32 %v4307, %v4693
        %v4800 = vadd.f32 %v4312, %v4698
        %v4801 = vadd.f32 %v4317, %v4703
        %v4802 = vadd.f32 %v4322, %v4708
        %v4803 = vadd.f32 %v4327, %v4713
        %v4804 = vadd.f32 %v4332, %v4718
        %v4805 = vadd.f32 %v4337, %v4723
        %v4806 = vadd.f32 %v4342, %v4728
        %v4807 = vadd.f32 %v4347, %v4733
        %v4808 = vadd.f32 %v4352, %v4738
        %v4809 = vadd.f32 %v4357, %v4743
        %v4810 = vadd.f32 %v4362, %v4748
        %v4811 = vadd.f32 %v4367, %v4753
        %v4812 = vadd.f32 %v4372, %v4758
        %v4813 = vadd.f32 %v4377, %v4763
        %v4814 = vadd.f32 %v4382, %v4768
        %v4815 = vadd.f32 %v4387, %v4773
        %v4816 = vadd.f32 %v4392, %v4778
        %v4817 = vadd.f32 %v4397, %v4783
        %v4818 = vld [vmem:[%s6] sm:$0xff]
        %v4819 = vld [vmem:[%s6 + $0x8] sm:$0xff]
        %v4820 = vld [vmem:[%s6 + $0x10] sm:$0xff]
        %v4821 = vld [vmem:[%s6 + $0x18] sm:$0xff]
        %v4822 = vld [vmem:[%s6 + $0x20] sm:$0xff]
        %v4823 = vld [vmem:[%s6 + $0x28] sm:$0xff]
        %v4824 = vld [vmem:[%s6 + $0x30] sm:$0xff]
        %v4825 = vld [vmem:[%s6 + $0x38] sm:$0xff]
        %v4826 = vld [vmem:[%s6 + $0x40] sm:$0xff]
        %v4827 = vld [vmem:[%s6 + $0x48] sm:$0xff]
        %v4828 = vld [vmem:[%s6 + $0x50] sm:$0xff]
        %v4829 = vld [vmem:[%s6 + $0x58] sm:$0xff]
        %v4830 = vld [vmem:[%s6 + $0x60] sm:$0xff]
        %v4831 = vld [vmem:[%s6 + $0x68] sm:$0xff]
        %v4832 = vld [vmem:[%s6 + $0x70] sm:$0xff]
        %v4833 = vld [vmem:[%s6 + $0x78] sm:$0xff]
        %v4834 = vld [vmem:[%s6 + $0x80] sm:$0xff]
        %v4835 = vld [vmem:[%s6 + $0x88] sm:$0xff]
        %v4836 = vld [vmem:[%s6 + $0x90] sm:$0xff]
        %v4837 = vld [vmem:[%s6 + $0x98] sm:$0xff]
        %v4838 = vld [vmem:[%s6 + $0xa0] sm:$0xff]
        %v4839 = vld [vmem:[%s6 + $0xa8] sm:$0xff]
        %v4840 = vld [vmem:[%s6 + $0xb0] sm:$0xff]
        %v4841 = vld [vmem:[%s6 + $0xb8] sm:$0xff]
        %v4842 = vld [vmem:[%s6 + $0xc0] sm:$0xff]
        %v4843 = vld [vmem:[%s6 + $0xc8] sm:$0xff]
        %v4844 = vld [vmem:[%s6 + $0xd0] sm:$0xff]
        %v4845 = vld [vmem:[%s6 + $0xd8] sm:$0xff]
        %v4846 = vld [vmem:[%s6 + $0xe0] sm:$0xff]
        %v4847 = vld [vmem:[%s6 + $0xe8] sm:$0xff]
        %v4848 = vld [vmem:[%s6 + $0xf0] sm:$0xff]
        %v4849 = vld [vmem:[%s6 + $0xf8] sm:$0xff]
        %4851 = vset.pattern.permute.xlu0 0
        %4852 = vperm.xlu0 %4851, %v4818
        %v4853 = vpop.permute.xlu0 %4852
        %4856 = vset.pattern.permute.xlu0 0
        %4857 = vperm.xlu0 %4856, %v4819
        %v4858 = vpop.permute.xlu0 %4857
        %4861 = vset.pattern.permute.xlu0 0
        %4862 = vperm.xlu0 %4861, %v4820
        %v4863 = vpop.permute.xlu0 %4862
        %4866 = vset.pattern.permute.xlu0 0
        %4867 = vperm.xlu0 %4866, %v4821
        %v4868 = vpop.permute.xlu0 %4867
        %4871 = vset.pattern.permute.xlu0 0
        %4872 = vperm.xlu0 %4871, %v4822
        %v4873 = vpop.permute.xlu0 %4872
        %4876 = vset.pattern.permute.xlu0 0
        %4877 = vperm.xlu0 %4876, %v4823
        %v4878 = vpop.permute.xlu0 %4877
        %4881 = vset.pattern.permute.xlu0 0
        %4882 = vperm.xlu0 %4881, %v4824
        %v4883 = vpop.permute.xlu0 %4882
        %4886 = vset.pattern.permute.xlu0 0
        %4887 = vperm.xlu0 %4886, %v4825
        %v4888 = vpop.permute.xlu0 %4887
        %4891 = vset.pattern.permute.xlu0 0
        %4892 = vperm.xlu0 %4891, %v4826
        %v4893 = vpop.permute.xlu0 %4892
        %4896 = vset.pattern.permute.xlu0 0
        %4897 = vperm.xlu0 %4896, %v4827
        %v4898 = vpop.permute.xlu0 %4897
        %4901 = vset.pattern.permute.xlu0 0
        %4902 = vperm.xlu0 %4901, %v4828
        %v4903 = vpop.permute.xlu0 %4902
        %4906 = vset.pattern.permute.xlu0 0
        %4907 = vperm.xlu0 %4906, %v4829
        %v4908 = vpop.permute.xlu0 %4907
        %4911 = vset.pattern.permute.xlu0 0
        %4912 = vperm.xlu0 %4911, %v4830
        %v4913 = vpop.permute.xlu0 %4912
        %4916 = vset.pattern.permute.xlu0 0
        %4917 = vperm.xlu0 %4916, %v4831
        %v4918 = vpop.permute.xlu0 %4917
        %4921 = vset.pattern.permute.xlu0 0
        %4922 = vperm.xlu0 %4921, %v4832
        %v4923 = vpop.permute.xlu0 %4922
        %4926 = vset.pattern.permute.xlu0 0
        %4927 = vperm.xlu0 %4926, %v4833
        %v4928 = vpop.permute.xlu0 %4927
        %4931 = vset.pattern.permute.xlu0 0
        %4932 = vperm.xlu0 %4931, %v4834
        %v4933 = vpop.permute.xlu0 %4932
        %4936 = vset.pattern.permute.xlu0 0
        %4937 = vperm.xlu0 %4936, %v4835
        %v4938 = vpop.permute.xlu0 %4937
        %4941 = vset.pattern.permute.xlu0 0
        %4942 = vperm.xlu0 %4941, %v4836
        %v4943 = vpop.permute.xlu0 %4942
        %4946 = vset.pattern.permute.xlu0 0
        %4947 = vperm.xlu0 %4946, %v4837
        %v4948 = vpop.permute.xlu0 %4947
        %4951 = vset.pattern.permute.xlu0 0
        %4952 = vperm.xlu0 %4951, %v4838
        %v4953 = vpop.permute.xlu0 %4952
        %4956 = vset.pattern.permute.xlu0 0
        %4957 = vperm.xlu0 %4956, %v4839
        %v4958 = vpop.permute.xlu0 %4957
        %4961 = vset.pattern.permute.xlu0 0
        %4962 = vperm.xlu0 %4961, %v4840
        %v4963 = vpop.permute.xlu0 %4962
        %4966 = vset.pattern.permute.xlu0 0
        %4967 = vperm.xlu0 %4966, %v4841
        %v4968 = vpop.permute.xlu0 %4967
        %4971 = vset.pattern.permute.xlu0 0
        %4972 = vperm.xlu0 %4971, %v4842
        %v4973 = vpop.permute.xlu0 %4972
        %4976 = vset.pattern.permute.xlu0 0
        %4977 = vperm.xlu0 %4976, %v4843
        %v4978 = vpop.permute.xlu0 %4977
        %4981 = vset.pattern.permute.xlu0 0
        %4982 = vperm.xlu0 %4981, %v4844
        %v4983 = vpop.permute.xlu0 %4982
        %4986 = vset.pattern.permute.xlu0 0
        %4987 = vperm.xlu0 %4986, %v4845
        %v4988 = vpop.permute.xlu0 %4987
        %4991 = vset.pattern.permute.xlu0 0
        %4992 = vperm.xlu0 %4991, %v4846
        %v4993 = vpop.permute.xlu0 %4992
        %4996 = vset.pattern.permute.xlu0 0
        %4997 = vperm.xlu0 %4996, %v4847
        %v4998 = vpop.permute.xlu0 %4997
        %5001 = vset.pattern.permute.xlu0 0
        %5002 = vperm.xlu0 %5001, %v4848
        %v5003 = vpop.permute.xlu0 %5002
        %5006 = vset.pattern.permute.xlu0 0
        %5007 = vperm.xlu0 %5006, %v4849
        %v5008 = vpop.permute.xlu0 %5007
        %v5010 = vadd.f32 %v4786, %v4853
        %v5011 = vadd.f32 %v4787, %v4858
        %v5012 = vadd.f32 %v4788, %v4863
        %v5013 = vadd.f32 %v4789, %v4868
        %v5014 = vadd.f32 %v4790, %v4873
        %v5015 = vadd.f32 %v4791, %v4878
        %v5016 = vadd.f32 %v4792, %v4883
        %v5017 = vadd.f32 %v4793, %v4888
        %v5018 = vadd.f32 %v4794, %v4893
        %v5019 = vadd.f32 %v4795, %v4898
        %v5020 = vadd.f32 %v4796, %v4903
        %v5021 = vadd.f32 %v4797, %v4908
        %v5022 = vadd.f32 %v4798, %v4913
        %v5023 = vadd.f32 %v4799, %v4918
        %v5024 = vadd.f32 %v4800, %v4923
        %v5025 = vadd.f32 %v4801, %v4928
        %v5026 = vadd.f32 %v4802, %v4933
        %v5027 = vadd.f32 %v4803, %v4938
        %v5028 = vadd.f32 %v4804, %v4943
        %v5029 = vadd.f32 %v4805, %v4948
        %v5030 = vadd.f32 %v4806, %v4953
        %v5031 = vadd.f32 %v4807, %v4958
        %v5032 = vadd.f32 %v4808, %v4963
        %v5033 = vadd.f32 %v4809, %v4968
        %v5034 = vadd.f32 %v4810, %v4973
        %v5035 = vadd.f32 %v4811, %v4978
        %v5036 = vadd.f32 %v4812, %v4983
        %v5037 = vadd.f32 %v4813, %v4988
        %v5038 = vadd.f32 %v4814, %v4993
        %v5039 = vadd.f32 %v4815, %v4998
        %v5040 = vadd.f32 %v4816, %v5003
        %v5041 = vadd.f32 %v4817, %v5008
        %v5042 = vmax.f32 %v5010, 0.0
        %v5043 = vmax.f32 %v5011, 0.0
        %v5044 = vmax.f32 %v5012, 0.0
        %v5045 = vmax.f32 %v5013, 0.0
        %v5046 = vmax.f32 %v5014, 0.0
        %v5047 = vmax.f32 %v5015, 0.0
        %v5048 = vmax.f32 %v5016, 0.0
        %v5049 = vmax.f32 %v5017, 0.0
        %v5050 = vmax.f32 %v5018, 0.0
        %v5051 = vmax.f32 %v5019, 0.0
        %v5052 = vmax.f32 %v5020, 0.0
        %v5053 = vmax.f32 %v5021, 0.0
        %v5054 = vmax.f32 %v5022, 0.0
        %v5055 = vmax.f32 %v5023, 0.0
        %v5056 = vmax.f32 %v5024, 0.0
        %v5057 = vmax.f32 %v5025, 0.0
        %v5058 = vmax.f32 %v5026, 0.0
        %v5059 = vmax.f32 %v5027, 0.0
        %v5060 = vmax.f32 %v5028, 0.0
        %v5061 = vmax.f32 %v5029, 0.0
        %v5062 = vmax.f32 %v5030, 0.0
        %v5063 = vmax.f32 %v5031, 0.0
        %v5064 = vmax.f32 %v5032, 0.0
        %v5065 = vmax.f32 %v5033, 0.0
        %v5066 = vmax.f32 %v5034, 0.0
        %v5067 = vmax.f32 %v5035, 0.0
        %v5068 = vmax.f32 %v5036, 0.0
        %v5069 = vmax.f32 %v5037, 0.0
        %v5070 = vmax.f32 %v5038, 0.0
        %v5071 = vmax.f32 %v5039, 0.0
        %v5072 = vmax.f32 %v5040, 0.0
        %v5073 = vmax.f32 %v5041, 0.0
        %5106 = vrot.lane.b32.xlu0 %v5042, 127
        %v5107 = vpop.permute.xlu0 %5106
        %5108 = vrot.lane.b32.xlu0 %v5043, 127
        %v5109 = vpop.permute.xlu0 %5108
        %5110 = vrot.lane.b32.xlu0 %v5044, 127
        %v5111 = vpop.permute.xlu0 %5110
        %5112 = vrot.lane.b32.xlu0 %v5045, 127
        %v5113 = vpop.permute.xlu0 %5112
        %5114 = vrot.lane.b32.xlu0 %v5046, 127
        %v5115 = vpop.permute.xlu0 %5114
        %5116 = vrot.lane.b32.xlu0 %v5047, 127
        %v5117 = vpop.permute.xlu0 %5116
        %5118 = vrot.lane.b32.xlu0 %v5048, 127
        %v5119 = vpop.permute.xlu0 %5118
        %5120 = vrot.lane.b32.xlu0 %v5049, 127
        %v5121 = vpop.permute.xlu0 %5120
        %5122 = vrot.lane.b32.xlu0 %v5050, 127
        %v5123 = vpop.permute.xlu0 %5122
        %5124 = vrot.lane.b32.xlu0 %v5051, 127
        %v5125 = vpop.permute.xlu0 %5124
        %5126 = vrot.lane.b32.xlu0 %v5052, 127
        %v5127 = vpop.permute.xlu0 %5126
        %5128 = vrot.lane.b32.xlu0 %v5053, 127
        %v5129 = vpop.permute.xlu0 %5128
        %5130 = vrot.lane.b32.xlu0 %v5054, 127
        %v5131 = vpop.permute.xlu0 %5130
        %5132 = vrot.lane.b32.xlu0 %v5055, 127
        %v5133 = vpop.permute.xlu0 %5132
        %5134 = vrot.lane.b32.xlu0 %v5056, 127
        %v5135 = vpop.permute.xlu0 %5134
        %5136 = vrot.lane.b32.xlu0 %v5057, 127
        %v5137 = vpop.permute.xlu0 %5136
        %5138 = vrot.lane.b32.xlu0 %v5058, 127
        %v5139 = vpop.permute.xlu0 %5138
        %5140 = vrot.lane.b32.xlu0 %v5059, 127
        %v5141 = vpop.permute.xlu0 %5140
        %5142 = vrot.lane.b32.xlu0 %v5060, 127
        %v5143 = vpop.permute.xlu0 %5142
        %5144 = vrot.lane.b32.xlu0 %v5061, 127
        %v5145 = vpop.permute.xlu0 %5144
        %5146 = vrot.lane.b32.xlu0 %v5062, 127
        %v5147 = vpop.permute.xlu0 %5146
        %5148 = vrot.lane.b32.xlu0 %v5063, 127
        %v5149 = vpop.permute.xlu0 %5148
        %5150 = vrot.lane.b32.xlu0 %v5064, 127
        %v5151 = vpop.permute.xlu0 %5150
        %5152 = vrot.lane.b32.xlu0 %v5065, 127
        %v5153 = vpop.permute.xlu0 %5152
        %5154 = vrot.lane.b32.xlu0 %v5066, 127
        %v5155 = vpop.permute.xlu0 %5154
        %5156 = vrot.lane.b32.xlu0 %v5067, 127
        %v5157 = vpop.permute.xlu0 %5156
        %5158 = vrot.lane.b32.xlu0 %v5068, 127
        %v5159 = vpop.permute.xlu0 %5158
        %5160 = vrot.lane.b32.xlu0 %v5069, 127
        %v5161 = vpop.permute.xlu0 %5160
        %5162 = vrot.lane.b32.xlu0 %v5070, 127
        %v5163 = vpop.permute.xlu0 %5162
        %5164 = vrot.lane.b32.xlu0 %v5071, 127
        %v5165 = vpop.permute.xlu0 %5164
        %5166 = vrot.lane.b32.xlu0 %v5072, 127
        %v5167 = vpop.permute.xlu0 %5166
        %5168 = vrot.lane.b32.xlu0 %v5073, 127
        %v5169 = vpop.permute.xlu0 %5168
        %v5202 = vmax.f32 %v5042, %v5107
        %v5203 = vmax.f32 %v5043, %v5109
        %v5204 = vmax.f32 %v5044, %v5111
        %v5205 = vmax.f32 %v5045, %v5113
        %v5206 = vmax.f32 %v5046, %v5115
        %v5207 = vmax.f32 %v5047, %v5117
        %v5208 = vmax.f32 %v5048, %v5119
        %v5209 = vmax.f32 %v5049, %v5121
        %v5210 = vmax.f32 %v5050, %v5123
        %v5211 = vmax.f32 %v5051, %v5125
        %v5212 = vmax.f32 %v5052, %v5127
        %v5213 = vmax.f32 %v5053, %v5129
        %v5214 = vmax.f32 %v5054, %v5131
        %v5215 = vmax.f32 %v5055, %v5133
        %v5216 = vmax.f32 %v5056, %v5135
        %v5217 = vmax.f32 %v5057, %v5137
        %v5218 = vmax.f32 %v5058, %v5139
        %v5219 = vmax.f32 %v5059, %v5141
        %v5220 = vmax.f32 %v5060, %v5143
        %v5221 = vmax.f32 %v5061, %v5145
        %v5222 = vmax.f32 %v5062, %v5147
        %v5223 = vmax.f32 %v5063, %v5149
        %v5224 = vmax.f32 %v5064, %v5151
        %v5225 = vmax.f32 %v5065, %v5153
        %v5226 = vmax.f32 %v5066, %v5155
        %v5227 = vmax.f32 %v5067, %v5157
        %v5228 = vmax.f32 %v5068, %v5159
        %v5229 = vmax.f32 %v5069, %v5161
        %v5230 = vmax.f32 %v5070, %v5163
        %v5231 = vmax.f32 %v5071, %v5165
        %v5232 = vmax.f32 %v5072, %v5167
        %v5233 = vmax.f32 %v5073, %v5169
        %5234 = vrot.lane.b32.xlu0 %v5042, 126
        %v5235 = vpop.permute.xlu0 %5234
        %5236 = vrot.lane.b32.xlu0 %v5043, 126
        %v5237 = vpop.permute.xlu0 %5236
        %5238 = vrot.lane.b32.xlu0 %v5044, 126
        %v5239 = vpop.permute.xlu0 %5238
        %5240 = vrot.lane.b32.xlu0 %v5045, 126
        %v5241 = vpop.permute.xlu0 %5240
        %5242 = vrot.lane.b32.xlu0 %v5046, 126
        %v5243 = vpop.permute.xlu0 %5242
        %5244 = vrot.lane.b32.xlu0 %v5047, 126
        %v5245 = vpop.permute.xlu0 %5244
        %5246 = vrot.lane.b32.xlu0 %v5048, 126
        %v5247 = vpop.permute.xlu0 %5246
        %5248 = vrot.lane.b32.xlu0 %v5049, 126
        %v5249 = vpop.permute.xlu0 %5248
        %5250 = vrot.lane.b32.xlu0 %v5050, 126
        %v5251 = vpop.permute.xlu0 %5250
        %5252 = vrot.lane.b32.xlu0 %v5051, 126
        %v5253 = vpop.permute.xlu0 %5252
        %5254 = vrot.lane.b32.xlu0 %v5052, 126
        %v5255 = vpop.permute.xlu0 %5254
        %5256 = vrot.lane.b32.xlu0 %v5053, 126
        %v5257 = vpop.permute.xlu0 %5256
        %5258 = vrot.lane.b32.xlu0 %v5054, 126
        %v5259 = vpop.permute.xlu0 %5258
        %5260 = vrot.lane.b32.xlu0 %v5055, 126
        %v5261 = vpop.permute.xlu0 %5260
        %5262 = vrot.lane.b32.xlu0 %v5056, 126
        %v5263 = vpop.permute.xlu0 %5262
        %5264 = vrot.lane.b32.xlu0 %v5057, 126
        %v5265 = vpop.permute.xlu0 %5264
        %5266 = vrot.lane.b32.xlu0 %v5058, 126
        %v5267 = vpop.permute.xlu0 %5266
        %5268 = vrot.lane.b32.xlu0 %v5059, 126
        %v5269 = vpop.permute.xlu0 %5268
        %5270 = vrot.lane.b32.xlu0 %v5060, 126
        %v5271 = vpop.permute.xlu0 %5270
        %5272 = vrot.lane.b32.xlu0 %v5061, 126
        %v5273 = vpop.permute.xlu0 %5272
        %5274 = vrot.lane.b32.xlu0 %v5062, 126
        %v5275 = vpop.permute.xlu0 %5274
        %5276 = vrot.lane.b32.xlu0 %v5063, 126
        %v5277 = vpop.permute.xlu0 %5276
        %5278 = vrot.lane.b32.xlu0 %v5064, 126
        %v5279 = vpop.permute.xlu0 %5278
        %5280 = vrot.lane.b32.xlu0 %v5065, 126
        %v5281 = vpop.permute.xlu0 %5280
        %5282 = vrot.lane.b32.xlu0 %v5066, 126
        %v5283 = vpop.permute.xlu0 %5282
        %5284 = vrot.lane.b32.xlu0 %v5067, 126
        %v5285 = vpop.permute.xlu0 %5284
        %5286 = vrot.lane.b32.xlu0 %v5068, 126
        %v5287 = vpop.permute.xlu0 %5286
        %5288 = vrot.lane.b32.xlu0 %v5069, 126
        %v5289 = vpop.permute.xlu0 %5288
        %5290 = vrot.lane.b32.xlu0 %v5070, 126
        %v5291 = vpop.permute.xlu0 %5290
        %5292 = vrot.lane.b32.xlu0 %v5071, 126
        %v5293 = vpop.permute.xlu0 %5292
        %5294 = vrot.lane.b32.xlu0 %v5072, 126
        %v5295 = vpop.permute.xlu0 %5294
        %5296 = vrot.lane.b32.xlu0 %v5073, 126
        %v5297 = vpop.permute.xlu0 %5296
        %v5330 = vmax.f32 %v5202, %v5235
        %v5331 = vmax.f32 %v5203, %v5237
        %v5332 = vmax.f32 %v5204, %v5239
        %v5333 = vmax.f32 %v5205, %v5241
        %v5334 = vmax.f32 %v5206, %v5243
        %v5335 = vmax.f32 %v5207, %v5245
        %v5336 = vmax.f32 %v5208, %v5247
        %v5337 = vmax.f32 %v5209, %v5249
        %v5338 = vmax.f32 %v5210, %v5251
        %v5339 = vmax.f32 %v5211, %v5253
        %v5340 = vmax.f32 %v5212, %v5255
        %v5341 = vmax.f32 %v5213, %v5257
        %v5342 = vmax.f32 %v5214, %v5259
        %v5343 = vmax.f32 %v5215, %v5261
        %v5344 = vmax.f32 %v5216, %v5263
        %v5345 = vmax.f32 %v5217, %v5265
        %v5346 = vmax.f32 %v5218, %v5267
        %v5347 = vmax.f32 %v5219, %v5269
        %v5348 = vmax.f32 %v5220, %v5271
        %v5349 = vmax.f32 %v5221, %v5273
        %v5350 = vmax.f32 %v5222, %v5275
        %v5351 = vmax.f32 %v5223, %v5277
        %v5352 = vmax.f32 %v5224, %v5279
        %v5353 = vmax.f32 %v5225, %v5281
        %v5354 = vmax.f32 %v5226, %v5283
        %v5355 = vmax.f32 %v5227, %v5285
        %v5356 = vmax.f32 %v5228, %v5287
        %v5357 = vmax.f32 %v5229, %v5289
        %v5358 = vmax.f32 %v5230, %v5291
        %v5359 = vmax.f32 %v5231, %v5293
        %v5360 = vmax.f32 %v5232, %v5295
        %v5361 = vmax.f32 %v5233, %v5297
        %vm5362 = vcmask 64512
        %v5364 = vsel %vm5362, %v5330, 0
        %v5367 = vsel %vm5362, %v5331, 0
        %v5370 = vsel %vm5362, %v5332, 0
        %v5373 = vsel %vm5362, %v5333, 0
        %v5376 = vsel %vm5362, %v5334, 0
        %v5379 = vsel %vm5362, %v5335, 0
        %v5382 = vsel %vm5362, %v5336, 0
        %v5385 = vsel %vm5362, %v5337, 0
        %v5388 = vsel %vm5362, %v5338, 0
        %v5391 = vsel %vm5362, %v5339, 0
        %v5394 = vsel %vm5362, %v5340, 0
        %v5397 = vsel %vm5362, %v5341, 0
        %v5400 = vsel %vm5362, %v5342, 0
        %v5403 = vsel %vm5362, %v5343, 0
        %v5406 = vsel %vm5362, %v5344, 0
        %v5409 = vsel %vm5362, %v5345, 0
        %v5412 = vsel %vm5362, %v5346, 0
        %v5415 = vsel %vm5362, %v5347, 0
        %v5418 = vsel %vm5362, %v5348, 0
        %v5421 = vsel %vm5362, %v5349, 0
        %v5424 = vsel %vm5362, %v5350, 0
        %v5427 = vsel %vm5362, %v5351, 0
        %v5430 = vsel %vm5362, %v5352, 0
        %v5433 = vsel %vm5362, %v5353, 0
        %v5436 = vsel %vm5362, %v5354, 0
        %v5439 = vsel %vm5362, %v5355, 0
        %v5442 = vsel %vm5362, %v5356, 0
        %v5445 = vsel %vm5362, %v5357, 0
        %v5448 = vsel %vm5362, %v5358, 0
        %v5451 = vsel %vm5362, %v5359, 0
        %v5454 = vsel %vm5362, %v5360, 0
        %v5457 = vsel %vm5362, %v5361, 0
        %5459 = vmatprep.subr.mxu0 0.0
        %5460 = vmatpush1.msra.mxu0 %v1021
        %5461 = vmatprep.subr.mxu0 0.0
        %5462 = vmatpush1.msra.mxu0 0.0
        %5463 = vmatprep.subr.mxu0 0.0
        %5464 = vmatpush1.msra.mxu0 0.0
        %5465 = vmatprep.subr.mxu0 0.0
        %5466 = vmatpush1.msra.mxu0 0.0
        %5467 = vmatprep.subr.mxu0 0.0
        %5468 = vmatpush1.msra.mxu0 0.0
        %5469 = vmatprep.subr.mxu0 0.0
        %5470 = vmatpush1.msra.mxu0 0.0
        %5471 = vmatprep.subr.mxu0 0.0
        %5472 = vmatpush1.msra.mxu0 0.0
        %5473 = vmatprep.subr.mxu0 0.0
        %5474 = vmatpush1.msra.mxu0 0.0
        %5475 = vmatprep.subr.mxu0 0.0
        %5476 = vmatpush1.msra.mxu0 0.0
        %5477 = vmatprep.subr.mxu0 0.0
        %5478 = vmatpush1.msra.mxu0 0.0
        %5479 = vmatprep.subr.mxu0 0.0
        %5480 = vmatpush1.msra.mxu0 0.0
        %5481 = vmatprep.subr.mxu0 0.0
        %5482 = vmatpush1.msra.mxu0 0.0
        %5483 = vmatprep.subr.mxu0 0.0
        %5484 = vmatpush1.msra.mxu0 0.0
        %5485 = vmatprep.subr.mxu0 0.0
        %5486 = vmatpush1.msra.mxu0 0.0
        %5487 = vmatprep.subr.mxu0 0.0
        %5488 = vmatpush1.msra.mxu0 0.0
        %5489 = vmatprep.subr.mxu0 0.0
        %5490 = vmatpush1.msra.mxu0 0.0
        %5491 = vmatprep.subr.mxu0 0.0
        %5492 = vmatpush1.msra.mxu0 0.0
        %5493 = vmatprep.subr.mxu0 0.0
        %5494 = vmatpush1.msra.mxu0 0.0
        %5495 = vmatprep.subr.mxu0 0.0
        %5496 = vmatpush1.msra.mxu0 0.0
        %5497 = vmatprep.subr.mxu0 0.0
        %5498 = vmatpush1.msra.mxu0 0.0
        %5499 = vmatprep.subr.mxu0 0.0
        %5500 = vmatpush1.msra.mxu0 0.0
        %5501 = vmatprep.subr.mxu0 0.0
        %5502 = vmatpush1.msra.mxu0 0.0
        %5503 = vmatprep.subr.mxu0 0.0
        %5504 = vmatpush1.msra.mxu0 0.0
        %5505 = vmatprep.subr.mxu0 0.0
        %5506 = vmatpush1.msra.mxu0 0.0
        %5507 = vmatprep.subr.mxu0 0.0
        %5508 = vmatpush1.msra.mxu0 0.0
        %5509 = vmatprep.subr.mxu0 0.0
        %5510 = vmatpush1.msra.mxu0 0.0
        %5511 = vmatprep.subr.mxu0 0.0
        %5512 = vmatpush1.msra.mxu0 0.0
        %5513 = vmatprep.subr.mxu0 0.0
        %5514 = vmatpush1.msra.mxu0 0.0
        %5515 = vmatprep.subr.mxu0 0.0
        %5516 = vmatpush1.msra.mxu0 0.0
        %5517 = vmatprep.subr.mxu0 0.0
        %5518 = vmatpush1.msra.mxu0 0.0
        %5519 = vmatprep.subr.mxu0 0.0
        %5520 = vmatpush1.msra.mxu0 0.0
        %5521 = vmatprep.subr.mxu0 0.0
        %5522 = vmatpush1.msra.mxu0 0.0
        %5523 = vmatprep.mubr.f32.mxu0 0.0
        %5524 = vmatmul.mubr.f32.gmra.mrb[0].mxu0 %v5364
        %v5525 = vpop.f32.mrb[0].mxu0
        %v5526 = vadd.f32 0.0, %v5525
        %v5527 = vpop.f32.mrb[0].mxu0
        %5528 = vmatprep.mubr.f32.mxu0 0.0
        %5529 = vmatmul.mubr.f32.gmra.mrb[0].mxu0 %v5367
        %v5530 = vpop.f32.mrb[0].mxu0
        %v5531 = vadd.f32 0.0, %v5530
        %v5532 = vpop.f32.mrb[0].mxu0
        %5533 = vmatprep.mubr.f32.mxu0 0.0
        %5534 = vmatmul.mubr.f32.gmra.mrb[0].mxu0 %v5370
        %v5535 = vpop.f32.mrb[0].mxu0
        %v5536 = vadd.f32 0.0, %v5535
        %v5537 = vpop.f32.mrb[0].mxu0
        %5538 = vmatprep.mubr.f32.mxu0 0.0
        %5539 = vmatmul.mubr.f32.gmra.mrb[0].mxu0 %v5373
        %v5540 = vpop.f32.mrb[0].mxu0
        %v5541 = vadd.f32 0.0, %v5540
        %v5542 = vpop.f32.mrb[0].mxu0
        %5543 = vmatprep.mubr.f32.mxu0 0.0
        %5544 = vmatmul.mubr.f32.gmra.mrb[0].mxu0 %v5376
        %v5545 = vpop.f32.mrb[0].mxu0
        %v5546 = vadd.f32 0.0, %v5545
        %v5547 = vpop.f32.mrb[0].mxu0
        %5548 = vmatprep.mubr.f32.mxu0 0.0
        %5549 = vmatmul.mubr.f32.gmra.mrb[0].mxu0 %v5379
        %v5550 = vpop.f32.mrb[0].mxu0
        %v5551 = vadd.f32 0.0, %v5550
        %v5552 = vpop.f32.mrb[0].mxu0
        %5553 = vmatprep.mubr.f32.mxu0 0.0
        %5554 = vmatmul.mubr.f32.gmra.mrb[0].mxu0 %v5382
        %v5555 = vpop.f32.mrb[0].mxu0
        %v5556 = vadd.f32 0.0, %v5555
        %v5557 = vpop.f32.mrb[0].mxu0
        %5558 = vmatprep.mubr.f32.mxu0 0.0
        %5559 = vmatmul.mubr.f32.gmra.mrb[0].mxu0 %v5385
        %v5560 = vpop.f32.mrb[0].mxu0
        %v5561 = vadd.f32 0.0, %v5560
        %v5562 = vpop.f32.mrb[0].mxu0
        %5563 = vmatprep.mubr.f32.mxu0 0.0
        %5564 = vmatmul.mubr.f32.gmra.mrb[0].mxu0 %v5388
        %v5565 = vpop.f32.mrb[0].mxu0
        %v5566 = vadd.f32 0.0, %v5565
        %v5567 = vpop.f32.mrb[0].mxu0
        %5568 = vmatprep.mubr.f32.mxu0 0.0
        %5569 = vmatmul.mubr.f32.gmra.mrb[0].mxu0 %v5391
        %v5570 = vpop.f32.mrb[0].mxu0
        %v5571 = vadd.f32 0.0, %v5570
        %v5572 = vpop.f32.mrb[0].mxu0
        %5573 = vmatprep.mubr.f32.mxu0 0.0
        %5574 = vmatmul.mubr.f32.gmra.mrb[0].mxu0 %v5394
        %v5575 = vpop.f32.mrb[0].mxu0
        %v5576 = vadd.f32 0.0, %v5575
        %v5577 = vpop.f32.mrb[0].mxu0
        %5578 = vmatprep.mubr.f32.mxu0 0.0
        %5579 = vmatmul.mubr.f32.gmra.mrb[0].mxu0 %v5397
        %v5580 = vpop.f32.mrb[0].mxu0
        %v5581 = vadd.f32 0.0, %v5580
        %v5582 = vpop.f32.mrb[0].mxu0
        %5583 = vmatprep.mubr.f32.mxu0 0.0
        %5584 = vmatmul.mubr.f32.gmra.mrb[0].mxu0 %v5400
        %v5585 = vpop.f32.mrb[0].mxu0
        %v5586 = vadd.f32 0.0, %v5585
        %v5587 = vpop.f32.mrb[0].mxu0
        %5588 = vmatprep.mubr.f32.mxu0 0.0
        %5589 = vmatmul.mubr.f32.gmra.mrb[0].mxu0 %v5403
        %v5590 = vpop.f32.mrb[0].mxu0
        %v5591 = vadd.f32 0.0, %v5590
        %v5592 = vpop.f32.mrb[0].mxu0
        %5593 = vmatprep.mubr.f32.mxu0 0.0
        %5594 = vmatmul.mubr.f32.gmra.mrb[0].mxu0 %v5406
        %v5595 = vpop.f32.mrb[0].mxu0
        %v5596 = vadd.f32 0.0, %v5595
        %v5597 = vpop.f32.mrb[0].mxu0
        %5598 = vmatprep.mubr.f32.mxu0 0.0
        %5599 = vmatmul.mubr.f32.gmra.mrb[0].mxu0 %v5409
        %v5600 = vpop.f32.mrb[0].mxu0
        %v5601 = vadd.f32 0.0, %v5600
        %v5602 = vpop.f32.mrb[0].mxu0
        %5603 = vmatprep.mubr.f32.mxu0 0.0
        %5604 = vmatmul.mubr.f32.gmra.mrb[0].mxu0 %v5412
        %v5605 = vpop.f32.mrb[0].mxu0
        %v5606 = vadd.f32 0.0, %v5605
        %v5607 = vpop.f32.mrb[0].mxu0
        %5608 = vmatprep.mubr.f32.mxu0 0.0
        %5609 = vmatmul.mubr.f32.gmra.mrb[0].mxu0 %v5415
        %v5610 = vpop.f32.mrb[0].mxu0
        %v5611 = vadd.f32 0.0, %v5610
        %v5612 = vpop.f32.mrb[0].mxu0
        %5613 = vmatprep.mubr.f32.mxu0 0.0
        %5614 = vmatmul.mubr.f32.gmra.mrb[0].mxu0 %v5418
        %v5615 = vpop.f32.mrb[0].mxu0
        %v5616 = vadd.f32 0.0, %v5615
        %v5617 = vpop.f32.mrb[0].mxu0
        %5618 = vmatprep.mubr.f32.mxu0 0.0
        %5619 = vmatmul.mubr.f32.gmra.mrb[0].mxu0 %v5421
        %v5620 = vpop.f32.mrb[0].mxu0
        %v5621 = vadd.f32 0.0, %v5620
        %v5622 = vpop.f32.mrb[0].mxu0
        %5623 = vmatprep.mubr.f32.mxu0 0.0
        %5624 = vmatmul.mubr.f32.gmra.mrb[0].mxu0 %v5424
        %v5625 = vpop.f32.mrb[0].mxu0
        %v5626 = vadd.f32 0.0, %v5625
        %v5627 = vpop.f32.mrb[0].mxu0
        %5628 = vmatprep.mubr.f32.mxu0 0.0
        %5629 = vmatmul.mubr.f32.gmra.mrb[0].mxu0 %v5427
        %v5630 = vpop.f32.mrb[0].mxu0
        %v5631 = vadd.f32 0.0, %v5630
        %v5632 = vpop.f32.mrb[0].mxu0
        %5633 = vmatprep.mubr.f32.mxu0 0.0
        %5634 = vmatmul.mubr.f32.gmra.mrb[0].mxu0 %v5430
        %v5635 = vpop.f32.mrb[0].mxu0
        %v5636 = vadd.f32 0.0, %v5635
        %v5637 = vpop.f32.mrb[0].mxu0
        %5638 = vmatprep.mubr.f32.mxu0 0.0
        %5639 = vmatmul.mubr.f32.gmra.mrb[0].mxu0 %v5433
        %v5640 = vpop.f32.mrb[0].mxu0
        %v5641 = vadd.f32 0.0, %v5640
        %v5642 = vpop.f32.mrb[0].mxu0
        %5643 = vmatprep.mubr.f32.mxu0 0.0
        %5644 = vmatmul.mubr.f32.gmra.mrb[0].mxu0 %v5436
        %v5645 = vpop.f32.mrb[0].mxu0
        %v5646 = vadd.f32 0.0, %v5645
        %v5647 = vpop.f32.mrb[0].mxu0
        %5648 = vmatprep.mubr.f32.mxu0 0.0
        %5649 = vmatmul.mubr.f32.gmra.mrb[0].mxu0 %v5439
        %v5650 = vpop.f32.mrb[0].mxu0
        %v5651 = vadd.f32 0.0, %v5650
        %v5652 = vpop.f32.mrb[0].mxu0
        %5653 = vmatprep.mubr.f32.mxu0 0.0
        %5654 = vmatmul.mubr.f32.gmra.mrb[0].mxu0 %v5442
        %v5655 = vpop.f32.mrb[0].mxu0
        %v5656 = vadd.f32 0.0, %v5655
        %v5657 = vpop.f32.mrb[0].mxu0
        %5658 = vmatprep.mubr.f32.mxu0 0.0
        %5659 = vmatmul.mubr.f32.gmra.mrb[0].mxu0 %v5445
        %v5660 = vpop.f32.mrb[0].mxu0
        %v5661 = vadd.f32 0.0, %v5660
        %v5662 = vpop.f32.mrb[0].mxu0
        %5663 = vmatprep.mubr.f32.mxu0 0.0
        %5664 = vmatmul.mubr.f32.gmra.mrb[0].mxu0 %v5448
        %v5665 = vpop.f32.mrb[0].mxu0
        %v5666 = vadd.f32 0.0, %v5665
        %v5667 = vpop.f32.mrb[0].mxu0
        %5668 = vmatprep.mubr.f32.mxu0 0.0
        %5669 = vmatmul.mubr.f32.gmra.mrb[0].mxu0 %v5451
        %v5670 = vpop.f32.mrb[0].mxu0
        %v5671 = vadd.f32 0.0, %v5670
        %v5672 = vpop.f32.mrb[0].mxu0
        %5673 = vmatprep.mubr.f32.mxu0 0.0
        %5674 = vmatmul.mubr.f32.gmra.mrb[0].mxu0 %v5454
        %v5675 = vpop.f32.mrb[0].mxu0
        %v5676 = vadd.f32 0.0, %v5675
        %v5677 = vpop.f32.mrb[0].mxu0
        %5678 = vmatprep.mubr.f32.mxu0 0.0
        %5679 = vmatmul.mubr.f32.gmra.mrb[0].mxu0 %v5457
        %v5680 = vpop.f32.mrb[0].mxu0
        %v5681 = vadd.f32 0.0, %v5680
        %v5682 = vpop.f32.mrb[0].mxu0
        %5683 = vdwg.mxu0
        %v5684 = vld [vmem:[%s7] sm:$0xff]
        %v5685 = vld [vmem:[%s7 + $0x8] sm:$0xff]
        %v5686 = vld [vmem:[%s7 + $0x10] sm:$0xff]
        %v5687 = vld [vmem:[%s7 + $0x18] sm:$0xff]
        %v5688 = vld [vmem:[%s7 + $0x20] sm:$0xff]
        %v5689 = vld [vmem:[%s7 + $0x28] sm:$0xff]
        %v5690 = vld [vmem:[%s7 + $0x30] sm:$0xff]
        %v5691 = vld [vmem:[%s7 + $0x38] sm:$0xff]
        %v5692 = vld [vmem:[%s7 + $0x40] sm:$0xff]
        %v5693 = vld [vmem:[%s7 + $0x48] sm:$0xff]
        %v5694 = vld [vmem:[%s7 + $0x50] sm:$0xff]
        %v5695 = vld [vmem:[%s7 + $0x58] sm:$0xff]
        %v5696 = vld [vmem:[%s7 + $0x60] sm:$0xff]
        %v5697 = vld [vmem:[%s7 + $0x68] sm:$0xff]
        %v5698 = vld [vmem:[%s7 + $0x70] sm:$0xff]
        %v5699 = vld [vmem:[%s7 + $0x78] sm:$0xff]
        %v5700 = vld [vmem:[%s7 + $0x80] sm:$0xff]
        %v5701 = vld [vmem:[%s7 + $0x88] sm:$0xff]
        %v5702 = vld [vmem:[%s7 + $0x90] sm:$0xff]
        %v5703 = vld [vmem:[%s7 + $0x98] sm:$0xff]
        %v5704 = vld [vmem:[%s7 + $0xa0] sm:$0xff]
        %v5705 = vld [vmem:[%s7 + $0xa8] sm:$0xff]
        %v5706 = vld [vmem:[%s7 + $0xb0] sm:$0xff]
        %v5707 = vld [vmem:[%s7 + $0xb8] sm:$0xff]
        %v5708 = vld [vmem:[%s7 + $0xc0] sm:$0xff]
        %v5709 = vld [vmem:[%s7 + $0xc8] sm:$0xff]
        %v5710 = vld [vmem:[%s7 + $0xd0] sm:$0xff]
        %v5711 = vld [vmem:[%s7 + $0xd8] sm:$0xff]
        %v5712 = vld [vmem:[%s7 + $0xe0] sm:$0xff]
        %v5713 = vld [vmem:[%s7 + $0xe8] sm:$0xff]
        %v5714 = vld [vmem:[%s7 + $0xf0] sm:$0xff]
        %v5715 = vld [vmem:[%s7 + $0xf8] sm:$0xff]
        %s5716 = scalar_lea.vmem %s7, 256
        %v5717 = vld [vmem:[%s5716] sm:$0xff]
        %v5718 = vld [vmem:[%s5716 + $0x8] sm:$0xff]
        %v5719 = vld [vmem:[%s5716 + $0x10] sm:$0xff]
        %v5720 = vld [vmem:[%s5716 + $0x18] sm:$0xff]
        %v5721 = vld [vmem:[%s5716 + $0x20] sm:$0xff]
        %v5722 = vld [vmem:[%s5716 + $0x28] sm:$0xff]
        %v5723 = vld [vmem:[%s5716 + $0x30] sm:$0xff]
        %v5724 = vld [vmem:[%s5716 + $0x38] sm:$0xff]
        %v5725 = vld [vmem:[%s5716 + $0x40] sm:$0xff]
        %v5726 = vld [vmem:[%s5716 + $0x48] sm:$0xff]
        %v5727 = vld [vmem:[%s5716 + $0x50] sm:$0xff]
        %v5728 = vld [vmem:[%s5716 + $0x58] sm:$0xff]
        %v5729 = vld [vmem:[%s5716 + $0x60] sm:$0xff]
        %v5730 = vld [vmem:[%s5716 + $0x68] sm:$0xff]
        %v5731 = vld [vmem:[%s5716 + $0x70] sm:$0xff]
        %v5732 = vld [vmem:[%s5716 + $0x78] sm:$0xff]
        %v5733 = vld [vmem:[%s5716 + $0x80] sm:$0xff]
        %v5734 = vld [vmem:[%s5716 + $0x88] sm:$0xff]
        %v5735 = vld [vmem:[%s5716 + $0x90] sm:$0xff]
        %v5736 = vld [vmem:[%s5716 + $0x98] sm:$0xff]
        %v5737 = vld [vmem:[%s5716 + $0xa0] sm:$0xff]
        %v5738 = vld [vmem:[%s5716 + $0xa8] sm:$0xff]
        %v5739 = vld [vmem:[%s5716 + $0xb0] sm:$0xff]
        %v5740 = vld [vmem:[%s5716 + $0xb8] sm:$0xff]
        %v5741 = vld [vmem:[%s5716 + $0xc0] sm:$0xff]
        %v5742 = vld [vmem:[%s5716 + $0xc8] sm:$0xff]
        %v5743 = vld [vmem:[%s5716 + $0xd0] sm:$0xff]
        %v5744 = vld [vmem:[%s5716 + $0xd8] sm:$0xff]
        %v5745 = vld [vmem:[%s5716 + $0xe0] sm:$0xff]
        %v5746 = vld [vmem:[%s5716 + $0xe8] sm:$0xff]
        %v5747 = vld [vmem:[%s5716 + $0xf0] sm:$0xff]
        %v5748 = vld [vmem:[%s5716 + $0xf8] sm:$0xff]
        %5781 = vrot.lane.b32.xlu0 %v5526, 127
        %v5782 = vpop.permute.xlu0 %5781
        %5783 = vrot.lane.b32.xlu0 %v5531, 127
        %v5784 = vpop.permute.xlu0 %5783
        %5785 = vrot.lane.b32.xlu0 %v5536, 127
        %v5786 = vpop.permute.xlu0 %5785
        %5787 = vrot.lane.b32.xlu0 %v5541, 127
        %v5788 = vpop.permute.xlu0 %5787
        %5789 = vrot.lane.b32.xlu0 %v5546, 127
        %v5790 = vpop.permute.xlu0 %5789
        %5791 = vrot.lane.b32.xlu0 %v5551, 127
        %v5792 = vpop.permute.xlu0 %5791
        %5793 = vrot.lane.b32.xlu0 %v5556, 127
        %v5794 = vpop.permute.xlu0 %5793
        %5795 = vrot.lane.b32.xlu0 %v5561, 127
        %v5796 = vpop.permute.xlu0 %5795
        %5797 = vrot.lane.b32.xlu0 %v5566, 127
        %v5798 = vpop.permute.xlu0 %5797
        %5799 = vrot.lane.b32.xlu0 %v5571, 127
        %v5800 = vpop.permute.xlu0 %5799
        %5801 = vrot.lane.b32.xlu0 %v5576, 127
        %v5802 = vpop.permute.xlu0 %5801
        %5803 = vrot.lane.b32.xlu0 %v5581, 127
        %v5804 = vpop.permute.xlu0 %5803
        %5805 = vrot.lane.b32.xlu0 %v5586, 127
        %v5806 = vpop.permute.xlu0 %5805
        %5807 = vrot.lane.b32.xlu0 %v5591, 127
        %v5808 = vpop.permute.xlu0 %5807
        %5809 = vrot.lane.b32.xlu0 %v5596, 127
        %v5810 = vpop.permute.xlu0 %5809
        %5811 = vrot.lane.b32.xlu0 %v5601, 127
        %v5812 = vpop.permute.xlu0 %5811
        %5813 = vrot.lane.b32.xlu0 %v5606, 127
        %v5814 = vpop.permute.xlu0 %5813
        %5815 = vrot.lane.b32.xlu0 %v5611, 127
        %v5816 = vpop.permute.xlu0 %5815
        %5817 = vrot.lane.b32.xlu0 %v5616, 127
        %v5818 = vpop.permute.xlu0 %5817
        %5819 = vrot.lane.b32.xlu0 %v5621, 127
        %v5820 = vpop.permute.xlu0 %5819
        %5821 = vrot.lane.b32.xlu0 %v5626, 127
        %v5822 = vpop.permute.xlu0 %5821
        %5823 = vrot.lane.b32.xlu0 %v5631, 127
        %v5824 = vpop.permute.xlu0 %5823
        %5825 = vrot.lane.b32.xlu0 %v5636, 127
        %v5826 = vpop.permute.xlu0 %5825
        %5827 = vrot.lane.b32.xlu0 %v5641, 127
        %v5828 = vpop.permute.xlu0 %5827
        %5829 = vrot.lane.b32.xlu0 %v5646, 127
        %v5830 = vpop.permute.xlu0 %5829
        %5831 = vrot.lane.b32.xlu0 %v5651, 127
        %v5832 = vpop.permute.xlu0 %5831
        %5833 = vrot.lane.b32.xlu0 %v5656, 127
        %v5834 = vpop.permute.xlu0 %5833
        %5835 = vrot.lane.b32.xlu0 %v5661, 127
        %v5836 = vpop.permute.xlu0 %5835
        %5837 = vrot.lane.b32.xlu0 %v5666, 127
        %v5838 = vpop.permute.xlu0 %5837
        %5839 = vrot.lane.b32.xlu0 %v5671, 127
        %v5840 = vpop.permute.xlu0 %5839
        %5841 = vrot.lane.b32.xlu0 %v5676, 127
        %v5842 = vpop.permute.xlu0 %5841
        %5843 = vrot.lane.b32.xlu0 %v5681, 127
        %v5844 = vpop.permute.xlu0 %5843
        %5877 = vmatprep.subr.mxu0 0.0
        %5878 = vmatpush1.msra.mxu0 %v5782
        %5879 = vmatprep.subr.mxu0 0.0
        %5880 = vmatpush1.msra.mxu0 %v5784
        %5881 = vmatprep.subr.mxu0 0.0
        %5882 = vmatpush1.msra.mxu0 %v5786
        %5883 = vmatprep.subr.mxu0 0.0
        %5884 = vmatpush1.msra.mxu0 %v5788
        %5885 = vmatprep.subr.mxu0 0.0
        %5886 = vmatpush1.msra.mxu0 %v5790
        %5887 = vmatprep.subr.mxu0 0.0
        %5888 = vmatpush1.msra.mxu0 %v5792
        %5889 = vmatprep.subr.mxu0 0.0
        %5890 = vmatpush1.msra.mxu0 %v5794
        %5891 = vmatprep.subr.mxu0 0.0
        %5892 = vmatpush1.msra.mxu0 %v5796
        %5893 = vmatprep.subr.mxu0 0.0
        %5894 = vmatpush1.msra.mxu0 %v5798
        %5895 = vmatprep.subr.mxu0 0.0
        %5896 = vmatpush1.msra.mxu0 %v5800
        %5897 = vmatprep.subr.mxu0 0.0
        %5898 = vmatpush1.msra.mxu0 %v5802
        %5899 = vmatprep.subr.mxu0 0.0
        %5900 = vmatpush1.msra.mxu0 %v5804
        %5901 = vmatprep.subr.mxu0 0.0
        %5902 = vmatpush1.msra.mxu0 %v5806
        %5903 = vmatprep.subr.mxu0 0.0
        %5904 = vmatpush1.msra.mxu0 %v5808
        %5905 = vmatprep.subr.mxu0 0.0
        %5906 = vmatpush1.msra.mxu0 %v5810
        %5907 = vmatprep.subr.mxu0 0.0
        %5908 = vmatpush1.msra.mxu0 %v5812
        %5909 = vmatprep.subr.mxu0 0.0
        %5910 = vmatpush1.msra.mxu0 %v5814
        %5911 = vmatprep.subr.mxu0 0.0
        %5912 = vmatpush1.msra.mxu0 %v5816
        %5913 = vmatprep.subr.mxu0 0.0
        %5914 = vmatpush1.msra.mxu0 %v5818
        %5915 = vmatprep.subr.mxu0 0.0
        %5916 = vmatpush1.msra.mxu0 %v5820
        %5917 = vmatprep.subr.mxu0 0.0
        %5918 = vmatpush1.msra.mxu0 %v5822
        %5919 = vmatprep.subr.mxu0 0.0
        %5920 = vmatpush1.msra.mxu0 %v5824
        %5921 = vmatprep.subr.mxu0 0.0
        %5922 = vmatpush1.msra.mxu0 %v5826
        %5923 = vmatprep.subr.mxu0 0.0
        %5924 = vmatpush1.msra.mxu0 %v5828
        %5925 = vmatprep.subr.mxu0 0.0
        %5926 = vmatpush1.msra.mxu0 %v5830
        %5927 = vmatprep.subr.mxu0 0.0
        %5928 = vmatpush1.msra.mxu0 %v5832
        %5929 = vmatprep.subr.mxu0 0.0
        %5930 = vmatpush1.msra.mxu0 %v5834
        %5931 = vmatprep.subr.mxu0 0.0
        %5932 = vmatpush1.msra.mxu0 %v5836
        %5933 = vmatprep.subr.mxu0 0.0
        %5934 = vmatpush1.msra.mxu0 %v5838
        %5935 = vmatprep.subr.mxu0 0.0
        %5936 = vmatpush1.msra.mxu0 %v5840
        %5937 = vmatprep.subr.mxu0 0.0
        %5938 = vmatpush1.msra.mxu0 %v5842
        %5939 = vmatprep.subr.mxu0 0.0
        %5940 = vmatpush1.msra.mxu0 %v5844
        %5941 = vmatprep.mubr.f32.mxu0 %v5718
        %5942 = vmatmul.mubr.f32.gmra.mrb[0].mxu0 %v5717
        %v5943 = vpop.f32.mrb[0].mxu0
        %v5944 = vadd.f32 0.0, %v5943
        %v5945 = vpop.f32.mrb[0].mxu0
        %5946 = vmatprep.mubr.f32.mxu0 %v5720
        %5947 = vmatmul.mubr.f32.gmra.mrb[0].mxu0 %v5719
        %v5948 = vpop.f32.mrb[0].mxu0
        %v5949 = vadd.f32 0.0, %v5948
        %v5950 = vpop.f32.mrb[0].mxu0
        %5951 = vmatprep.mubr.f32.mxu0 %v5722
        %5952 = vmatmul.mubr.f32.gmra.mrb[0].mxu0 %v5721
        %v5953 = vpop.f32.mrb[0].mxu0
        %v5954 = vadd.f32 0.0, %v5953
        %v5955 = vpop.f32.mrb[0].mxu0
        %5956 = vmatprep.mubr.f32.mxu0 %v5724
        %5957 = vmatmul.mubr.f32.gmra.mrb[0].mxu0 %v5723
        %v5958 = vpop.f32.mrb[0].mxu0
        %v5959 = vadd.f32 0.0, %v5958
        %v5960 = vpop.f32.mrb[0].mxu0
        %5961 = vmatprep.mubr.f32.mxu0 %v5726
        %5962 = vmatmul.mubr.f32.gmra.mrb[0].mxu0 %v5725
        %v5963 = vpop.f32.mrb[0].mxu0
        %v5964 = vadd.f32 0.0, %v5963
        %v5965 = vpop.f32.mrb[0].mxu0
        %5966 = vmatprep.mubr.f32.mxu0 %v5728
        %5967 = vmatmul.mubr.f32.gmra.mrb[0].mxu0 %v5727
        %v5968 = vpop.f32.mrb[0].mxu0
        %v5969 = vadd.f32 0.0, %v5968
        %v5970 = vpop.f32.mrb[0].mxu0
        %5971 = vmatprep.mubr.f32.mxu0 %v5730
        %5972 = vmatmul.mubr.f32.gmra.mrb[0].mxu0 %v5729
        %v5973 = vpop.f32.mrb[0].mxu0
        %v5974 = vadd.f32 0.0, %v5973
        %v5975 = vpop.f32.mrb[0].mxu0
        %5976 = vmatprep.mubr.f32.mxu0 %v5732
        %5977 = vmatmul.mubr.f32.gmra.mrb[0].mxu0 %v5731
        %v5978 = vpop.f32.mrb[0].mxu0
        %v5979 = vadd.f32 0.0, %v5978
        %v5980 = vpop.f32.mrb[0].mxu0
        %5981 = vmatprep.mubr.f32.mxu0 %v5734
        %5982 = vmatmul.mubr.f32.gmra.mrb[0].mxu0 %v5733
        %v5983 = vpop.f32.mrb[0].mxu0
        %v5984 = vadd.f32 0.0, %v5983
        %v5985 = vpop.f32.mrb[0].mxu0
        %5986 = vmatprep.mubr.f32.mxu0 %v5736
        %5987 = vmatmul.mubr.f32.gmra.mrb[0].mxu0 %v5735
        %v5988 = vpop.f32.mrb[0].mxu0
        %v5989 = vadd.f32 0.0, %v5988
        %v5990 = vpop.f32.mrb[0].mxu0
        %5991 = vmatprep.mubr.f32.mxu0 %v5738
        %5992 = vmatmul.mubr.f32.gmra.mrb[0].mxu0 %v5737
        %v5993 = vpop.f32.mrb[0].mxu0
        %v5994 = vadd.f32 0.0, %v5993
        %v5995 = vpop.f32.mrb[0].mxu0
        %5996 = vmatprep.mubr.f32.mxu0 %v5740
        %5997 = vmatmul.mubr.f32.gmra.mrb[0].mxu0 %v5739
        %v5998 = vpop.f32.mrb[0].mxu0
        %v5999 = vadd.f32 0.0, %v5998
        %v6000 = vpop.f32.mrb[0].mxu0
        %6001 = vmatprep.mubr.f32.mxu0 %v5742
        %6002 = vmatmul.mubr.f32.gmra.mrb[0].mxu0 %v5741
        %v6003 = vpop.f32.mrb[0].mxu0
        %v6004 = vadd.f32 0.0, %v6003
        %v6005 = vpop.f32.mrb[0].mxu0
        %6006 = vmatprep.mubr.f32.mxu0 %v5744
        %6007 = vmatmul.mubr.f32.gmra.mrb[0].mxu0 %v5743
        %v6008 = vpop.f32.mrb[0].mxu0
        %v6009 = vadd.f32 0.0, %v6008
        %v6010 = vpop.f32.mrb[0].mxu0
        %6011 = vmatprep.mubr.f32.mxu0 %v5746
        %6012 = vmatmul.mubr.f32.gmra.mrb[0].mxu0 %v5745
        %v6013 = vpop.f32.mrb[0].mxu0
        %v6014 = vadd.f32 0.0, %v6013
        %v6015 = vpop.f32.mrb[0].mxu0
        %6016 = vmatprep.mubr.f32.mxu0 %v5748
        %6017 = vmatmul.mubr.f32.gmra.mrb[0].mxu0 %v5747
        %v6018 = vpop.f32.mrb[0].mxu0
        %v6019 = vadd.f32 0.0, %v6018
        %v6020 = vpop.f32.mrb[0].mxu0
        %6021 = vdwg.mxu0
        %6022 = vmatprep.subr.mxu0 0.0
        %6023 = vmatpush1.msra.mxu0 %v5526
        %6024 = vmatprep.subr.mxu0 0.0
        %6025 = vmatpush1.msra.mxu0 %v5531
        %6026 = vmatprep.subr.mxu0 0.0
        %6027 = vmatpush1.msra.mxu0 %v5536
        %6028 = vmatprep.subr.mxu0 0.0
        %6029 = vmatpush1.msra.mxu0 %v5541
        %6030 = vmatprep.subr.mxu0 0.0
        %6031 = vmatpush1.msra.mxu0 %v5546
        %6032 = vmatprep.subr.mxu0 0.0
        %6033 = vmatpush1.msra.mxu0 %v5551
        %6034 = vmatprep.subr.mxu0 0.0
        %6035 = vmatpush1.msra.mxu0 %v5556
        %6036 = vmatprep.subr.mxu0 0.0
        %6037 = vmatpush1.msra.mxu0 %v5561
        %6038 = vmatprep.subr.mxu0 0.0
        %6039 = vmatpush1.msra.mxu0 %v5566
        %6040 = vmatprep.subr.mxu0 0.0
        %6041 = vmatpush1.msra.mxu0 %v5571
        %6042 = vmatprep.subr.mxu0 0.0
        %6043 = vmatpush1.msra.mxu0 %v5576
        %6044 = vmatprep.subr.mxu0 0.0
        %6045 = vmatpush1.msra.mxu0 %v5581
        %6046 = vmatprep.subr.mxu0 0.0
        %6047 = vmatpush1.msra.mxu0 %v5586
        %6048 = vmatprep.subr.mxu0 0.0
        %6049 = vmatpush1.msra.mxu0 %v5591
        %6050 = vmatprep.subr.mxu0 0.0
        %6051 = vmatpush1.msra.mxu0 %v5596
        %6052 = vmatprep.subr.mxu0 0.0
        %6053 = vmatpush1.msra.mxu0 %v5601
        %6054 = vmatprep.subr.mxu0 0.0
        %6055 = vmatpush1.msra.mxu0 %v5606
        %6056 = vmatprep.subr.mxu0 0.0
        %6057 = vmatpush1.msra.mxu0 %v5611
        %6058 = vmatprep.subr.mxu0 0.0
        %6059 = vmatpush1.msra.mxu0 %v5616
        %6060 = vmatprep.subr.mxu0 0.0
        %6061 = vmatpush1.msra.mxu0 %v5621
        %6062 = vmatprep.subr.mxu0 0.0
        %6063 = vmatpush1.msra.mxu0 %v5626
        %6064 = vmatprep.subr.mxu0 0.0
        %6065 = vmatpush1.msra.mxu0 %v5631
        %6066 = vmatprep.subr.mxu0 0.0
        %6067 = vmatpush1.msra.mxu0 %v5636
        %6068 = vmatprep.subr.mxu0 0.0
        %6069 = vmatpush1.msra.mxu0 %v5641
        %6070 = vmatprep.subr.mxu0 0.0
        %6071 = vmatpush1.msra.mxu0 %v5646
        %6072 = vmatprep.subr.mxu0 0.0
        %6073 = vmatpush1.msra.mxu0 %v5651
        %6074 = vmatprep.subr.mxu0 0.0
        %6075 = vmatpush1.msra.mxu0 %v5656
        %6076 = vmatprep.subr.mxu0 0.0
        %6077 = vmatpush1.msra.mxu0 %v5661
        %6078 = vmatprep.subr.mxu0 0.0
        %6079 = vmatpush1.msra.mxu0 %v5666
        %6080 = vmatprep.subr.mxu0 0.0
        %6081 = vmatpush1.msra.mxu0 %v5671
        %6082 = vmatprep.subr.mxu0 0.0
        %6083 = vmatpush1.msra.mxu0 %v5676
        %6084 = vmatprep.subr.mxu0 0.0
        %6085 = vmatpush1.msra.mxu0 %v5681
        %6086 = vmatprep.mubr.f32.mxu0 %v5685
        %6087 = vmatmul.mubr.f32.gmra.mrb[0].mxu0 %v5684
        %v6088 = vpop.f32.mrb[0].mxu0
        %v6089 = vadd.f32 %v5944, %v6088
        %v6090 = vpop.f32.mrb[0].mxu0
        %6091 = vmatprep.mubr.f32.mxu0 %v5687
        %6092 = vmatmul.mubr.f32.gmra.mrb[0].mxu0 %v5686
        %v6093 = vpop.f32.mrb[0].mxu0
        %v6094 = vadd.f32 %v5949, %v6093
        %v6095 = vpop.f32.mrb[0].mxu0
        %6096 = vmatprep.mubr.f32.mxu0 %v5689
        %6097 = vmatmul.mubr.f32.gmra.mrb[0].mxu0 %v5688
        %v6098 = vpop.f32.mrb[0].mxu0
        %v6099 = vadd.f32 %v5954, %v6098
        %v6100 = vpop.f32.mrb[0].mxu0
        %6101 = vmatprep.mubr.f32.mxu0 %v5691
        %6102 = vmatmul.mubr.f32.gmra.mrb[0].mxu0 %v5690
        %v6103 = vpop.f32.mrb[0].mxu0
        %v6104 = vadd.f32 %v5959, %v6103
        %v6105 = vpop.f32.mrb[0].mxu0
        %6106 = vmatprep.mubr.f32.mxu0 %v5693
        %6107 = vmatmul.mubr.f32.gmra.mrb[0].mxu0 %v5692
        %v6108 = vpop.f32.mrb[0].mxu0
        %v6109 = vadd.f32 %v5964, %v6108
        %v6110 = vpop.f32.mrb[0].mxu0
        %6111 = vmatprep.mubr.f32.mxu0 %v5695
        %6112 = vmatmul.mubr.f32.gmra.mrb[0].mxu0 %v5694
        %v6113 = vpop.f32.mrb[0].mxu0
        %v6114 = vadd.f32 %v5969, %v6113
        %v6115 = vpop.f32.mrb[0].mxu0
        %6116 = vmatprep.mubr.f32.mxu0 %v5697
        %6117 = vmatmul.mubr.f32.gmra.mrb[0].mxu0 %v5696
        %v6118 = vpop.f32.mrb[0].mxu0
        %v6119 = vadd.f32 %v5974, %v6118
        %v6120 = vpop.f32.mrb[0].mxu0
        %6121 = vmatprep.mubr.f32.mxu0 %v5699
        %6122 = vmatmul.mubr.f32.gmra.mrb[0].mxu0 %v5698
        %v6123 = vpop.f32.mrb[0].mxu0
        %v6124 = vadd.f32 %v5979, %v6123
        %v6125 = vpop.f32.mrb[0].mxu0
        %6126 = vmatprep.mubr.f32.mxu0 %v5701
        %6127 = vmatmul.mubr.f32.gmra.mrb[0].mxu0 %v5700
        %v6128 = vpop.f32.mrb[0].mxu0
        %v6129 = vadd.f32 %v5984, %v6128
        %v6130 = vpop.f32.mrb[0].mxu0
        %6131 = vmatprep.mubr.f32.mxu0 %v5703
        %6132 = vmatmul.mubr.f32.gmra.mrb[0].mxu0 %v5702
        %v6133 = vpop.f32.mrb[0].mxu0
        %v6134 = vadd.f32 %v5989, %v6133
        %v6135 = vpop.f32.mrb[0].mxu0
        %6136 = vmatprep.mubr.f32.mxu0 %v5705
        %6137 = vmatmul.mubr.f32.gmra.mrb[0].mxu0 %v5704
        %v6138 = vpop.f32.mrb[0].mxu0
        %v6139 = vadd.f32 %v5994, %v6138
        %v6140 = vpop.f32.mrb[0].mxu0
        %6141 = vmatprep.mubr.f32.mxu0 %v5707
        %6142 = vmatmul.mubr.f32.gmra.mrb[0].mxu0 %v5706
        %v6143 = vpop.f32.mrb[0].mxu0
        %v6144 = vadd.f32 %v5999, %v6143
        %v6145 = vpop.f32.mrb[0].mxu0
        %6146 = vmatprep.mubr.f32.mxu0 %v5709
        %6147 = vmatmul.mubr.f32.gmra.mrb[0].mxu0 %v5708
        %v6148 = vpop.f32.mrb[0].mxu0
        %v6149 = vadd.f32 %v6004, %v6148
        %v6150 = vpop.f32.mrb[0].mxu0
        %6151 = vmatprep.mubr.f32.mxu0 %v5711
        %6152 = vmatmul.mubr.f32.gmra.mrb[0].mxu0 %v5710
        %v6153 = vpop.f32.mrb[0].mxu0
        %v6154 = vadd.f32 %v6009, %v6153
        %v6155 = vpop.f32.mrb[0].mxu0
        %6156 = vmatprep.mubr.f32.mxu0 %v5713
        %6157 = vmatmul.mubr.f32.gmra.mrb[0].mxu0 %v5712
        %v6158 = vpop.f32.mrb[0].mxu0
        %v6159 = vadd.f32 %v6014, %v6158
        %v6160 = vpop.f32.mrb[0].mxu0
        %6161 = vmatprep.mubr.f32.mxu0 %v5715
        %6162 = vmatmul.mubr.f32.gmra.mrb[0].mxu0 %v5714
        %v6163 = vpop.f32.mrb[0].mxu0
        %v6164 = vadd.f32 %v6019, %v6163
        %v6165 = vpop.f32.mrb[0].mxu0
        %6166 = vdwg.mxu0
        %v6167 = vld [vmem:[%s8] sm:$0xff]
        %v6168 = vld [vmem:[%s8 + $0x8] sm:$0xff]
        %v6169 = vld [vmem:[%s8 + $0x10] sm:$0xff]
        %v6170 = vld [vmem:[%s8 + $0x18] sm:$0xff]
        %v6171 = vld [vmem:[%s8 + $0x20] sm:$0xff]
        %v6172 = vld [vmem:[%s8 + $0x28] sm:$0xff]
        %v6173 = vld [vmem:[%s8 + $0x30] sm:$0xff]
        %v6174 = vld [vmem:[%s8 + $0x38] sm:$0xff]
        %v6175 = vld [vmem:[%s8 + $0x40] sm:$0xff]
        %v6176 = vld [vmem:[%s8 + $0x48] sm:$0xff]
        %v6177 = vld [vmem:[%s8 + $0x50] sm:$0xff]
        %v6178 = vld [vmem:[%s8 + $0x58] sm:$0xff]
        %v6179 = vld [vmem:[%s8 + $0x60] sm:$0xff]
        %v6180 = vld [vmem:[%s8 + $0x68] sm:$0xff]
        %v6181 = vld [vmem:[%s8 + $0x70] sm:$0xff]
        %v6182 = vld [vmem:[%s8 + $0x78] sm:$0xff]
        %6184 = vset.pattern.permute.xlu0 0
        %6185 = vperm.xlu0 %6184, %v6167
        %v6186 = vpop.permute.xlu0 %6185
        %6189 = vset.pattern.permute.xlu0 0
        %6190 = vperm.xlu0 %6189, %v6168
        %v6191 = vpop.permute.xlu0 %6190
        %6194 = vset.pattern.permute.xlu0 0
        %6195 = vperm.xlu0 %6194, %v6169
        %v6196 = vpop.permute.xlu0 %6195
        %6199 = vset.pattern.permute.xlu0 0
        %6200 = vperm.xlu0 %6199, %v6170
        %v6201 = vpop.permute.xlu0 %6200
        %6204 = vset.pattern.permute.xlu0 0
        %6205 = vperm.xlu0 %6204, %v6171
        %v6206 = vpop.permute.xlu0 %6205
        %6209 = vset.pattern.permute.xlu0 0
        %6210 = vperm.xlu0 %6209, %v6172
        %v6211 = vpop.permute.xlu0 %6210
        %6214 = vset.pattern.permute.xlu0 0
        %6215 = vperm.xlu0 %6214, %v6173
        %v6216 = vpop.permute.xlu0 %6215
        %6219 = vset.pattern.permute.xlu0 0
        %6220 = vperm.xlu0 %6219, %v6174
        %v6221 = vpop.permute.xlu0 %6220
        %6224 = vset.pattern.permute.xlu0 0
        %6225 = vperm.xlu0 %6224, %v6175
        %v6226 = vpop.permute.xlu0 %6225
        %6229 = vset.pattern.permute.xlu0 0
        %6230 = vperm.xlu0 %6229, %v6176
        %v6231 = vpop.permute.xlu0 %6230
        %6234 = vset.pattern.permute.xlu0 0
        %6235 = vperm.xlu0 %6234, %v6177
        %v6236 = vpop.permute.xlu0 %6235
        %6239 = vset.pattern.permute.xlu0 0
        %6240 = vperm.xlu0 %6239, %v6178
        %v6241 = vpop.permute.xlu0 %6240
        %6244 = vset.pattern.permute.xlu0 0
        %6245 = vperm.xlu0 %6244, %v6179
        %v6246 = vpop.permute.xlu0 %6245
        %6249 = vset.pattern.permute.xlu0 0
        %6250 = vperm.xlu0 %6249, %v6180
        %v6251 = vpop.permute.xlu0 %6250
        %6254 = vset.pattern.permute.xlu0 0
        %6255 = vperm.xlu0 %6254, %v6181
        %v6256 = vpop.permute.xlu0 %6255
        %6259 = vset.pattern.permute.xlu0 0
        %6260 = vperm.xlu0 %6259, %v6182
        %v6261 = vpop.permute.xlu0 %6260
        %v6263 = vadd.f32 %v6089, %v6186
        %v6264 = vadd.f32 %v6094, %v6191
        %v6265 = vadd.f32 %v6099, %v6196
        %v6266 = vadd.f32 %v6104, %v6201
        %v6267 = vadd.f32 %v6109, %v6206
        %v6268 = vadd.f32 %v6114, %v6211
        %v6269 = vadd.f32 %v6119, %v6216
        %v6270 = vadd.f32 %v6124, %v6221
        %v6271 = vadd.f32 %v6129, %v6226
        %v6272 = vadd.f32 %v6134, %v6231
        %v6273 = vadd.f32 %v6139, %v6236
        %v6274 = vadd.f32 %v6144, %v6241
        %v6275 = vadd.f32 %v6149, %v6246
        %v6276 = vadd.f32 %v6154, %v6251
        %v6277 = vadd.f32 %v6159, %v6256
        %v6278 = vadd.f32 %v6164, %v6261
        %v6279 = vmax.f32 %v6263, 0.0
        %v6280 = vmax.f32 %v6264, 0.0
        %v6281 = vmax.f32 %v6265, 0.0
        %v6282 = vmax.f32 %v6266, 0.0
        %v6283 = vmax.f32 %v6267, 0.0
        %v6284 = vmax.f32 %v6268, 0.0
        %v6285 = vmax.f32 %v6269, 0.0
        %v6286 = vmax.f32 %v6270, 0.0
        %v6287 = vmax.f32 %v6271, 0.0
        %v6288 = vmax.f32 %v6272, 0.0
        %v6289 = vmax.f32 %v6273, 0.0
        %v6290 = vmax.f32 %v6274, 0.0
        %v6291 = vmax.f32 %v6275, 0.0
        %v6292 = vmax.f32 %v6276, 0.0
        %v6293 = vmax.f32 %v6277, 0.0
        %v6294 = vmax.f32 %v6278, 0.0
        %vm6295 = vcmask 15360
        %v6296 = vsel %vm6295, %v6279, -inf
        %6297 = vmax.xlane.f32.xlu0 %v6296
        %v6298 = vpop.xlane.xlu0 %6297
        %v6299 = vsel %vm6295, %v6280, -inf
        %6300 = vmax.xlane.f32.xlu0 %v6299
        %v6301 = vpop.xlane.xlu0 %6300
        %v6302 = vsel %vm6295, %v6281, -inf
        %6303 = vmax.xlane.f32.xlu0 %v6302
        %v6304 = vpop.xlane.xlu0 %6303
        %v6305 = vsel %vm6295, %v6282, -inf
        %6306 = vmax.xlane.f32.xlu0 %v6305
        %v6307 = vpop.xlane.xlu0 %6306
        %v6308 = vsel %vm6295, %v6283, -inf
        %6309 = vmax.xlane.f32.xlu0 %v6308
        %v6310 = vpop.xlane.xlu0 %6309
        %v6311 = vsel %vm6295, %v6284, -inf
        %6312 = vmax.xlane.f32.xlu0 %v6311
        %v6313 = vpop.xlane.xlu0 %6312
        %v6314 = vsel %vm6295, %v6285, -inf
        %6315 = vmax.xlane.f32.xlu0 %v6314
        %v6316 = vpop.xlane.xlu0 %6315
        %v6317 = vsel %vm6295, %v6286, -inf
        %6318 = vmax.xlane.f32.xlu0 %v6317
        %v6319 = vpop.xlane.xlu0 %6318
        %v6320 = vsel %vm6295, %v6287, -inf
        %6321 = vmax.xlane.f32.xlu0 %v6320
        %v6322 = vpop.xlane.xlu0 %6321
        %v6323 = vsel %vm6295, %v6288, -inf
        %6324 = vmax.xlane.f32.xlu0 %v6323
        %v6325 = vpop.xlane.xlu0 %6324
        %v6326 = vsel %vm6295, %v6289, -inf
        %6327 = vmax.xlane.f32.xlu0 %v6326
        %v6328 = vpop.xlane.xlu0 %6327
        %v6329 = vsel %vm6295, %v6290, -inf
        %6330 = vmax.xlane.f32.xlu0 %v6329
        %v6331 = vpop.xlane.xlu0 %6330
        %v6332 = vsel %vm6295, %v6291, -inf
        %6333 = vmax.xlane.f32.xlu0 %v6332
        %v6334 = vpop.xlane.xlu0 %6333
        %v6335 = vsel %vm6295, %v6292, -inf
        %6336 = vmax.xlane.f32.xlu0 %v6335
        %v6337 = vpop.xlane.xlu0 %6336
        %v6338 = vsel %vm6295, %v6293, -inf
        %6339 = vmax.xlane.f32.xlu0 %v6338
        %v6340 = vpop.xlane.xlu0 %6339
        %v6341 = vsel %vm6295, %v6294, -inf
        %6342 = vmax.xlane.f32.xlu0 %v6341
        %v6343 = vpop.xlane.xlu0 %6342
        %v6344 = vld [vmem:[%s9] sm:$0x3]
        %v6345 = vld [vmem:[%s10] sm:$0x3]
        %6346 = vmatprep.subr.mxu0 0.0
        %6347 = vmatpush1.msra.mxu0 %v6298
        %6348 = vmatprep.subr.mxu0 0.0
        %6349 = vmatpush1.msra.mxu0 %v6301
        %6350 = vmatprep.subr.mxu0 0.0
        %6351 = vmatpush1.msra.mxu0 %v6304
        %6352 = vmatprep.subr.mxu0 0.0
        %6353 = vmatpush1.msra.mxu0 %v6307
        %6354 = vmatprep.subr.mxu0 0.0
        %6355 = vmatpush1.msra.mxu0 %v6310
        %6356 = vmatprep.subr.mxu0 0.0
        %6357 = vmatpush1.msra.mxu0 %v6313
        %6358 = vmatprep.subr.mxu0 0.0
        %6359 = vmatpush1.msra.mxu0 %v6316
        %6360 = vmatprep.subr.mxu0 0.0
        %6361 = vmatpush1.msra.mxu0 %v6319
        %6362 = vmatprep.subr.mxu0 0.0
        %6363 = vmatpush1.msra.mxu0 %v6322
        %6364 = vmatprep.subr.mxu0 0.0
        %6365 = vmatpush1.msra.mxu0 %v6325
        %6366 = vmatprep.subr.mxu0 0.0
        %6367 = vmatpush1.msra.mxu0 %v6328
        %6368 = vmatprep.subr.mxu0 0.0
        %6369 = vmatpush1.msra.mxu0 %v6331
        %6370 = vmatprep.subr.mxu0 0.0
        %6371 = vmatpush1.msra.mxu0 %v6334
        %6372 = vmatprep.subr.mxu0 0.0
        %6373 = vmatpush1.msra.mxu0 %v6337
        %6374 = vmatprep.subr.mxu0 0.0
        %6375 = vmatpush1.msra.mxu0 %v6340
        %6376 = vmatprep.subr.mxu0 0.0
        %6377 = vmatpush1.msra.mxu0 %v6343
        %6378 = vmatprep.subr.mxu0 0.0
        %6379 = vmatpush1.msra.mxu0 0.0
        %6380 = vmatprep.subr.mxu0 0.0
        %6381 = vmatpush1.msra.mxu0 0.0
        %6382 = vmatprep.subr.mxu0 0.0
        %6383 = vmatpush1.msra.mxu0 0.0
        %6384 = vmatprep.subr.mxu0 0.0
        %6385 = vmatpush1.msra.mxu0 0.0
        %6386 = vmatprep.subr.mxu0 0.0
        %6387 = vmatpush1.msra.mxu0 0.0
        %6388 = vmatprep.subr.mxu0 0.0
        %6389 = vmatpush1.msra.mxu0 0.0
        %6390 = vmatprep.subr.mxu0 0.0
        %6391 = vmatpush1.msra.mxu0 0.0
        %6392 = vmatprep.subr.mxu0 0.0
        %6393 = vmatpush1.msra.mxu0 0.0
        %6394 = vmatprep.subr.mxu0 0.0
        %6395 = vmatpush1.msra.mxu0 0.0
        %6396 = vmatprep.subr.mxu0 0.0
        %6397 = vmatpush1.msra.mxu0 0.0
        %6398 = vmatprep.subr.mxu0 0.0
        %6399 = vmatpush1.msra.mxu0 0.0
        %6400 = vmatprep.subr.mxu0 0.0
        %6401 = vmatpush1.msra.mxu0 0.0
        %6402 = vmatprep.subr.mxu0 0.0
        %6403 = vmatpush1.msra.mxu0 0.0
        %6404 = vmatprep.subr.mxu0 0.0
        %6405 = vmatpush1.msra.mxu0 0.0
        %6406 = vmatprep.subr.mxu0 0.0
        %6407 = vmatpush1.msra.mxu0 0.0
        %6408 = vmatprep.subr.mxu0 0.0
        %6409 = vmatpush1.msra.mxu0 0.0
        %6410 = vmatprep.mubr.f32.mxu0 0.0
        %6411 = vmatmul.mubr.f32.gmra.mrb[0].mxu0 %v6344
        %v6412 = vpop.f32.mrb[0].mxu0
        %v6413 = vadd.f32 %v6345, %v6412
        %v6414 = vpop.f32.mrb[0].mxu0
        %6415 = vdwg.mxu0
        %vm6416 = vcmask 1024
        %6417 = vst.msk [vmem:[%s414] sm:$0x3] %vm6416, %v6413
        %p6418 = scmp.lt.s32.totalorder %s24, 1
        %s6419 = scalar_select %p6418, %s24, 1
        %s6420 = smul.addr %s6419, 2
        %s6421 = scalar_lea.vmem %s11, %s6420
        // Predicated region
        $region73: #{bayes_cnn_forward.1} parent=63 // pred_check
          %p6422 = pneg %p278
        $region74: #{bayes_cnn_forward.1} parent=63 // pred_check_branch
          %6424 = sbr.rel (%p6422) target = $region76
        $region75: #{bayes_cnn_forward.1} parent=63 // pred_region
          _
        $region76: #{bayes_cnn_forward.1} parent=63 // pred_fallthru
          _
      $region64: #{bayes_cnn_forward.1} parent=5 // pred_fallthru
        _
      %p6425 = scmp.le.s32.totalorder 2, %s19
      // Predicated region
      $region77: #{bayes_cnn_forward.1} parent=5 // pred_check
        %p6426 = pneg %p6425
      $region78: #{bayes_cnn_forward.1} parent=5 // pred_check_branch
        %6428 = sbr.rel (%p6426) target = $region80
      $region79: #{bayes_cnn_forward.1} parent=5 // pred_region
        %s6429 = ssub.s32 %s19, 2
        // Predicated region
        $region81: #{bayes_cnn_forward.1} parent=79 // pred_check
          %p6430 = pneg %p284
        $region82: #{bayes_cnn_forward.1} parent=79 // pred_check_branch
          %6432 = sbr.rel (%p6430) target = $region84
        $region83: #{bayes_cnn_forward.1} parent=79 // pred_region
          %p6433 = scmp.lt.s32.totalorder %s25, 1
          %s6434 = scalar_select %p6433, %s25, 1
          %s6435 = smul.addr %s6434, 2
          %s6436 = scalar_lea.vmem %s11, %s6435
        $region84: #{bayes_cnn_forward.1} parent=79 // pred_fallthru
          _
      $region80: #{bayes_cnn_forward.1} parent=5 // pred_fallthru
        _
    $region6: #{bayes_cnn_forward.1} parent=1 // loop_footer
      %s23 = sadd.s32 1, %s19
    $region7: #{bayes_cnn_forward.1} parent=1 // loop_footer_branch
      %18 = sbr.rel target = $region3
    $region8: #{bayes_cnn_forward.1} parent=1 // loop_exit
      _
    %6437 = vsyncpa [#allocation4], 1
    %s6438 = scalar_lea.sflag [#allocation4], 1
    %6439 = vsyncpa %s6438, 1
    %6440 = vsyncpa [#allocation6], 1

</llo_original>
